<compile_context>
chip_gen: v7x
topology: tpu7x:2x2x1
jax: 0.10.0
libtpu: 0.0.40
codegen_flags: <defaults>
</compile_context>

<pallas_src>
import functools

import jax
import jax.numpy as jnp
from jax.experimental import pallas as pl
from jax.experimental.pallas import tpu as pltpu

EPS = 1e-5          # PyTorch BatchNorm1d default eps
LANE = 128          # TPU lane width


def _round_up(x, m):
    return ((x + m - 1) // m) * m


def _pick_spatial_tile(hw):
    """Largest tile in 8..4096 that divides H*W: big tiles amortize the
    ~0.35us/step grid overhead; with the small (1, C_feat) accumulator and
    k_pad=32 a double-buffered 4096-row bf16 patch tile is only ~0.5 MiB."""
    for t in (4096, 2048, 1024, 512, 256, 128, 64, 32, 16, 8):
        if hw % t == 0:
            return t
    return hw


# ----------------------------- stem kernel ----------------------------------


def _stem_kernel(p_ref, cw_ref, o_ref, *, inv_hw):
    """Conv-as-matmul (bias folded in) + ReLU + running global-average-pool.

    p_ref:  (1, TILE_HW, K_pad)  bf16 im2col patch tile for batch b
            (lane K==9*C_in is a constant 1.0 bias lane, rest zero pad)
    cw_ref: (K_pad, C_feat)      bf16 conv weight (row K holds the conv bias)
    o_ref:  (1, 1, C_feat)       f32 pooled features for batch b (resident
                                 across the spatial grid axis -> accumulator)
    """
    s_idx = pl.program_id(1)

    @pl.when(s_idx == 0)
    def _():
        o_ref[...] = jnp.zeros_like(o_ref)

    # MXU matmul (bf16 in, f32 acc); conv bias comes from the constant-1 lane,
    # so only the ReLU remains on the VPU.
    conv = jnp.maximum(
        jnp.dot(p_ref[0], cw_ref[...], preferred_element_type=jnp.float32), 0.0)

    # Per-step GAP partial: (TILE_HW, C_feat) -> (1, C_feat), then a tiny
    # accumulate into the resident output block (no full-tile store traffic).
    partial = jnp.sum(conv, axis=0, keepdims=True) * inv_hw
    o_ref[...] += partial.reshape(o_ref.shape)


# ----------------------------- head kernel ----------------------------------


def _head_kernel(pooled_ref, lw_ref, lb_ref, g_ref, bb_ref, o_ref, *, eps):
    """Linear(C_feat -> E_pad) + BatchNorm1d (training-mode batch stats).

    pooled_ref: (B, C_feat) f32, lw_ref: (C_feat, E_pad) bf16,
    lb/g/bb: (1, E_pad) f32, o_ref: (B, E_pad) f32.
    """
    y = jnp.dot(pooled_ref[...].astype(lw_ref.dtype), lw_ref[...],
                preferred_element_type=jnp.float32) + lb_ref[...]
    # BatchNorm1d training mode: batch mean / biased variance, stats in f32.
    # Zero-padded E columns yield 0 * rsqrt(eps) = 0 and are sliced off by the
    # wrapper -- intentionally benign, do not "fix".
    mean = jnp.mean(y, axis=0, keepdims=True)
    var = jnp.mean(jnp.square(y - mean), axis=0, keepdims=True)
    o_ref[...] = g_ref[...] * (y - mean) * jax.lax.rsqrt(var + eps) + bb_ref[...]


# ----------------------------- params / glue ---------------------------------


def init_params(key, *, c_in=3, c_feat=512, embed_size=32):
    """Deterministic synthetic parameters (shapes follow the module __init__)."""
    k_conv, k_lin = jax.random.split(key, 2)
    return {
        # backbone stem stand-in: conv3x3, c_in -> c_feat
        "conv_w": jax.random.normal(k_conv, (3, 3, c_in, c_feat), jnp.float32) * 0.05,
        "conv_b": jnp.zeros((1, c_feat), jnp.float32),
        # self.linear: weight ~ N(0, 0.02), bias = 0  (init_weights)
        "lin_w": jax.random.normal(k_lin, (c_feat, embed_size), jnp.float32) * 0.02,
        "lin_b": jnp.zeros((1, embed_size), jnp.float32),
        # self.bn: PyTorch defaults weight=1, bias=0
        "bn_gamma": jnp.ones((1, embed_size), jnp.float32),
        "bn_beta": jnp.zeros((1, embed_size), jnp.float32),
    }


def _im2col_3x3_same(x_nhwc):
    """(B, H, W, C) -> (B*H*W, 9*C) patches for a 3x3 stride-1 'same' conv."""
    b, h, w, c = x_nhwc.shape
    xp = jnp.pad(x_nhwc, ((0, 0), (1, 1), (1, 1), (0, 0)))
    cols = [xp[:, i:i + h, j:j + w, :] for i in range(3) for j in range(3)]
    patches = jnp.stack(cols, axis=3)                      # (B, H, W, 9, C)
    return patches.reshape(b * h * w, 9 * c)


def encoder_cnn_forward(params, images_nchw):
    """images_nchw: (B, C_in, H, W) float32 -> (B, embed_size) float32."""
    b, c_in, h, w = images_nchw.shape
    c_feat = params["conv_w"].shape[-1]
    e = params["lin_w"].shape[-1]
    hw = h * w

    # ---- wrapper prep: NCHW->NHWC, im2col, bias lane, K pad to 32, bf16 -----
    x = jnp.transpose(images_nchw, (0, 2, 3, 1))           # NCHW -> NHWC
    patches = _im2col_3x3_same(x)                          # (B*HW, 9*C_in) f32
    k = 9 * c_in
    k_pad = _round_up(k + 1, 32)                           # 27 (+1 bias lane) -> 32
    patches = jnp.pad(patches, ((0, 0), (0, k_pad - k)))
    patches = patches.at[:, k].set(1.0)                    # constant-1 bias lane
    patches = patches.astype(jnp.bfloat16).reshape(b, hw, k_pad)

    conv_w = params["conv_w"].reshape(k, c_feat)
    conv_w = jnp.concatenate(
        [conv_w,
         params["conv_b"],                                 # bias folded into row k
         jnp.zeros((k_pad - k - 1, c_feat), conv_w.dtype)],
        axis=0).astype(jnp.bfloat16)                       # (K_pad, C_feat)

    tile_hw = _pick_spatial_tile(hw)
    assert hw % tile_hw == 0, (hw, tile_hw)
    grid = (b, hw // tile_hw)

    # VMEM: double-buffered bf16 patch tile + resident conv_w + tiny output
    # block, with 2x headroom (fits v5e/v6e's 128 MiB and v7x's 64 MiB).
    vmem_bytes = (
        2 * tile_hw * k_pad * 2          # patch tiles (bf16, double-buffered)
        + 2 * k_pad * c_feat * 2         # conv_w (bf16)
        + 2 * c_feat * 4                 # (1,1,C_feat) output block
    )
    vmem_limit = int(max(16 * 1024 * 1024, 2 * vmem_bytes))

    stem_cost = pl.CostEstimate(
        flops=2 * b * hw * k * c_feat,                     # real K, not padded
        transcendentals=0,
        bytes_accessed=b * hw * k_pad * 2 + k_pad * c_feat * 2 + b * c_feat * 4,
    )

    pooled3 = pl.pallas_call(
        functools.partial(_stem_kernel, inv_hw=1.0 / hw),
        out_shape=jax.ShapeDtypeStruct((b, 1, c_feat), jnp.float32),
        grid_spec=pltpu.PrefetchScalarGridSpec(
            num_scalar_prefetch=0,
            grid=grid,                                     # (batch, spatial tiles)
            in_specs=[
                pl.BlockSpec((1, tile_hw, k_pad), lambda bi, si: (bi, si, 0)),
                pl.BlockSpec((k_pad, c_feat), lambda bi, si: (0, 0)),
            ],
            out_specs=pl.BlockSpec((1, 1, c_feat), lambda bi, si: (bi, 0, 0)),
        ),
        compiler_params=pltpu.CompilerParams(
            # Batch axis is independent (head is un-fused) -> megacore on v7x;
            # spatial axis carries the pooled accumulation -> arbitrary.
            dimension_semantics=("parallel", "arbitrary"),
            vmem_limit_bytes=vmem_limit,
        ),
        cost_estimate=stem_cost,
    )(patches, conv_w)

    pooled = pooled3[:, 0, :]                              # (B, C_feat) f32

    # ---- tiny head call: Linear + BatchNorm1d --------------------------------
    e_pad = _round_up(e, LANE)                             # 32 -> 128 (lane-dense)
    lin_w = jnp.pad(params["lin_w"], ((0, 0), (0, e_pad - e))).astype(jnp.bfloat16)
    lin_b = jnp.pad(params["lin_b"], ((0, 0), (0, e_pad - e)))
    gamma = jnp.pad(params["bn_gamma"], ((0, 0), (0, e_pad - e)))
    beta = jnp.pad(params["bn_beta"], ((0, 0), (0, e_pad - e)))

    out_pad = pl.pallas_call(
        functools.partial(_head_kernel, eps=EPS),
        out_shape=jax.ShapeDtypeStruct((b, e_pad), jnp.float32),
        grid_spec=pltpu.PrefetchScalarGridSpec(
            num_scalar_prefetch=0,
            grid=(1,),
            in_specs=[
                pl.BlockSpec((b, c_feat), lambda i: (0, 0)),
                pl.BlockSpec((c_feat, e_pad), lambda i: (0, 0)),
                pl.BlockSpec((1, e_pad), lambda i: (0, 0)),
                pl.BlockSpec((1, e_pad), lambda i: (0, 0)),
                pl.BlockSpec((1, e_pad), lambda i: (0, 0)),
            ],
            out_specs=pl.BlockSpec((b, e_pad), lambda i: (0, 0)),
        ),
        compiler_params=pltpu.CompilerParams(
            dimension_semantics=("arbitrary",),
        ),
    )(pooled, lin_w, lin_b, gamma, beta)

    return out_pad[:, :e]


if __name__ == "__main__":
    key = jax.random.PRNGKey(0)
    k_img, k_par = jax.random.split(key)

    B, C_IN, H, W = 2, 3, 32, 32
    C_FEAT, EMBED = 512, 32          # C_FEAT stands in for resnet.fc.in_features

    images = jax.random.normal(k_img, (B, C_IN, H, W), jnp.float32)
    params = init_params(k_par, c_in=C_IN, c_feat=C_FEAT, embed_size=EMBED)

    out = jax.jit(encoder_cnn_forward)(params, images)
    out = jax.block_until_ready(out)

    assert out.shape == (B, EMBED), out.shape
    assert out.dtype == jnp.float32
    assert bool(jnp.all(jnp.isfinite(out)))
    print("KERNEL_OK")
</pallas_src>

<mosaic_0001>
module attributes {stable_mosaic.version = 11 : i64} {
  func.func @_stem_kernel(%arg0: i32, %arg1: i32, %arg2: memref<1x1024x32xbf16, #tpu.memory_space<vmem>>, %arg3: memref<32x512xbf16, #tpu.memory_space<vmem>>, %arg4: memref<1x1x512xf32, #tpu.memory_space<vmem>>) attributes {dimension_semantics = [#tpu.dimension_semantics<parallel>, #tpu.dimension_semantics<arbitrary>], iteration_bounds = array<i64: 2, 1>, scalar_prefetch = 0 : i64, scratch_operands = 0 : i64, tpu.core_type = #tpu.core_type<tc>, window_params = [{transform_indices = @transform_0, window_bounds = array<i64: 1, 1024, 32>}, {pipeline_mode = #tpu.pipeline_mode<synchronous>, transform_indices = @transform_1, window_bounds = array<i64: 32, 512>}, {transform_indices = @transform_2, window_bounds = array<i64: 1, 1, 512>}]} {
    %c0_i32 = arith.constant 0 : i32
    %0 = arith.cmpi eq, %arg1, %c0_i32 : i32
    %1 = arith.extui %0 : i1 to i32
    %c0_i32_0 = arith.constant 0 : i32
    %2 = arith.cmpi ne, %1, %c0_i32_0 : i32
    scf.if %2 {
      %cst_14 = arith.constant 0.000000e+00 : f32
      %17 = vector.broadcast %cst_14 : f32 to vector<1x1x512xf32>
      %c0_15 = arith.constant 0 : index
      %c0_16 = arith.constant 0 : index
      %c0_17 = arith.constant 0 : index
      %18 = vector.load %arg4[%c0_15, %c0_16, %c0_17] : memref<1x1x512xf32, #tpu.memory_space<vmem>>, vector<1x1x512xf32>
      tpu.vector_store %arg4[%c0_15, %c0_16, %c0_17], %17 {strides = array<i32>} : memref<1x1x512xf32, #tpu.memory_space<vmem>>, vector<1x1x512xf32>,
    } else {
    }
    %c0 = arith.constant 0 : index
    %c0_1 = arith.constant 0 : index
    %c0_2 = arith.constant 0 : index
    %3 = vector.load %arg2[%c0, %c0_1, %c0_2] : memref<1x1024x32xbf16, #tpu.memory_space<vmem>>, vector<1x1024x32xbf16>
    %4 = vector.shape_cast %3 : vector<1x1024x32xbf16> to vector<1024x32xbf16>
    %c0_3 = arith.constant 0 : index
    %c0_4 = arith.constant 0 : index
    %5 = vector.load %arg3[%c0_3, %c0_4] : memref<32x512xbf16, #tpu.memory_space<vmem>>, vector<32x512xbf16>
    %cst = arith.constant dense<0.000000e+00> : vector<1024x512xf32>
    %6 = tpu.matmul %4, %5, %cst {dimension_numbers = #tpu.dot_dimension_numbers<[1], [0], [0], [1], [0, 0, 1, 1], [], []>} : vector<1024x32xbf16>, vector<32x512xbf16>, vector<1024x512xf32> -> vector<1024x512xf32>
    %cst_5 = arith.constant 0.000000e+00 : f32
    %7 = vector.broadcast %cst_5 : f32 to vector<1024x512xf32>
    %8 = arith.maximumf %6, %7 : vector<1024x512xf32>
    %cst_6 = arith.constant dense<0.000000e+00> : vector<512xf32>
    %9 = vector.multi_reduction <add>, %8, %cst_6 [0] : vector<1024x512xf32> to vector<512xf32>
    %10 = vector.shape_cast %9 : vector<512xf32> to vector<1x512xf32>
    %cst_7 = arith.constant 9.765625E-4 : f32
    %11 = vector.broadcast %cst_7 : f32 to vector<1x512xf32>
    %12 = arith.mulf %10, %11 : vector<1x512xf32>
    %c0_8 = arith.constant 0 : index
    %c0_9 = arith.constant 0 : index
    %c0_10 = arith.constant 0 : index
    %13 = vector.load %arg4[%c0_8, %c0_9, %c0_10] : memref<1x1x512xf32, #tpu.memory_space<vmem>>, vector<1x1x512xf32>
    %14 = vector.shape_cast %12 : vector<1x512xf32> to vector<1x1x512xf32>
    %15 = arith.addf %13, %14 : vector<1x1x512xf32>
    %c0_11 = arith.constant 0 : index
    %c0_12 = arith.constant 0 : index
    %c0_13 = arith.constant 0 : index
    %16 = vector.load %arg4[%c0_11, %c0_12, %c0_13] : memref<1x1x512xf32, #tpu.memory_space<vmem>>, vector<1x1x512xf32>
    tpu.vector_store %arg4[%c0_11, %c0_12, %c0_13], %15 {strides = array<i32>} : memref<1x1x512xf32, #tpu.memory_space<vmem>>, vector<1x1x512xf32>,
    return
  }
  func.func @transform_0(%arg0: i32, %arg1: i32) -> (i32, i32, i32) {
    %c0_i32 = arith.constant 0 : i32
    %c0_i32_0 = arith.constant 0 : i32
    return %arg0, %arg1, %c0_i32 : i32, i32, i32
  }
  func.func @transform_1(%arg0: i32, %arg1: i32) -> (i32, i32) {
    %c0_i32 = arith.constant 0 : i32
    %c0_i32_0 = arith.constant 0 : i32
    %c0_i32_1 = arith.constant 0 : i32
    return %c0_i32, %c0_i32_0 : i32, i32
  }
  func.func @transform_2(%arg0: i32, %arg1: i32) -> (i32, i32, i32) {
    %c0_i32 = arith.constant 0 : i32
    %c0_i32_0 = arith.constant 0 : i32
    %c0_i32_1 = arith.constant 0 : i32
    return %arg0, %c0_i32, %c0_i32_0 : i32, i32, i32
  }
}

module attributes {stable_mosaic.version = 11 : i64} {
  func.func @_head_kernel(%arg0: i32, %arg1: memref<2x512xf32, #tpu.memory_space<vmem>>, %arg2: memref<512x128xbf16, #tpu.memory_space<vmem>>, %arg3: memref<1x128xf32, #tpu.memory_space<vmem>>, %arg4: memref<1x128xf32, #tpu.memory_space<vmem>>, %arg5: memref<1x128xf32, #tpu.memory_space<vmem>>, %arg6: memref<2x128xf32, #tpu.memory_space<vmem>>) attributes {dimension_semantics = [#tpu.dimension_semantics<arbitrary>], iteration_bounds = array<i64: 1>, scalar_prefetch = 0 : i64, scratch_operands = 0 : i64, tpu.core_type = #tpu.core_type<tc>, window_params = [{pipeline_mode = #tpu.pipeline_mode<synchronous>, transform_indices = @transform_0, window_bounds = array<i64: 2, 512>}, {pipeline_mode = #tpu.pipeline_mode<synchronous>, transform_indices = @transform_1, window_bounds = array<i64: 512, 128>}, {pipeline_mode = #tpu.pipeline_mode<synchronous>, transform_indices = @transform_2, window_bounds = array<i64: 1, 128>}, {pipeline_mode = #tpu.pipeline_mode<synchronous>, transform_indices = @transform_3, window_bounds = array<i64: 1, 128>}, {pipeline_mode = #tpu.pipeline_mode<synchronous>, transform_indices = @transform_4, window_bounds = array<i64: 1, 128>}, {pipeline_mode = #tpu.pipeline_mode<synchronous>, transform_indices = @transform_5, window_bounds = array<i64: 2, 128>}]} {
    %c0 = arith.constant 0 : index
    %c0_0 = arith.constant 0 : index
    %0 = vector.load %arg1[%c0, %c0_0] : memref<2x512xf32, #tpu.memory_space<vmem>>, vector<2x512xf32>
    %1 = arith.truncf %0 : vector<2x512xf32> to vector<2x512xbf16>
    %c0_1 = arith.constant 0 : index
    %c0_2 = arith.constant 0 : index
    %2 = vector.load %arg2[%c0_1, %c0_2] : memref<512x128xbf16, #tpu.memory_space<vmem>>, vector<512x128xbf16>
    %cst = arith.constant dense<0.000000e+00> : vector<2x128xf32>
    %3 = tpu.matmul %1, %2, %cst {dimension_numbers = #tpu.dot_dimension_numbers<[1], [0], [0], [1], [0, 0, 1, 1], [], []>} : vector<2x512xbf16>, vector<512x128xbf16>, vector<2x128xf32> -> vector<2x128xf32>
    %c0_3 = arith.constant 0 : index
    %c0_4 = arith.constant 0 : index
    %4 = vector.load %arg3[%c0_3, %c0_4] : memref<1x128xf32, #tpu.memory_space<vmem>>, vector<1x128xf32>
    %5 = vector.broadcast %4 : vector<1x128xf32> to vector<2x128xf32>
    %6 = arith.addf %3, %5 : vector<2x128xf32>
    %cst_5 = arith.constant dense<0.000000e+00> : vector<128xf32>
    %7 = vector.multi_reduction <add>, %6, %cst_5 [0] : vector<2x128xf32> to vector<128xf32>
    %8 = vector.shape_cast %7 : vector<128xf32> to vector<1x128xf32>
    %cst_6 = arith.constant 2.000000e+00 : f32
    %9 = vector.broadcast %cst_6 : f32 to vector<1x128xf32>
    %10 = arith.divf %8, %9 : vector<1x128xf32>
    %11 = vector.broadcast %10 : vector<1x128xf32> to vector<2x128xf32>
    %12 = arith.subf %6, %11 : vector<2x128xf32>
    %13 = arith.mulf %12, %12 : vector<2x128xf32>
    %cst_7 = arith.constant dense<0.000000e+00> : vector<128xf32>
    %14 = vector.multi_reduction <add>, %13, %cst_7 [0] : vector<2x128xf32> to vector<128xf32>
    %15 = vector.shape_cast %14 : vector<128xf32> to vector<1x128xf32>
    %cst_8 = arith.constant 2.000000e+00 : f32
    %16 = vector.broadcast %cst_8 : f32 to vector<1x128xf32>
    %17 = arith.divf %15, %16 : vector<1x128xf32>
    %c0_9 = arith.constant 0 : index
    %c0_10 = arith.constant 0 : index
    %18 = vector.load %arg4[%c0_9, %c0_10] : memref<1x128xf32, #tpu.memory_space<vmem>>, vector<1x128xf32>
    %19 = vector.broadcast %10 : vector<1x128xf32> to vector<2x128xf32>
    %20 = arith.subf %6, %19 : vector<2x128xf32>
    %21 = vector.broadcast %18 : vector<1x128xf32> to vector<2x128xf32>
    %22 = arith.mulf %21, %20 : vector<2x128xf32>
    %cst_11 = arith.constant 9.99999974E-6 : f32
    %23 = vector.broadcast %cst_11 : f32 to vector<1x128xf32>
    %24 = arith.addf %17, %23 : vector<1x128xf32>
    %25 = math.rsqrt %24 : vector<1x128xf32>
    %26 = vector.broadcast %25 : vector<1x128xf32> to vector<2x128xf32>
    %27 = arith.mulf %22, %26 : vector<2x128xf32>
    %c0_12 = arith.constant 0 : index
    %c0_13 = arith.constant 0 : index
    %28 = vector.load %arg5[%c0_12, %c0_13] : memref<1x128xf32, #tpu.memory_space<vmem>>, vector<1x128xf32>
    %29 = vector.broadcast %28 : vector<1x128xf32> to vector<2x128xf32>
    %30 = arith.addf %27, %29 : vector<2x128xf32>
    %c0_14 = arith.constant 0 : index
    %c0_15 = arith.constant 0 : index
    %31 = vector.load %arg6[%c0_14, %c0_15] : memref<2x128xf32, #tpu.memory_space<vmem>>, vector<2x128xf32>
    tpu.vector_store %arg6[%c0_14, %c0_15], %30 {strides = array<i32>} : memref<2x128xf32, #tpu.memory_space<vmem>>, vector<2x128xf32>,
    return
  }
  func.func @transform_0(%arg0: i32) -> (i32, i32) {
    %c0_i32 = arith.constant 0 : i32
    %c0_i32_0 = arith.constant 0 : i32
    %c0_i32_1 = arith.constant 0 : i32
    return %c0_i32, %c0_i32_0 : i32, i32
  }
  func.func @transform_1(%arg0: i32) -> (i32, i32) {
    %c0_i32 = arith.constant 0 : i32
    %c0_i32_0 = arith.constant 0 : i32
    %c0_i32_1 = arith.constant 0 : i32
    return %c0_i32, %c0_i32_0 : i32, i32
  }
  func.func @transform_2(%arg0: i32) -> (i32, i32) {
    %c0_i32 = arith.constant 0 : i32
    %c0_i32_0 = arith.constant 0 : i32
    %c0_i32_1 = arith.constant 0 : i32
    return %c0_i32, %c0_i32_0 : i32, i32
  }
  func.func @transform_3(%arg0: i32) -> (i32, i32) {
    %c0_i32 = arith.constant 0 : i32
    %c0_i32_0 = arith.constant 0 : i32
    %c0_i32_1 = arith.constant 0 : i32
    return %c0_i32, %c0_i32_0 : i32, i32
  }
  func.func @transform_4(%arg0: i32) -> (i32, i32) {
    %c0_i32 = arith.constant 0 : i32
    %c0_i32_0 = arith.constant 0 : i32
    %c0_i32_1 = arith.constant 0 : i32
    return %c0_i32, %c0_i32_0 : i32, i32
  }
  func.func @transform_5(%arg0: i32) -> (i32, i32) {
    %c0_i32 = arith.constant 0 : i32
    %c0_i32_0 = arith.constant 0 : i32
    %c0_i32_1 = arith.constant 0 : i32
    return %c0_i32, %c0_i32_0 : i32, i32
  }
}

</mosaic_0001>

<llo_original>
// kernel: encoder_cnn_forward.3
$region0: #{encoder_cnn_forward.3}
  #allocation0 [shape = 'u32[]', space=smem, size = 0x4, offset = 0x4, fixed_abs, tag = 'smem constant byte address 0x4 - core index']
  #allocation1 [shape = 'u32[144,128]{1,0:T(1,128)}', space=vmem, size = 0x12000, scoped, tag = 'internal scratch']
  %s0 = inlined_call_operand.vmem [shape: f32[2,512], index: 0, kind: input, shape index: {}]
  %s1 = inlined_call_operand.vmem [shape: bf16[512,128], index: 1, kind: input, shape index: {}]
  %s2 = inlined_call_operand.vmem [shape: f32[1,128], index: 2, kind: input, shape index: {}]
  %s3 = inlined_call_operand.vmem [shape: f32[1,128], index: 3, kind: input, shape index: {}]
  %s4 = inlined_call_operand.vmem [shape: f32[1,128], index: 4, kind: input, shape index: {}]
  %s5 = inlined_call_operand.hbm [shape: f32[2,128], index: 5, kind: output, shape index: {}]
  %s6 = sld [smem:[#allocation0]]
  $region30: #{encoder_cnn_forward.3} parent=0
    _
  %s8 = ssub.s32 1, %s6
  %s9 = scalar_select 0, %s8, %s6
  $region1: #{encoder_cnn_forward.3} parent=0
    #allocation2 [shape = 'u8[1024]{0}', space=vmem, size = 0x400, scoped, tag = 'output window, operand 0, single buffered']
    #allocation3 [shape = 's32[1]{0}', space=sflag, size = 0x4, scoped, tag = 'scoped memory for encoder_cnn_forward.3']
    %10 = vsyncpa [#allocation3], 0
    // Predicated region
    $region2: #{encoder_cnn_forward.3} parent=1 // pred_check
      _
    $region3: #{encoder_cnn_forward.3} parent=1 // pred_check_branch
      %12 = sbr.rel (0) target = $region5
    $region4: #{encoder_cnn_forward.3} parent=1 // pred_region
      _
    $region5: #{encoder_cnn_forward.3} parent=1 // pred_fallthru
      _
    // Predicated region
    $region6: #{encoder_cnn_forward.3} parent=1 // pred_check
      _
    $region7: #{encoder_cnn_forward.3} parent=1 // pred_check_branch
      %14 = sbr.rel (0) target = $region9
    $region8: #{encoder_cnn_forward.3} parent=1 // pred_region
      _
    $region9: #{encoder_cnn_forward.3} parent=1 // pred_fallthru
      _
    // Predicated region
    $region10: #{encoder_cnn_forward.3} parent=1 // pred_check
      _
    $region11: #{encoder_cnn_forward.3} parent=1 // pred_check_branch
      %16 = sbr.rel (0) target = $region13
    $region12: #{encoder_cnn_forward.3} parent=1 // pred_region
      _
    $region13: #{encoder_cnn_forward.3} parent=1 // pred_fallthru
      _
    // Predicated region
    $region14: #{encoder_cnn_forward.3} parent=1 // pred_check
      _
    $region15: #{encoder_cnn_forward.3} parent=1 // pred_check_branch
      %18 = sbr.rel (0) target = $region17
    $region16: #{encoder_cnn_forward.3} parent=1 // pred_region
      _
    $region17: #{encoder_cnn_forward.3} parent=1 // pred_fallthru
      _
    // Predicated region
    $region18: #{encoder_cnn_forward.3} parent=1 // pred_check
      _
    $region19: #{encoder_cnn_forward.3} parent=1 // pred_check_branch
      %20 = sbr.rel (0) target = $region21
    $region20: #{encoder_cnn_forward.3} parent=1 // pred_region
      _
    $region21: #{encoder_cnn_forward.3} parent=1 // pred_fallthru
      _
    %v22 = vld [vmem:[%s0] sm:$0xff]
    %v24 = vcombine.high %v22, %v22
    %v26 = vunpack.c.l.s4 1983009808
    %v27 = vunpack.c.0.s8 %v26
    %v28 = vlaneseq
    %v29 = vshrl.u32 %v28, 7
    %v30 = vsub.s32 %v27, %v29
    %v31 = vrot.slane %v22, %v30
    %v33 = vunpack.c.l.s4 1983009808
    %v34 = vunpack.c.0.s8 %v33
    %v35 = vlaneseq
    %v36 = vshrl.u32 %v35, 7
    %v37 = vsub.s32 %v34, %v36
    %v38 = vrot.slane %v24, %v37
    %v39 = vcombine.high %v31, %v31
    %v40 = vcombine.high %v38, %v38
    %v45 = vpack.c.bf16 %v31, %v31
    %v46 = vpack.c.bf16 %v39, %v39
    %v47 = vpack.c.bf16 %v38, %v38
    %v48 = vpack.c.bf16 %v40, %v40
    %v49 = vld [vmem:[%s1] sm:$0xf]
    %v50 = vld [vmem:[%s1 + $0x4] sm:$0xf]
    %v51 = vld [vmem:[%s1 + $0x8] sm:$0xf]
    %v52 = vld [vmem:[%s1 + $0xc] sm:$0xf]
    %v53 = vld [vmem:[%s1 + $0x10] sm:$0xf]
    %v54 = vld [vmem:[%s1 + $0x14] sm:$0xf]
    %v55 = vld [vmem:[%s1 + $0x18] sm:$0xf]
    %v56 = vld [vmem:[%s1 + $0x1c] sm:$0xf]
    %v57 = vld [vmem:[%s1 + $0x20] sm:$0xf]
    %v58 = vld [vmem:[%s1 + $0x24] sm:$0xf]
    %v59 = vld [vmem:[%s1 + $0x28] sm:$0xf]
    %v60 = vld [vmem:[%s1 + $0x2c] sm:$0xf]
    %v61 = vld [vmem:[%s1 + $0x30] sm:$0xf]
    %v62 = vld [vmem:[%s1 + $0x34] sm:$0xf]
    %v63 = vld [vmem:[%s1 + $0x38] sm:$0xf]
    %v64 = vld [vmem:[%s1 + $0x3c] sm:$0xf]
    %v65 = vld [vmem:[%s1 + $0x40] sm:$0xf]
    %v66 = vld [vmem:[%s1 + $0x44] sm:$0xf]
    %v67 = vld [vmem:[%s1 + $0x48] sm:$0xf]
    %v68 = vld [vmem:[%s1 + $0x4c] sm:$0xf]
    %v69 = vld [vmem:[%s1 + $0x50] sm:$0xf]
    %v70 = vld [vmem:[%s1 + $0x54] sm:$0xf]
    %v71 = vld [vmem:[%s1 + $0x58] sm:$0xf]
    %v72 = vld [vmem:[%s1 + $0x5c] sm:$0xf]
    %v73 = vld [vmem:[%s1 + $0x60] sm:$0xf]
    %v74 = vld [vmem:[%s1 + $0x64] sm:$0xf]
    %v75 = vld [vmem:[%s1 + $0x68] sm:$0xf]
    %v76 = vld [vmem:[%s1 + $0x6c] sm:$0xf]
    %v77 = vld [vmem:[%s1 + $0x70] sm:$0xf]
    %v78 = vld [vmem:[%s1 + $0x74] sm:$0xf]
    %v79 = vld [vmem:[%s1 + $0x78] sm:$0xf]
    %v80 = vld [vmem:[%s1 + $0x7c] sm:$0xf]
    %v81 = vld [vmem:[%s1 + $0x80] sm:$0xf]
    %v82 = vld [vmem:[%s1 + $0x84] sm:$0xf]
    %v83 = vld [vmem:[%s1 + $0x88] sm:$0xf]
    %v84 = vld [vmem:[%s1 + $0x8c] sm:$0xf]
    %v85 = vld [vmem:[%s1 + $0x90] sm:$0xf]
    %v86 = vld [vmem:[%s1 + $0x94] sm:$0xf]
    %v87 = vld [vmem:[%s1 + $0x98] sm:$0xf]
    %v88 = vld [vmem:[%s1 + $0x9c] sm:$0xf]
    %v89 = vld [vmem:[%s1 + $0xa0] sm:$0xf]
    %v90 = vld [vmem:[%s1 + $0xa4] sm:$0xf]
    %v91 = vld [vmem:[%s1 + $0xa8] sm:$0xf]
    %v92 = vld [vmem:[%s1 + $0xac] sm:$0xf]
    %v93 = vld [vmem:[%s1 + $0xb0] sm:$0xf]
    %v94 = vld [vmem:[%s1 + $0xb4] sm:$0xf]
    %v95 = vld [vmem:[%s1 + $0xb8] sm:$0xf]
    %v96 = vld [vmem:[%s1 + $0xbc] sm:$0xf]
    %v97 = vld [vmem:[%s1 + $0xc0] sm:$0xf]
    %v98 = vld [vmem:[%s1 + $0xc4] sm:$0xf]
    %v99 = vld [vmem:[%s1 + $0xc8] sm:$0xf]
    %v100 = vld [vmem:[%s1 + $0xcc] sm:$0xf]
    %v101 = vld [vmem:[%s1 + $0xd0] sm:$0xf]
    %v102 = vld [vmem:[%s1 + $0xd4] sm:$0xf]
    %v103 = vld [vmem:[%s1 + $0xd8] sm:$0xf]
    %v104 = vld [vmem:[%s1 + $0xdc] sm:$0xf]
    %v105 = vld [vmem:[%s1 + $0xe0] sm:$0xf]
    %v106 = vld [vmem:[%s1 + $0xe4] sm:$0xf]
    %v107 = vld [vmem:[%s1 + $0xe8] sm:$0xf]
    %v108 = vld [vmem:[%s1 + $0xec] sm:$0xf]
    %v109 = vld [vmem:[%s1 + $0xf0] sm:$0xf]
    %v110 = vld [vmem:[%s1 + $0xf4] sm:$0xf]
    %v111 = vld [vmem:[%s1 + $0xf8] sm:$0xf]
    %v112 = vld [vmem:[%s1 + $0xfc] sm:$0xf]
    %v113 = vld [vmem:[%s2] sm:$0x1]
    %v115 = vlaneseq
    %v116 = vshrl.u32 %v115, 7
    %v117 = vsub.s32 0, %v116
    %v118 = vrot.slane %v113, %v117
    %v184 = vunpack.c.l.b16 %v49
    %v185 = vunpack.c.l.b16 %v50
    %v186 = vunpack.c.l.b16 %v51
    %v187 = vunpack.c.l.b16 %v52
    %v188 = vunpack.c.l.b16 %v53
    %v189 = vunpack.c.l.b16 %v54
    %v190 = vunpack.c.l.b16 %v55
    %v191 = vunpack.c.l.b16 %v56
    %v192 = vunpack.c.l.b16 %v57
    %v193 = vunpack.c.l.b16 %v58
    %v194 = vunpack.c.l.b16 %v59
    %v195 = vunpack.c.l.b16 %v60
    %v196 = vunpack.c.l.b16 %v61
    %v197 = vunpack.c.l.b16 %v62
    %v198 = vunpack.c.l.b16 %v63
    %v199 = vunpack.c.l.b16 %v64
    %v200 = vunpack.c.l.b16 %v65
    %v201 = vunpack.c.l.b16 %v66
    %v202 = vunpack.c.l.b16 %v67
    %v203 = vunpack.c.l.b16 %v68
    %v204 = vunpack.c.l.b16 %v69
    %v205 = vunpack.c.l.b16 %v70
    %v206 = vunpack.c.l.b16 %v71
    %v207 = vunpack.c.l.b16 %v72
    %v208 = vunpack.c.l.b16 %v73
    %v209 = vunpack.c.l.b16 %v74
    %v210 = vunpack.c.l.b16 %v75
    %v211 = vunpack.c.l.b16 %v76
    %v212 = vunpack.c.l.b16 %v77
    %v213 = vunpack.c.l.b16 %v78
    %v214 = vunpack.c.l.b16 %v79
    %v215 = vunpack.c.l.b16 %v80
    %v216 = vunpack.c.l.b16 %v81
    %v217 = vunpack.c.l.b16 %v82
    %v218 = vunpack.c.l.b16 %v83
    %v219 = vunpack.c.l.b16 %v84
    %v220 = vunpack.c.l.b16 %v85
    %v221 = vunpack.c.l.b16 %v86
    %v222 = vunpack.c.l.b16 %v87
    %v223 = vunpack.c.l.b16 %v88
    %v224 = vunpack.c.l.b16 %v89
    %v225 = vunpack.c.l.b16 %v90
    %v226 = vunpack.c.l.b16 %v91
    %v227 = vunpack.c.l.b16 %v92
    %v228 = vunpack.c.l.b16 %v93
    %v229 = vunpack.c.l.b16 %v94
    %v230 = vunpack.c.l.b16 %v95
    %v231 = vunpack.c.l.b16 %v96
    %v232 = vunpack.c.l.b16 %v97
    %v233 = vunpack.c.l.b16 %v98
    %v234 = vunpack.c.l.b16 %v99
    %v235 = vunpack.c.l.b16 %v100
    %v236 = vunpack.c.l.b16 %v101
    %v237 = vunpack.c.l.b16 %v102
    %v238 = vunpack.c.l.b16 %v103
    %v239 = vunpack.c.l.b16 %v104
    %v240 = vunpack.c.l.b16 %v105
    %v241 = vunpack.c.l.b16 %v106
    %v242 = vunpack.c.l.b16 %v107
    %v243 = vunpack.c.l.b16 %v108
    %v244 = vunpack.c.l.b16 %v109
    %v245 = vunpack.c.l.b16 %v110
    %v246 = vunpack.c.l.b16 %v111
    %v247 = vunpack.c.l.b16 %v112
    %v248 = vpack.c.b16 %v185, %v184
    %v249 = vpack.c.b16 %v187, %v186
    %v250 = vpack.c.b16 %v189, %v188
    %v251 = vpack.c.b16 %v191, %v190
    %v252 = vpack.c.b16 %v193, %v192
    %v253 = vpack.c.b16 %v195, %v194
    %v254 = vpack.c.b16 %v197, %v196
    %v255 = vpack.c.b16 %v199, %v198
    %v256 = vpack.c.b16 %v201, %v200
    %v257 = vpack.c.b16 %v203, %v202
    %v258 = vpack.c.b16 %v205, %v204
    %v259 = vpack.c.b16 %v207, %v206
    %v260 = vpack.c.b16 %v209, %v208
    %v261 = vpack.c.b16 %v211, %v210
    %v262 = vpack.c.b16 %v213, %v212
    %v263 = vpack.c.b16 %v215, %v214
    %v264 = vpack.c.b16 %v217, %v216
    %v265 = vpack.c.b16 %v219, %v218
    %v266 = vpack.c.b16 %v221, %v220
    %v267 = vpack.c.b16 %v223, %v222
    %v268 = vpack.c.b16 %v225, %v224
    %v269 = vpack.c.b16 %v227, %v226
    %v270 = vpack.c.b16 %v229, %v228
    %v271 = vpack.c.b16 %v231, %v230
    %v272 = vpack.c.b16 %v233, %v232
    %v273 = vpack.c.b16 %v235, %v234
    %v274 = vpack.c.b16 %v237, %v236
    %v275 = vpack.c.b16 %v239, %v238
    %v276 = vpack.c.b16 %v241, %v240
    %v277 = vpack.c.b16 %v243, %v242
    %v278 = vpack.c.b16 %v245, %v244
    %v279 = vpack.c.b16 %v247, %v246
    %312 = vmatprep.subr.bf16.mxu0 0
    %313 = vmatpush1.bf16.msra.mxu0 %v248
    %314 = vmatprep.subr.bf16.mxu0 0
    %315 = vmatpush1.bf16.msra.mxu0 %v249
    %316 = vmatprep.subr.bf16.mxu0 0
    %317 = vmatpush1.bf16.msra.mxu0 %v250
    %318 = vmatprep.subr.bf16.mxu0 0
    %319 = vmatpush1.bf16.msra.mxu0 %v251
    %320 = vmatprep.subr.bf16.mxu0 0
    %321 = vmatpush1.bf16.msra.mxu0 %v252
    %322 = vmatprep.subr.bf16.mxu0 0
    %323 = vmatpush1.bf16.msra.mxu0 %v253
    %324 = vmatprep.subr.bf16.mxu0 0
    %325 = vmatpush1.bf16.msra.mxu0 %v254
    %326 = vmatprep.subr.bf16.mxu0 0
    %327 = vmatpush1.bf16.msra.mxu0 %v255
    %328 = vmatprep.subr.bf16.mxu0 0
    %329 = vmatpush1.bf16.msra.mxu0 %v256
    %330 = vmatprep.subr.bf16.mxu0 0
    %331 = vmatpush1.bf16.msra.mxu0 %v257
    %332 = vmatprep.subr.bf16.mxu0 0
    %333 = vmatpush1.bf16.msra.mxu0 %v258
    %334 = vmatprep.subr.bf16.mxu0 0
    %335 = vmatpush1.bf16.msra.mxu0 %v259
    %336 = vmatprep.subr.bf16.mxu0 0
    %337 = vmatpush1.bf16.msra.mxu0 %v260
    %338 = vmatprep.subr.bf16.mxu0 0
    %339 = vmatpush1.bf16.msra.mxu0 %v261
    %340 = vmatprep.subr.bf16.mxu0 0
    %341 = vmatpush1.bf16.msra.mxu0 %v262
    %342 = vmatprep.subr.bf16.mxu0 0
    %343 = vmatpush1.bf16.msra.mxu0 %v263
    %344 = vmatprep.mubr.bf16.mxu0 %v46
    %345 = vmatmul.mubr.bf16.gmra.mrb[0].mxu0 %v45
    %v346 = vpop.f32.mrb[0].mxu0
    %v347 = vadd.f32 %v118, %v346
    %v348 = vpop.f32.mrb[0].mxu0
    %v349 = vpop.f32.mrb[0].mxu0
    %v350 = vpop.f32.mrb[0].mxu0
    %351 = vdwg.mxu0
    %352 = vmatprep.subr.bf16.mxu0 0
    %353 = vmatpush1.bf16.msra.mxu0 %v264
    %354 = vmatprep.subr.bf16.mxu0 0
    %355 = vmatpush1.bf16.msra.mxu0 %v265
    %356 = vmatprep.subr.bf16.mxu0 0
    %357 = vmatpush1.bf16.msra.mxu0 %v266
    %358 = vmatprep.subr.bf16.mxu0 0
    %359 = vmatpush1.bf16.msra.mxu0 %v267
    %360 = vmatprep.subr.bf16.mxu0 0
    %361 = vmatpush1.bf16.msra.mxu0 %v268
    %362 = vmatprep.subr.bf16.mxu0 0
    %363 = vmatpush1.bf16.msra.mxu0 %v269
    %364 = vmatprep.subr.bf16.mxu0 0
    %365 = vmatpush1.bf16.msra.mxu0 %v270
    %366 = vmatprep.subr.bf16.mxu0 0
    %367 = vmatpush1.bf16.msra.mxu0 %v271
    %368 = vmatprep.subr.bf16.mxu0 0
    %369 = vmatpush1.bf16.msra.mxu0 %v272
    %370 = vmatprep.subr.bf16.mxu0 0
    %371 = vmatpush1.bf16.msra.mxu0 %v273
    %372 = vmatprep.subr.bf16.mxu0 0
    %373 = vmatpush1.bf16.msra.mxu0 %v274
    %374 = vmatprep.subr.bf16.mxu0 0
    %375 = vmatpush1.bf16.msra.mxu0 %v275
    %376 = vmatprep.subr.bf16.mxu0 0
    %377 = vmatpush1.bf16.msra.mxu0 %v276
    %378 = vmatprep.subr.bf16.mxu0 0
    %379 = vmatpush1.bf16.msra.mxu0 %v277
    %380 = vmatprep.subr.bf16.mxu0 0
    %381 = vmatpush1.bf16.msra.mxu0 %v278
    %382 = vmatprep.subr.bf16.mxu0 0
    %383 = vmatpush1.bf16.msra.mxu0 %v279
    %384 = vmatprep.mubr.bf16.mxu0 %v48
    %385 = vmatmul.mubr.bf16.gmra.mrb[0].mxu0 %v47
    %v386 = vpop.f32.mrb[0].mxu0
    %v387 = vadd.f32 %v347, %v386
    %v388 = vpop.f32.mrb[0].mxu0
    %v389 = vpop.f32.mrb[0].mxu0
    %v390 = vpop.f32.mrb[0].mxu0
    %391 = vdwg.mxu0
    %vm392 = vcmask 1041408
    %v393 = vsel %vm392, %v387, 0.0
    %v394 = vrot.slane %v393, 4
    %v395 = vadd.f32 %v393, %v394
    %v396 = vrot.slane %v395, 2
    %v397 = vadd.f32 %v395, %v396
    %v398 = vrot.slane %v397, 1
    %v399 = vadd.f32 %v397, %v398
    %v400 = vrcp.pop 2.0
    %v401 = vmul.f32 %v399, %v400
    %v402 = vsub.f32 %v387, %v401
    %v403 = vmul.f32 %v402, %v402
    %v404 = vsel %vm392, %v403, 0.0
    %v405 = vrot.slane %v404, 4
    %v406 = vadd.f32 %v404, %v405
    %v407 = vrot.slane %v406, 2
    %v408 = vadd.f32 %v406, %v407
    %v409 = vrot.slane %v408, 1
    %v410 = vadd.f32 %v408, %v409
    %v411 = vmul.f32 %v410, %v400
    %v412 = vld [vmem:[%s3] sm:$0x1]
    %v414 = vlaneseq
    %v415 = vshrl.u32 %v414, 7
    %v416 = vsub.s32 0, %v415
    %v417 = vrot.slane %v412, %v416
    %v419 = vmul.f32 %v417, %v402
    %v420 = vadd.f32 %v411, 1e-05
    %v421 = vrsqrt.pop %v420
    %v422 = vmul.f32 %v419, %v421
    %v423 = vld [vmem:[%s4] sm:$0x1]
    %v425 = vlaneseq
    %v426 = vshrl.u32 %v425, 7
    %v427 = vsub.s32 0, %v426
    %v428 = vrot.slane %v423, %v427
    %v430 = vadd.f32 %v422, %v428
    %431 = vst [vmem:[#allocation2] sm:$0x3] %v430
    // Predicated region
    $region22: #{encoder_cnn_forward.3} parent=1 // pred_check
      _
    $region23: #{encoder_cnn_forward.3} parent=1 // pred_check_branch
      %433 = sbr.rel (0) target = $region25
    $region24: #{encoder_cnn_forward.3} parent=1 // pred_region
      %s435 = ssub.s32 32, 32
      %436 = vsyncadd [#allocation3], %s435
      %s438 = sshll.u32 [#allocation2], 4
      %s439 = int_to_ptr.vmem [resolvable:$true] %s438
      %441 = dma.vmem_to_hbm [thread:$0]  %s439, 32, %s5, [#allocation3]
    $region25: #{encoder_cnn_forward.3} parent=1 // pred_fallthru
      _
    // Predicated region
    $region26: #{encoder_cnn_forward.3} parent=1 // pred_check
      _
    $region27: #{encoder_cnn_forward.3} parent=1 // pred_check_branch
      %443 = sbr.rel (0) target = $region29
    $region28: #{encoder_cnn_forward.3} parent=1 // pred_region
      %444 = dma.done [#allocation3], 32
    $region29: #{encoder_cnn_forward.3} parent=1 // pred_fallthru
      _
    %445 = vsyncpa [#allocation3], 1

// kernel: encoder_cnn_forward.2
$region0: #{encoder_cnn_forward.2}
  #allocation0 [shape = 'u32[]', space=smem, size = 0x4, offset = 0x4, fixed_abs, tag = 'smem constant byte address 0x4 - core index']
  #allocation1 [shape = 'u32[144,128]{1,0:T(1,128)}', space=vmem, size = 0x12000, scoped, tag = 'internal scratch']
  %s0 = inlined_call_operand.vmem [shape: bf16[2,1024,32], index: 0, kind: input, shape index: {}]
  %s1 = inlined_call_operand.vmem [shape: bf16[32,512], index: 1, kind: input, shape index: {}]
  %s2 = inlined_call_operand.vmem [shape: f32[2,1,512], index: 2, kind: output, shape index: {}]
  %s3 = sld [smem:[#allocation0]]
  $region45: #{encoder_cnn_forward.2} parent=0
    _
  %s5 = ssub.s32 1, %s3
  %s6 = scalar_select 0, %s5, %s3
  loop: start=0, step=1, limit=4
  $region2: #{encoder_cnn_forward.2} parent=0 // loop_pre_header
    _
  $region3: #{encoder_cnn_forward.2} parent=0 // loop_header
    %s8 = sphi 0, %s12
    %p9 = scmp.ge.s32.totalorder %s8, 4
    %s15 = sphi 0, %s27
    %s16 = sphi 0, %s23
    %s17 = sphi 0, %s15
    %s18 = sphi 0, %s16
    %s19 = sphi 0, %s17
    %s20 = sphi 0, %s18
    %s32 = sphi 0, %s34
    %s35 = sphi 0, %s32
    %s36 = sphi 0, %s35
    %s52 = sphi 0, %s36
    %s56 = sphi 0, %s56
    %s58 = sphi 0, %s56
    %s59 = sphi 0, %s58
    %s73 = sphi 0, %s59
    %s79 = sphi 0, %s81
    %s82 = sphi 0, %s79
    %s83 = sphi 0, %s82
    %s99 = sphi 0, %s83
  $region4: #{encoder_cnn_forward.2} parent=0 // loop_header_branch
    %11 = sbr.rel (%p9) target = $region8
  $region5: #{encoder_cnn_forward.2} parent=0 // loop_body
    %s13 = ssub.s32 %s8, 1
    %s14 = ssub.s32 %s8, 2
    %s21 = sadd.s32 1, %s16
    %p22 = scmp.ge.s32.totalorder %s21, 1
    %s23 = scalar_select %p22, 0, %s21
    %s24 = sadd.s32 1, %s15
    %s25 = scalar_select %p22, %s24, %s15
    %p26 = scmp.ge.s32.totalorder %s25, 2
    %s27 = scalar_select %p26, 0, %s25
    %s28 = ssub.s32 %s15, %s27
    %s29 = ssub.s32 %s16, %s23
    %s30 = sor.u32 %s28, %s29
    %p31 = scmp.eq.s32.totalorder %s30, 0
    %s33 = sadd.s32 %s32, 1
    %s34 = scalar_select %p31, %s32, %s33
    %p37 = pneg %p31
    %p38 = scmp.eq.s32.totalorder %s8, 1
    %p39 = por %p37, %p38
    %p40 = scmp.ne.s32.totalorder %s32, %s35
    %p41 = scmp.eq.s32.totalorder %s8, 0
    %p42 = por %p40, %p41
    %p43 = scmp.ne.s32.totalorder %s32, %s35
    %p44 = scmp.eq.s32.totalorder %s13, 1
    %p45 = por %p43, %p44
    %p46 = scmp.ne.s32.totalorder %s35, %s36
    %p47 = scmp.eq.s32.totalorder %s13, 0
    %p48 = por %p46, %p47
    %p49 = scmp.ne.s32.totalorder %s35, %s36
    %p50 = scmp.eq.s32.totalorder %s14, 1
    %p51 = por %p49, %p50
    %p53 = scmp.ne.s32.totalorder %s36, %s52
    %p54 = scmp.eq.s32.totalorder %s14, 0
    %p55 = por %p53, %p54
    %s57 = sadd.s32 %s56, 1
    %p60 = scmp.eq.s32.totalorder %s8, 1
    %p61 = scmp.ne.s32.totalorder %s56, %s58
    %p62 = scmp.eq.s32.totalorder %s8, 0
    %p63 = por %p61, %p62
    %p64 = scmp.ne.s32.totalorder %s56, %s58
    %p65 = scmp.eq.s32.totalorder %s13, 1
    %p66 = por %p64, %p65
    %p67 = scmp.ne.s32.totalorder %s58, %s59
    %p68 = scmp.eq.s32.totalorder %s13, 0
    %p69 = por %p67, %p68
    %p70 = scmp.ne.s32.totalorder %s58, %s59
    %p71 = scmp.eq.s32.totalorder %s14, 1
    %p72 = por %p70, %p71
    %p74 = scmp.ne.s32.totalorder %s59, %s73
    %p75 = scmp.eq.s32.totalorder %s14, 0
    %p76 = por %p74, %p75
    %s77 = ssub.s32 %s15, %s27
    %p78 = scmp.eq.s32.totalorder %s77, 0
    %s80 = sadd.s32 %s79, 1
    %s81 = scalar_select %p78, %s79, %s80
    %p84 = pneg %p78
    %p85 = scmp.eq.s32.totalorder %s8, 1
    %p86 = por %p84, %p85
    %p87 = scmp.ne.s32.totalorder %s79, %s82
    %p88 = scmp.eq.s32.totalorder %s8, 0
    %p89 = por %p87, %p88
    %p90 = scmp.ne.s32.totalorder %s79, %s82
    %p91 = scmp.eq.s32.totalorder %s13, 1
    %p92 = por %p90, %p91
    %p93 = scmp.ne.s32.totalorder %s82, %s83
    %p94 = scmp.eq.s32.totalorder %s13, 0
    %p95 = por %p93, %p94
    %p96 = scmp.ne.s32.totalorder %s82, %s83
    %p97 = scmp.eq.s32.totalorder %s14, 1
    %p98 = por %p96, %p97
    %p100 = scmp.ne.s32.totalorder %s83, %s99
    %p101 = scmp.eq.s32.totalorder %s14, 0
    %p102 = por %p100, %p101
    %p103 = scmp.le.s32.totalorder 1, %s8
    %p104 = scmp.lt.s32.totalorder %s8, 3
    %p105 = pnand %p103, %p104
    %p106 = pneg %p105
    // Predicated region
    $region9: #{encoder_cnn_forward.2} parent=5 // pred_check
      _
    $region10: #{encoder_cnn_forward.2} parent=5 // pred_check_branch
      %108 = sbr.rel (%p105) target = $region12
    $region11: #{encoder_cnn_forward.2} parent=5 // pred_region
      %s109 = ssub.s32 %s8, 1
      // Predicated region
      $region13: #{encoder_cnn_forward.2} parent=11 // pred_check
        %p110 = pneg %p69
      $region14: #{encoder_cnn_forward.2} parent=11 // pred_check_branch
        %112 = sbr.rel (%p110) target = $region16
      $region15: #{encoder_cnn_forward.2} parent=11 // pred_region
        _
      $region16: #{encoder_cnn_forward.2} parent=11 // pred_fallthru
        _
    $region12: #{encoder_cnn_forward.2} parent=5 // pred_fallthru
      _
    %p113 = scmp.lt.s32.totalorder %s8, 2
    // Predicated region
    $region17: #{encoder_cnn_forward.2} parent=5 // pred_check
      %p114 = pneg %p113
    $region18: #{encoder_cnn_forward.2} parent=5 // pred_check_branch
      %116 = sbr.rel (%p114) target = $region20
    $region19: #{encoder_cnn_forward.2} parent=5 // pred_region
      // Predicated region
      $region21: #{encoder_cnn_forward.2} parent=19 // pred_check
        %p117 = pneg %p42
      $region22: #{encoder_cnn_forward.2} parent=19 // pred_check_branch
        %119 = sbr.rel (%p117) target = $region24
      $region23: #{encoder_cnn_forward.2} parent=19 // pred_region
        %s120 = smul.u32 128, %s16
        %p121 = scmp.lt.s32.totalorder %s15, 1
        %s122 = scalar_select %p121, %s15, 1
        %p123 = scmp.lt.s32.totalorder %s120, 127
        %s124 = scalar_select %p123, %s120, 127
        %s125 = smul.addr %s122, 128
        %s126 = sadd.s32 %s124, %s125
        %s127 = smul.addr %s126, 4
        %s128 = scalar_lea.vmem %s0, %s127
        %s129 = smul.u32 128, %s16
      $region24: #{encoder_cnn_forward.2} parent=19 // pred_fallthru
        _
    $region20: #{encoder_cnn_forward.2} parent=5 // pred_fallthru
      _
    %p130 = scmp.le.s32.totalorder 1, %s8
    %p131 = scmp.lt.s32.totalorder %s8, 3
    %p132 = pnand %p130, %p131
    %p133 = pneg %p132
    // Predicated region
    $region25: #{encoder_cnn_forward.2} parent=5 // pred_check
      _
    $region26: #{encoder_cnn_forward.2} parent=5 // pred_check_branch
      %135 = sbr.rel (%p132) target = $region28
    $region27: #{encoder_cnn_forward.2} parent=5 // pred_region
      %s136 = ssub.s32 %s8, 1
      %s137 = smul.u32 128, %s18
      %p138 = scmp.lt.s32.totalorder %s17, 1
      %s139 = scalar_select %p138, %s17, 1
      %p140 = scmp.lt.s32.totalorder %s137, 127
      %s141 = scalar_select %p140, %s137, 127
      %s142 = smul.addr %s139, 128
      %s143 = sadd.s32 %s141, %s142
      %s144 = smul.addr %s143, 4
      %s145 = scalar_lea.vmem %s0, %s144
      %p146 = pneg %p48
      %p147 = pneg %p45
      %p148 = pneg %p69
      %p149 = pneg %p66
      %p150 = pneg %p95
      %p151 = pneg %p92
      %p152 = scmp.lt.s32.totalorder %s17, 1
      %s153 = scalar_select %p152, %s17, 1
      %s154 = smul.addr %s153, 4
      %s155 = scalar_lea.vmem %s2, %s154
      %s156 = smul.u32 128, %s18
      %p157 = scmp.lt.s32.totalorder %s17, 1
      %s158 = scalar_select %p157, %s17, 1
      %p159 = scmp.lt.s32.totalorder %s156, 127
      %s160 = scalar_select %p159, %s156, 127
      %s161 = smul.addr %s158, 128
      %s162 = sadd.s32 %s160, %s161
      %s163 = smul.addr %s162, 4
      %s164 = scalar_lea.vmem %s0, %s163
      %s165 = smul.u32 128, %s18
      %p166 = scmp.lt.s32.totalorder %s17, 1
      %s167 = scalar_select %p166, %s17, 1
      %s168 = smul.addr %s167, 4
      %s169 = scalar_lea.vmem %s2, %s168
      %p171 = scmp.eq.s32.totalorder %s18, 0
      // Predicated region
      $region29: #{encoder_cnn_forward.2} parent=27 // pred_check
        %p172 = pneg %p171
      $region30: #{encoder_cnn_forward.2} parent=27 // pred_check_branch
        %174 = sbr.rel (%p172) target = $region32
      $region31: #{encoder_cnn_forward.2} parent=27 // pred_region
        %v175 = vlaneseq
        %vm176 = vcmp.ge.s32.totalorder %v175, 0
        %vm177 = vcmp.lt.s32.totalorder %v175, 512
        %vm178 = vmand %vm176, %vm177
        %179 = vst.msk [vmem:[%s169] sm:$0xf] %vm178, 0.0
      $region32: #{encoder_cnn_forward.2} parent=27 // pred_fallthru
        _
      %v180 = vld [vmem:[%s164] sm:$0xf]
      %v181 = vld [vmem:[%s164 + $0x4] sm:$0xf]
      %v182 = vld [vmem:[%s164 + $0x8] sm:$0xf]
      %v183 = vld [vmem:[%s164 + $0xc] sm:$0xf]
      %v184 = vld [vmem:[%s164 + $0x10] sm:$0xf]
      %v185 = vld [vmem:[%s164 + $0x14] sm:$0xf]
      %v186 = vld [vmem:[%s164 + $0x18] sm:$0xf]
      %v187 = vld [vmem:[%s164 + $0x1c] sm:$0xf]
      %v188 = vld [vmem:[%s164 + $0x20] sm:$0xf]
      %v189 = vld [vmem:[%s164 + $0x24] sm:$0xf]
      %v190 = vld [vmem:[%s164 + $0x28] sm:$0xf]
      %v191 = vld [vmem:[%s164 + $0x2c] sm:$0xf]
      %v192 = vld [vmem:[%s164 + $0x30] sm:$0xf]
      %v193 = vld [vmem:[%s164 + $0x34] sm:$0xf]
      %v194 = vld [vmem:[%s164 + $0x38] sm:$0xf]
      %v195 = vld [vmem:[%s164 + $0x3c] sm:$0xf]
      %v196 = vld [vmem:[%s164 + $0x40] sm:$0xf]
      %v197 = vld [vmem:[%s164 + $0x44] sm:$0xf]
      %v198 = vld [vmem:[%s164 + $0x48] sm:$0xf]
      %v199 = vld [vmem:[%s164 + $0x4c] sm:$0xf]
      %v200 = vld [vmem:[%s164 + $0x50] sm:$0xf]
      %v201 = vld [vmem:[%s164 + $0x54] sm:$0xf]
      %v202 = vld [vmem:[%s164 + $0x58] sm:$0xf]
      %v203 = vld [vmem:[%s164 + $0x5c] sm:$0xf]
      %v204 = vld [vmem:[%s164 + $0x60] sm:$0xf]
      %v205 = vld [vmem:[%s164 + $0x64] sm:$0xf]
      %v206 = vld [vmem:[%s164 + $0x68] sm:$0xf]
      %v207 = vld [vmem:[%s164 + $0x6c] sm:$0xf]
      %v208 = vld [vmem:[%s164 + $0x70] sm:$0xf]
      %v209 = vld [vmem:[%s164 + $0x74] sm:$0xf]
      %v210 = vld [vmem:[%s164 + $0x78] sm:$0xf]
      %v211 = vld [vmem:[%s164 + $0x7c] sm:$0xf]
      %v212 = vld [vmem:[%s164 + $0x80] sm:$0xf]
      %v213 = vld [vmem:[%s164 + $0x84] sm:$0xf]
      %v214 = vld [vmem:[%s164 + $0x88] sm:$0xf]
      %v215 = vld [vmem:[%s164 + $0x8c] sm:$0xf]
      %v216 = vld [vmem:[%s164 + $0x90] sm:$0xf]
      %v217 = vld [vmem:[%s164 + $0x94] sm:$0xf]
      %v218 = vld [vmem:[%s164 + $0x98] sm:$0xf]
      %v219 = vld [vmem:[%s164 + $0x9c] sm:$0xf]
      %v220 = vld [vmem:[%s164 + $0xa0] sm:$0xf]
      %v221 = vld [vmem:[%s164 + $0xa4] sm:$0xf]
      %v222 = vld [vmem:[%s164 + $0xa8] sm:$0xf]
      %v223 = vld [vmem:[%s164 + $0xac] sm:$0xf]
      %v224 = vld [vmem:[%s164 + $0xb0] sm:$0xf]
      %v225 = vld [vmem:[%s164 + $0xb4] sm:$0xf]
      %v226 = vld [vmem:[%s164 + $0xb8] sm:$0xf]
      %v227 = vld [vmem:[%s164 + $0xbc] sm:$0xf]
      %v228 = vld [vmem:[%s164 + $0xc0] sm:$0xf]
      %v229 = vld [vmem:[%s164 + $0xc4] sm:$0xf]
      %v230 = vld [vmem:[%s164 + $0xc8] sm:$0xf]
      %v231 = vld [vmem:[%s164 + $0xcc] sm:$0xf]
      %v232 = vld [vmem:[%s164 + $0xd0] sm:$0xf]
      %v233 = vld [vmem:[%s164 + $0xd4] sm:$0xf]
      %v234 = vld [vmem:[%s164 + $0xd8] sm:$0xf]
      %v235 = vld [vmem:[%s164 + $0xdc] sm:$0xf]
      %v236 = vld [vmem:[%s164 + $0xe0] sm:$0xf]
      %v237 = vld [vmem:[%s164 + $0xe4] sm:$0xf]
      %v238 = vld [vmem:[%s164 + $0xe8] sm:$0xf]
      %v239 = vld [vmem:[%s164 + $0xec] sm:$0xf]
      %v240 = vld [vmem:[%s164 + $0xf0] sm:$0xf]
      %v241 = vld [vmem:[%s164 + $0xf4] sm:$0xf]
      %v242 = vld [vmem:[%s164 + $0xf8] sm:$0xf]
      %v243 = vld [vmem:[%s164 + $0xfc] sm:$0xf]
      %v244 = vld [vmem:[%s164 + $0x100] sm:$0xf]
      %v245 = vld [vmem:[%s164 + $0x104] sm:$0xf]
      %v246 = vld [vmem:[%s164 + $0x108] sm:$0xf]
      %v247 = vld [vmem:[%s164 + $0x10c] sm:$0xf]
      %v248 = vld [vmem:[%s164 + $0x110] sm:$0xf]
      %v249 = vld [vmem:[%s164 + $0x114] sm:$0xf]
      %v250 = vld [vmem:[%s164 + $0x118] sm:$0xf]
      %v251 = vld [vmem:[%s164 + $0x11c] sm:$0xf]
      %v252 = vld [vmem:[%s164 + $0x120] sm:$0xf]
      %v253 = vld [vmem:[%s164 + $0x124] sm:$0xf]
      %v254 = vld [vmem:[%s164 + $0x128] sm:$0xf]
      %v255 = vld [vmem:[%s164 + $0x12c] sm:$0xf]
      %v256 = vld [vmem:[%s164 + $0x130] sm:$0xf]
      %v257 = vld [vmem:[%s164 + $0x134] sm:$0xf]
      %v258 = vld [vmem:[%s164 + $0x138] sm:$0xf]
      %v259 = vld [vmem:[%s164 + $0x13c] sm:$0xf]
      %v260 = vld [vmem:[%s164 + $0x140] sm:$0xf]
      %v261 = vld [vmem:[%s164 + $0x144] sm:$0xf]
      %v262 = vld [vmem:[%s164 + $0x148] sm:$0xf]
      %v263 = vld [vmem:[%s164 + $0x14c] sm:$0xf]
      %v264 = vld [vmem:[%s164 + $0x150] sm:$0xf]
      %v265 = vld [vmem:[%s164 + $0x154] sm:$0xf]
      %v266 = vld [vmem:[%s164 + $0x158] sm:$0xf]
      %v267 = vld [vmem:[%s164 + $0x15c] sm:$0xf]
      %v268 = vld [vmem:[%s164 + $0x160] sm:$0xf]
      %v269 = vld [vmem:[%s164 + $0x164] sm:$0xf]
      %v270 = vld [vmem:[%s164 + $0x168] sm:$0xf]
      %v271 = vld [vmem:[%s164 + $0x16c] sm:$0xf]
      %v272 = vld [vmem:[%s164 + $0x170] sm:$0xf]
      %v273 = vld [vmem:[%s164 + $0x174] sm:$0xf]
      %v274 = vld [vmem:[%s164 + $0x178] sm:$0xf]
      %v275 = vld [vmem:[%s164 + $0x17c] sm:$0xf]
      %v276 = vld [vmem:[%s164 + $0x180] sm:$0xf]
      %v277 = vld [vmem:[%s164 + $0x184] sm:$0xf]
      %v278 = vld [vmem:[%s164 + $0x188] sm:$0xf]
      %v279 = vld [vmem:[%s164 + $0x18c] sm:$0xf]
      %v280 = vld [vmem:[%s164 + $0x190] sm:$0xf]
      %v281 = vld [vmem:[%s164 + $0x194] sm:$0xf]
      %v282 = vld [vmem:[%s164 + $0x198] sm:$0xf]
      %v283 = vld [vmem:[%s164 + $0x19c] sm:$0xf]
      %v284 = vld [vmem:[%s164 + $0x1a0] sm:$0xf]
      %v285 = vld [vmem:[%s164 + $0x1a4] sm:$0xf]
      %v286 = vld [vmem:[%s164 + $0x1a8] sm:$0xf]
      %v287 = vld [vmem:[%s164 + $0x1ac] sm:$0xf]
      %v288 = vld [vmem:[%s164 + $0x1b0] sm:$0xf]
      %v289 = vld [vmem:[%s164 + $0x1b4] sm:$0xf]
      %v290 = vld [vmem:[%s164 + $0x1b8] sm:$0xf]
      %v291 = vld [vmem:[%s164 + $0x1bc] sm:$0xf]
      %v292 = vld [vmem:[%s164 + $0x1c0] sm:$0xf]
      %v293 = vld [vmem:[%s164 + $0x1c4] sm:$0xf]
      %v294 = vld [vmem:[%s164 + $0x1c8] sm:$0xf]
      %v295 = vld [vmem:[%s164 + $0x1cc] sm:$0xf]
      %v296 = vld [vmem:[%s164 + $0x1d0] sm:$0xf]
      %v297 = vld [vmem:[%s164 + $0x1d4] sm:$0xf]
      %v298 = vld [vmem:[%s164 + $0x1d8] sm:$0xf]
      %v299 = vld [vmem:[%s164 + $0x1dc] sm:$0xf]
      %v300 = vld [vmem:[%s164 + $0x1e0] sm:$0xf]
      %v301 = vld [vmem:[%s164 + $0x1e4] sm:$0xf]
      %v302 = vld [vmem:[%s164 + $0x1e8] sm:$0xf]
      %v303 = vld [vmem:[%s164 + $0x1ec] sm:$0xf]
      %v304 = vld [vmem:[%s164 + $0x1f0] sm:$0xf]
      %v305 = vld [vmem:[%s164 + $0x1f4] sm:$0xf]
      %v306 = vld [vmem:[%s164 + $0x1f8] sm:$0xf]
      %v307 = vld [vmem:[%s164 + $0x1fc] sm:$0xf]
      %v308 = vld [vmem:[%s1] sm:$0xff]
      %v309 = vld [vmem:[%s1 + $0x8] sm:$0xff]
      %v310 = vld [vmem:[%s1 + $0x10] sm:$0xff]
      %v311 = vld [vmem:[%s1 + $0x18] sm:$0xff]
      %v312 = vld [vmem:[%s1 + $0x20] sm:$0xff]
      %v313 = vld [vmem:[%s1 + $0x28] sm:$0xff]
      %v314 = vld [vmem:[%s1 + $0x30] sm:$0xff]
      %v315 = vld [vmem:[%s1 + $0x38] sm:$0xff]
      %v444 = vunpack.c.l.b16 %v180
      %v445 = vunpack.c.l.b16 %v181
      %v446 = vunpack.c.l.b16 %v182
      %v447 = vunpack.c.l.b16 %v183
      %v448 = vunpack.c.l.b16 %v184
      %v449 = vunpack.c.l.b16 %v185
      %v450 = vunpack.c.l.b16 %v186
      %v451 = vunpack.c.l.b16 %v187
      %v452 = vunpack.c.l.b16 %v188
      %v453 = vunpack.c.l.b16 %v189
      %v454 = vunpack.c.l.b16 %v190
      %v455 = vunpack.c.l.b16 %v191
      %v456 = vunpack.c.l.b16 %v192
      %v457 = vunpack.c.l.b16 %v193
      %v458 = vunpack.c.l.b16 %v194
      %v459 = vunpack.c.l.b16 %v195
      %v460 = vunpack.c.l.b16 %v196
      %v461 = vunpack.c.l.b16 %v197
      %v462 = vunpack.c.l.b16 %v198
      %v463 = vunpack.c.l.b16 %v199
      %v464 = vunpack.c.l.b16 %v200
      %v465 = vunpack.c.l.b16 %v201
      %v466 = vunpack.c.l.b16 %v202
      %v467 = vunpack.c.l.b16 %v203
      %v468 = vunpack.c.l.b16 %v204
      %v469 = vunpack.c.l.b16 %v205
      %v470 = vunpack.c.l.b16 %v206
      %v471 = vunpack.c.l.b16 %v207
      %v472 = vunpack.c.l.b16 %v208
      %v473 = vunpack.c.l.b16 %v209
      %v474 = vunpack.c.l.b16 %v210
      %v475 = vunpack.c.l.b16 %v211
      %v476 = vunpack.c.l.b16 %v212
      %v477 = vunpack.c.l.b16 %v213
      %v478 = vunpack.c.l.b16 %v214
      %v479 = vunpack.c.l.b16 %v215
      %v480 = vunpack.c.l.b16 %v216
      %v481 = vunpack.c.l.b16 %v217
      %v482 = vunpack.c.l.b16 %v218
      %v483 = vunpack.c.l.b16 %v219
      %v484 = vunpack.c.l.b16 %v220
      %v485 = vunpack.c.l.b16 %v221
      %v486 = vunpack.c.l.b16 %v222
      %v487 = vunpack.c.l.b16 %v223
      %v488 = vunpack.c.l.b16 %v224
      %v489 = vunpack.c.l.b16 %v225
      %v490 = vunpack.c.l.b16 %v226
      %v491 = vunpack.c.l.b16 %v227
      %v492 = vunpack.c.l.b16 %v228
      %v493 = vunpack.c.l.b16 %v229
      %v494 = vunpack.c.l.b16 %v230
      %v495 = vunpack.c.l.b16 %v231
      %v496 = vunpack.c.l.b16 %v232
      %v497 = vunpack.c.l.b16 %v233
      %v498 = vunpack.c.l.b16 %v234
      %v499 = vunpack.c.l.b16 %v235
      %v500 = vunpack.c.l.b16 %v236
      %v501 = vunpack.c.l.b16 %v237
      %v502 = vunpack.c.l.b16 %v238
      %v503 = vunpack.c.l.b16 %v239
      %v504 = vunpack.c.l.b16 %v240
      %v505 = vunpack.c.l.b16 %v241
      %v506 = vunpack.c.l.b16 %v242
      %v507 = vunpack.c.l.b16 %v243
      %v508 = vunpack.c.l.b16 %v244
      %v509 = vunpack.c.l.b16 %v245
      %v510 = vunpack.c.l.b16 %v246
      %v511 = vunpack.c.l.b16 %v247
      %v512 = vunpack.c.l.b16 %v248
      %v513 = vunpack.c.l.b16 %v249
      %v514 = vunpack.c.l.b16 %v250
      %v515 = vunpack.c.l.b16 %v251
      %v516 = vunpack.c.l.b16 %v252
      %v517 = vunpack.c.l.b16 %v253
      %v518 = vunpack.c.l.b16 %v254
      %v519 = vunpack.c.l.b16 %v255
      %v520 = vunpack.c.l.b16 %v256
      %v521 = vunpack.c.l.b16 %v257
      %v522 = vunpack.c.l.b16 %v258
      %v523 = vunpack.c.l.b16 %v259
      %v524 = vunpack.c.l.b16 %v260
      %v525 = vunpack.c.l.b16 %v261
      %v526 = vunpack.c.l.b16 %v262
      %v527 = vunpack.c.l.b16 %v263
      %v528 = vunpack.c.l.b16 %v264
      %v529 = vunpack.c.l.b16 %v265
      %v530 = vunpack.c.l.b16 %v266
      %v531 = vunpack.c.l.b16 %v267
      %v532 = vunpack.c.l.b16 %v268
      %v533 = vunpack.c.l.b16 %v269
      %v534 = vunpack.c.l.b16 %v270
      %v535 = vunpack.c.l.b16 %v271
      %v536 = vunpack.c.l.b16 %v272
      %v537 = vunpack.c.l.b16 %v273
      %v538 = vunpack.c.l.b16 %v274
      %v539 = vunpack.c.l.b16 %v275
      %v540 = vunpack.c.l.b16 %v276
      %v541 = vunpack.c.l.b16 %v277
      %v542 = vunpack.c.l.b16 %v278
      %v543 = vunpack.c.l.b16 %v279
      %v544 = vunpack.c.l.b16 %v280
      %v545 = vunpack.c.l.b16 %v281
      %v546 = vunpack.c.l.b16 %v282
      %v547 = vunpack.c.l.b16 %v283
      %v548 = vunpack.c.l.b16 %v284
      %v549 = vunpack.c.l.b16 %v285
      %v550 = vunpack.c.l.b16 %v286
      %v551 = vunpack.c.l.b16 %v287
      %v552 = vunpack.c.l.b16 %v288
      %v553 = vunpack.c.l.b16 %v289
      %v554 = vunpack.c.l.b16 %v290
      %v555 = vunpack.c.l.b16 %v291
      %v556 = vunpack.c.l.b16 %v292
      %v557 = vunpack.c.l.b16 %v293
      %v558 = vunpack.c.l.b16 %v294
      %v559 = vunpack.c.l.b16 %v295
      %v560 = vunpack.c.l.b16 %v296
      %v561 = vunpack.c.l.b16 %v297
      %v562 = vunpack.c.l.b16 %v298
      %v563 = vunpack.c.l.b16 %v299
      %v564 = vunpack.c.l.b16 %v300
      %v565 = vunpack.c.l.b16 %v301
      %v566 = vunpack.c.l.b16 %v302
      %v567 = vunpack.c.l.b16 %v303
      %v568 = vunpack.c.l.b16 %v304
      %v569 = vunpack.c.l.b16 %v305
      %v570 = vunpack.c.l.b16 %v306
      %v571 = vunpack.c.l.b16 %v307
      %v572 = vpack.c.b16 %v445, %v444
      %v573 = vpack.c.b16 %v447, %v446
      %v574 = vpack.c.b16 %v449, %v448
      %v575 = vpack.c.b16 %v451, %v450
      %v576 = vpack.c.b16 %v453, %v452
      %v577 = vpack.c.b16 %v455, %v454
      %v578 = vpack.c.b16 %v457, %v456
      %v579 = vpack.c.b16 %v459, %v458
      %v580 = vpack.c.b16 %v461, %v460
      %v581 = vpack.c.b16 %v463, %v462
      %v582 = vpack.c.b16 %v465, %v464
      %v583 = vpack.c.b16 %v467, %v466
      %v584 = vpack.c.b16 %v469, %v468
      %v585 = vpack.c.b16 %v471, %v470
      %v586 = vpack.c.b16 %v473, %v472
      %v587 = vpack.c.b16 %v475, %v474
      %v588 = vpack.c.b16 %v477, %v476
      %v589 = vpack.c.b16 %v479, %v478
      %v590 = vpack.c.b16 %v481, %v480
      %v591 = vpack.c.b16 %v483, %v482
      %v592 = vpack.c.b16 %v485, %v484
      %v593 = vpack.c.b16 %v487, %v486
      %v594 = vpack.c.b16 %v489, %v488
      %v595 = vpack.c.b16 %v491, %v490
      %v596 = vpack.c.b16 %v493, %v492
      %v597 = vpack.c.b16 %v495, %v494
      %v598 = vpack.c.b16 %v497, %v496
      %v599 = vpack.c.b16 %v499, %v498
      %v600 = vpack.c.b16 %v501, %v500
      %v601 = vpack.c.b16 %v503, %v502
      %v602 = vpack.c.b16 %v505, %v504
      %v603 = vpack.c.b16 %v507, %v506
      %v604 = vpack.c.b16 %v509, %v508
      %v605 = vpack.c.b16 %v511, %v510
      %v606 = vpack.c.b16 %v513, %v512
      %v607 = vpack.c.b16 %v515, %v514
      %v608 = vpack.c.b16 %v517, %v516
      %v609 = vpack.c.b16 %v519, %v518
      %v610 = vpack.c.b16 %v521, %v520
      %v611 = vpack.c.b16 %v523, %v522
      %v612 = vpack.c.b16 %v525, %v524
      %v613 = vpack.c.b16 %v527, %v526
      %v614 = vpack.c.b16 %v529, %v528
      %v615 = vpack.c.b16 %v531, %v530
      %v616 = vpack.c.b16 %v533, %v532
      %v617 = vpack.c.b16 %v535, %v534
      %v618 = vpack.c.b16 %v537, %v536
      %v619 = vpack.c.b16 %v539, %v538
      %v620 = vpack.c.b16 %v541, %v540
      %v621 = vpack.c.b16 %v543, %v542
      %v622 = vpack.c.b16 %v545, %v544
      %v623 = vpack.c.b16 %v547, %v546
      %v624 = vpack.c.b16 %v549, %v548
      %v625 = vpack.c.b16 %v551, %v550
      %v626 = vpack.c.b16 %v553, %v552
      %v627 = vpack.c.b16 %v555, %v554
      %v628 = vpack.c.b16 %v557, %v556
      %v629 = vpack.c.b16 %v559, %v558
      %v630 = vpack.c.b16 %v561, %v560
      %v631 = vpack.c.b16 %v563, %v562
      %v632 = vpack.c.b16 %v565, %v564
      %v633 = vpack.c.b16 %v567, %v566
      %v634 = vpack.c.b16 %v569, %v568
      %v635 = vpack.c.b16 %v571, %v570
      %v644 = vunpack.c.l.b16 %v308
      %v645 = vunpack.c.h.b16 %v308
      %v646 = vunpack.c.l.b16 %v309
      %v647 = vunpack.c.h.b16 %v309
      %v648 = vunpack.c.l.b16 %v310
      %v649 = vunpack.c.h.b16 %v310
      %v650 = vunpack.c.l.b16 %v311
      %v651 = vunpack.c.h.b16 %v311
      %v652 = vunpack.c.l.b16 %v312
      %v653 = vunpack.c.h.b16 %v312
      %v654 = vunpack.c.l.b16 %v313
      %v655 = vunpack.c.h.b16 %v313
      %v656 = vunpack.c.l.b16 %v314
      %v657 = vunpack.c.h.b16 %v314
      %v658 = vunpack.c.l.b16 %v315
      %v659 = vunpack.c.h.b16 %v315
      %v660 = vpack.c.b16 %v648, %v644
      %v661 = vpack.c.b16 %v649, %v645
      %v662 = vpack.c.b16 %v650, %v646
      %v663 = vpack.c.b16 %v651, %v647
      %v664 = vpack.c.b16 %v656, %v652
      %v665 = vpack.c.b16 %v657, %v653
      %v666 = vpack.c.b16 %v658, %v654
      %v667 = vpack.c.b16 %v659, %v655
      %vm676 = vcmask 261120
      %v678 = vsel %vm676, %v572, 0
      %v681 = vsel %vm676, %v573, 0
      %v684 = vsel %vm676, %v574, 0
      %v687 = vsel %vm676, %v575, 0
      %v690 = vsel %vm676, %v576, 0
      %v693 = vsel %vm676, %v577, 0
      %v696 = vsel %vm676, %v578, 0
      %v699 = vsel %vm676, %v579, 0
      %v702 = vsel %vm676, %v580, 0
      %v705 = vsel %vm676, %v581, 0
      %v708 = vsel %vm676, %v582, 0
      %v711 = vsel %vm676, %v583, 0
      %v714 = vsel %vm676, %v584, 0
      %v717 = vsel %vm676, %v585, 0
      %v720 = vsel %vm676, %v586, 0
      %v723 = vsel %vm676, %v587, 0
      %v726 = vsel %vm676, %v588, 0
      %v729 = vsel %vm676, %v589, 0
      %v732 = vsel %vm676, %v590, 0
      %v735 = vsel %vm676, %v591, 0
      %v738 = vsel %vm676, %v592, 0
      %v741 = vsel %vm676, %v593, 0
      %v744 = vsel %vm676, %v594, 0
      %v747 = vsel %vm676, %v595, 0
      %v750 = vsel %vm676, %v596, 0
      %v753 = vsel %vm676, %v597, 0
      %v756 = vsel %vm676, %v598, 0
      %v759 = vsel %vm676, %v599, 0
      %v762 = vsel %vm676, %v600, 0
      %v765 = vsel %vm676, %v601, 0
      %v768 = vsel %vm676, %v602, 0
      %v771 = vsel %vm676, %v603, 0
      %v774 = vsel %vm676, %v604, 0
      %v777 = vsel %vm676, %v605, 0
      %v780 = vsel %vm676, %v606, 0
      %v783 = vsel %vm676, %v607, 0
      %v786 = vsel %vm676, %v608, 0
      %v789 = vsel %vm676, %v609, 0
      %v792 = vsel %vm676, %v610, 0
      %v795 = vsel %vm676, %v611, 0
      %v798 = vsel %vm676, %v612, 0
      %v801 = vsel %vm676, %v613, 0
      %v804 = vsel %vm676, %v614, 0
      %v807 = vsel %vm676, %v615, 0
      %v810 = vsel %vm676, %v616, 0
      %v813 = vsel %vm676, %v617, 0
      %v816 = vsel %vm676, %v618, 0
      %v819 = vsel %vm676, %v619, 0
      %v822 = vsel %vm676, %v620, 0
      %v825 = vsel %vm676, %v621, 0
      %v828 = vsel %vm676, %v622, 0
      %v831 = vsel %vm676, %v623, 0
      %v834 = vsel %vm676, %v624, 0
      %v837 = vsel %vm676, %v625, 0
      %v840 = vsel %vm676, %v626, 0
      %v843 = vsel %vm676, %v627, 0
      %v846 = vsel %vm676, %v628, 0
      %v849 = vsel %vm676, %v629, 0
      %v852 = vsel %vm676, %v630, 0
      %v855 = vsel %vm676, %v631, 0
      %v858 = vsel %vm676, %v632, 0
      %v861 = vsel %vm676, %v633, 0
      %v864 = vsel %vm676, %v634, 0
      %v867 = vsel %vm676, %v635, 0
      %869 = vmatprep.subr.bf16.mxu0 %v661
      %870 = vmatpush1.bf16.msra.mxu0 %v660
      %871 = vmatprep.subr.bf16.mxu0 %v665
      %872 = vmatpush1.bf16.msra.mxu0 %v664
      %873 = vmatprep.subr.bf16.mxu0 0
      %874 = vmatpush1.bf16.msra.mxu0 0
      %875 = vmatprep.subr.bf16.mxu0 0
      %876 = vmatpush1.bf16.msra.mxu0 0
      %877 = vmatprep.subr.bf16.mxu0 0
      %878 = vmatpush1.bf16.msra.mxu0 0
      %879 = vmatprep.subr.bf16.mxu0 0
      %880 = vmatpush1.bf16.msra.mxu0 0
      %881 = vmatprep.subr.bf16.mxu0 0
      %882 = vmatpush1.bf16.msra.mxu0 0
      %883 = vmatprep.subr.bf16.mxu0 0
      %884 = vmatpush1.bf16.msra.mxu0 0
      %885 = vmatprep.subr.bf16.mxu0 0
      %886 = vmatpush1.bf16.msra.mxu0 0
      %887 = vmatprep.subr.bf16.mxu0 0
      %888 = vmatpush1.bf16.msra.mxu0 0
      %889 = vmatprep.subr.bf16.mxu0 0
      %890 = vmatpush1.bf16.msra.mxu0 0
      %891 = vmatprep.subr.bf16.mxu0 0
      %892 = vmatpush1.bf16.msra.mxu0 0
      %893 = vmatprep.subr.bf16.mxu0 0
      %894 = vmatpush1.bf16.msra.mxu0 0
      %895 = vmatprep.subr.bf16.mxu0 0
      %896 = vmatpush1.bf16.msra.mxu0 0
      %897 = vmatprep.subr.bf16.mxu0 0
      %898 = vmatpush1.bf16.msra.mxu0 0
      %899 = vmatprep.subr.bf16.mxu0 0
      %900 = vmatpush1.bf16.msra.mxu0 0
      %901 = vmatprep.mubr.bf16.mxu0 0
      %902 = vmatmul.mubr.bf16.gmra.mrb[0].mxu0 %v678
      %v903 = vpop.f32.mrb[0].mxu0
      %v904 = vadd.f32 0.0, %v903
      %v905 = vpop.f32.mrb[0].mxu0
      %v906 = vadd.f32 0.0, %v905
      %v907 = vpop.f32.mrb[0].mxu0
      %v908 = vadd.f32 0.0, %v907
      %v909 = vpop.f32.mrb[0].mxu0
      %v910 = vadd.f32 0.0, %v909
      %911 = vmatprep.mubr.bf16.mxu0 0
      %912 = vmatmul.mubr.bf16.gmra.mrb[0].mxu0 %v681
      %v913 = vpop.f32.mrb[0].mxu0
      %v914 = vadd.f32 0.0, %v913
      %v915 = vpop.f32.mrb[0].mxu0
      %v916 = vadd.f32 0.0, %v915
      %v917 = vpop.f32.mrb[0].mxu0
      %v918 = vadd.f32 0.0, %v917
      %v919 = vpop.f32.mrb[0].mxu0
      %v920 = vadd.f32 0.0, %v919
      %921 = vmatprep.mubr.bf16.mxu0 0
      %922 = vmatmul.mubr.bf16.gmra.mrb[0].mxu0 %v684
      %v923 = vpop.f32.mrb[0].mxu0
      %v924 = vadd.f32 0.0, %v923
      %v925 = vpop.f32.mrb[0].mxu0
      %v926 = vadd.f32 0.0, %v925
      %v927 = vpop.f32.mrb[0].mxu0
      %v928 = vadd.f32 0.0, %v927
      %v929 = vpop.f32.mrb[0].mxu0
      %v930 = vadd.f32 0.0, %v929
      %931 = vmatprep.mubr.bf16.mxu0 0
      %932 = vmatmul.mubr.bf16.gmra.mrb[0].mxu0 %v687
      %v933 = vpop.f32.mrb[0].mxu0
      %v934 = vadd.f32 0.0, %v933
      %v935 = vpop.f32.mrb[0].mxu0
      %v936 = vadd.f32 0.0, %v935
      %v937 = vpop.f32.mrb[0].mxu0
      %v938 = vadd.f32 0.0, %v937
      %v939 = vpop.f32.mrb[0].mxu0
      %v940 = vadd.f32 0.0, %v939
      %941 = vmatprep.mubr.bf16.mxu0 0
      %942 = vmatmul.mubr.bf16.gmra.mrb[0].mxu0 %v690
      %v943 = vpop.f32.mrb[0].mxu0
      %v944 = vadd.f32 0.0, %v943
      %v945 = vpop.f32.mrb[0].mxu0
      %v946 = vadd.f32 0.0, %v945
      %v947 = vpop.f32.mrb[0].mxu0
      %v948 = vadd.f32 0.0, %v947
      %v949 = vpop.f32.mrb[0].mxu0
      %v950 = vadd.f32 0.0, %v949
      %951 = vmatprep.mubr.bf16.mxu0 0
      %952 = vmatmul.mubr.bf16.gmra.mrb[0].mxu0 %v693
      %v953 = vpop.f32.mrb[0].mxu0
      %v954 = vadd.f32 0.0, %v953
      %v955 = vpop.f32.mrb[0].mxu0
      %v956 = vadd.f32 0.0, %v955
      %v957 = vpop.f32.mrb[0].mxu0
      %v958 = vadd.f32 0.0, %v957
      %v959 = vpop.f32.mrb[0].mxu0
      %v960 = vadd.f32 0.0, %v959
      %961 = vmatprep.mubr.bf16.mxu0 0
      %962 = vmatmul.mubr.bf16.gmra.mrb[0].mxu0 %v696
      %v963 = vpop.f32.mrb[0].mxu0
      %v964 = vadd.f32 0.0, %v963
      %v965 = vpop.f32.mrb[0].mxu0
      %v966 = vadd.f32 0.0, %v965
      %v967 = vpop.f32.mrb[0].mxu0
      %v968 = vadd.f32 0.0, %v967
      %v969 = vpop.f32.mrb[0].mxu0
      %v970 = vadd.f32 0.0, %v969
      %971 = vmatprep.mubr.bf16.mxu0 0
      %972 = vmatmul.mubr.bf16.gmra.mrb[0].mxu0 %v699
      %v973 = vpop.f32.mrb[0].mxu0
      %v974 = vadd.f32 0.0, %v973
      %v975 = vpop.f32.mrb[0].mxu0
      %v976 = vadd.f32 0.0, %v975
      %v977 = vpop.f32.mrb[0].mxu0
      %v978 = vadd.f32 0.0, %v977
      %v979 = vpop.f32.mrb[0].mxu0
      %v980 = vadd.f32 0.0, %v979
      %981 = vmatprep.mubr.bf16.mxu0 0
      %982 = vmatmul.mubr.bf16.gmra.mrb[0].mxu0 %v702
      %v983 = vpop.f32.mrb[0].mxu0
      %v984 = vadd.f32 0.0, %v983
      %v985 = vpop.f32.mrb[0].mxu0
      %v986 = vadd.f32 0.0, %v985
      %v987 = vpop.f32.mrb[0].mxu0
      %v988 = vadd.f32 0.0, %v987
      %v989 = vpop.f32.mrb[0].mxu0
      %v990 = vadd.f32 0.0, %v989
      %991 = vmatprep.mubr.bf16.mxu0 0
      %992 = vmatmul.mubr.bf16.gmra.mrb[0].mxu0 %v705
      %v993 = vpop.f32.mrb[0].mxu0
      %v994 = vadd.f32 0.0, %v993
      %v995 = vpop.f32.mrb[0].mxu0
      %v996 = vadd.f32 0.0, %v995
      %v997 = vpop.f32.mrb[0].mxu0
      %v998 = vadd.f32 0.0, %v997
      %v999 = vpop.f32.mrb[0].mxu0
      %v1000 = vadd.f32 0.0, %v999
      %1001 = vmatprep.mubr.bf16.mxu0 0
      %1002 = vmatmul.mubr.bf16.gmra.mrb[0].mxu0 %v708
      %v1003 = vpop.f32.mrb[0].mxu0
      %v1004 = vadd.f32 0.0, %v1003
      %v1005 = vpop.f32.mrb[0].mxu0
      %v1006 = vadd.f32 0.0, %v1005
      %v1007 = vpop.f32.mrb[0].mxu0
      %v1008 = vadd.f32 0.0, %v1007
      %v1009 = vpop.f32.mrb[0].mxu0
      %v1010 = vadd.f32 0.0, %v1009
      %1011 = vmatprep.mubr.bf16.mxu0 0
      %1012 = vmatmul.mubr.bf16.gmra.mrb[0].mxu0 %v711
      %v1013 = vpop.f32.mrb[0].mxu0
      %v1014 = vadd.f32 0.0, %v1013
      %v1015 = vpop.f32.mrb[0].mxu0
      %v1016 = vadd.f32 0.0, %v1015
      %v1017 = vpop.f32.mrb[0].mxu0
      %v1018 = vadd.f32 0.0, %v1017
      %v1019 = vpop.f32.mrb[0].mxu0
      %v1020 = vadd.f32 0.0, %v1019
      %1021 = vmatprep.mubr.bf16.mxu0 0
      %1022 = vmatmul.mubr.bf16.gmra.mrb[0].mxu0 %v714
      %v1023 = vpop.f32.mrb[0].mxu0
      %v1024 = vadd.f32 0.0, %v1023
      %v1025 = vpop.f32.mrb[0].mxu0
      %v1026 = vadd.f32 0.0, %v1025
      %v1027 = vpop.f32.mrb[0].mxu0
      %v1028 = vadd.f32 0.0, %v1027
      %v1029 = vpop.f32.mrb[0].mxu0
      %v1030 = vadd.f32 0.0, %v1029
      %1031 = vmatprep.mubr.bf16.mxu0 0
      %1032 = vmatmul.mubr.bf16.gmra.mrb[0].mxu0 %v717
      %v1033 = vpop.f32.mrb[0].mxu0
      %v1034 = vadd.f32 0.0, %v1033
      %v1035 = vpop.f32.mrb[0].mxu0
      %v1036 = vadd.f32 0.0, %v1035
      %v1037 = vpop.f32.mrb[0].mxu0
      %v1038 = vadd.f32 0.0, %v1037
      %v1039 = vpop.f32.mrb[0].mxu0
      %v1040 = vadd.f32 0.0, %v1039
      %1041 = vmatprep.mubr.bf16.mxu0 0
      %1042 = vmatmul.mubr.bf16.gmra.mrb[0].mxu0 %v720
      %v1043 = vpop.f32.mrb[0].mxu0
      %v1044 = vadd.f32 0.0, %v1043
      %v1045 = vpop.f32.mrb[0].mxu0
      %v1046 = vadd.f32 0.0, %v1045
      %v1047 = vpop.f32.mrb[0].mxu0
      %v1048 = vadd.f32 0.0, %v1047
      %v1049 = vpop.f32.mrb[0].mxu0
      %v1050 = vadd.f32 0.0, %v1049
      %1051 = vmatprep.mubr.bf16.mxu0 0
      %1052 = vmatmul.mubr.bf16.gmra.mrb[0].mxu0 %v723
      %v1053 = vpop.f32.mrb[0].mxu0
      %v1054 = vadd.f32 0.0, %v1053
      %v1055 = vpop.f32.mrb[0].mxu0
      %v1056 = vadd.f32 0.0, %v1055
      %v1057 = vpop.f32.mrb[0].mxu0
      %v1058 = vadd.f32 0.0, %v1057
      %v1059 = vpop.f32.mrb[0].mxu0
      %v1060 = vadd.f32 0.0, %v1059
      %1061 = vmatprep.mubr.bf16.mxu0 0
      %1062 = vmatmul.mubr.bf16.gmra.mrb[0].mxu0 %v726
      %v1063 = vpop.f32.mrb[0].mxu0
      %v1064 = vadd.f32 0.0, %v1063
      %v1065 = vpop.f32.mrb[0].mxu0
      %v1066 = vadd.f32 0.0, %v1065
      %v1067 = vpop.f32.mrb[0].mxu0
      %v1068 = vadd.f32 0.0, %v1067
      %v1069 = vpop.f32.mrb[0].mxu0
      %v1070 = vadd.f32 0.0, %v1069
      %1071 = vmatprep.mubr.bf16.mxu0 0
      %1072 = vmatmul.mubr.bf16.gmra.mrb[0].mxu0 %v729
      %v1073 = vpop.f32.mrb[0].mxu0
      %v1074 = vadd.f32 0.0, %v1073
      %v1075 = vpop.f32.mrb[0].mxu0
      %v1076 = vadd.f32 0.0, %v1075
      %v1077 = vpop.f32.mrb[0].mxu0
      %v1078 = vadd.f32 0.0, %v1077
      %v1079 = vpop.f32.mrb[0].mxu0
      %v1080 = vadd.f32 0.0, %v1079
      %1081 = vmatprep.mubr.bf16.mxu0 0
      %1082 = vmatmul.mubr.bf16.gmra.mrb[0].mxu0 %v732
      %v1083 = vpop.f32.mrb[0].mxu0
      %v1084 = vadd.f32 0.0, %v1083
      %v1085 = vpop.f32.mrb[0].mxu0
      %v1086 = vadd.f32 0.0, %v1085
      %v1087 = vpop.f32.mrb[0].mxu0
      %v1088 = vadd.f32 0.0, %v1087
      %v1089 = vpop.f32.mrb[0].mxu0
      %v1090 = vadd.f32 0.0, %v1089
      %1091 = vmatprep.mubr.bf16.mxu0 0
      %1092 = vmatmul.mubr.bf16.gmra.mrb[0].mxu0 %v735
      %v1093 = vpop.f32.mrb[0].mxu0
      %v1094 = vadd.f32 0.0, %v1093
      %v1095 = vpop.f32.mrb[0].mxu0
      %v1096 = vadd.f32 0.0, %v1095
      %v1097 = vpop.f32.mrb[0].mxu0
      %v1098 = vadd.f32 0.0, %v1097
      %v1099 = vpop.f32.mrb[0].mxu0
      %v1100 = vadd.f32 0.0, %v1099
      %1101 = vmatprep.mubr.bf16.mxu0 0
      %1102 = vmatmul.mubr.bf16.gmra.mrb[0].mxu0 %v738
      %v1103 = vpop.f32.mrb[0].mxu0
      %v1104 = vadd.f32 0.0, %v1103
      %v1105 = vpop.f32.mrb[0].mxu0
      %v1106 = vadd.f32 0.0, %v1105
      %v1107 = vpop.f32.mrb[0].mxu0
      %v1108 = vadd.f32 0.0, %v1107
      %v1109 = vpop.f32.mrb[0].mxu0
      %v1110 = vadd.f32 0.0, %v1109
      %1111 = vmatprep.mubr.bf16.mxu0 0
      %1112 = vmatmul.mubr.bf16.gmra.mrb[0].mxu0 %v741
      %v1113 = vpop.f32.mrb[0].mxu0
      %v1114 = vadd.f32 0.0, %v1113
      %v1115 = vpop.f32.mrb[0].mxu0
      %v1116 = vadd.f32 0.0, %v1115
      %v1117 = vpop.f32.mrb[0].mxu0
      %v1118 = vadd.f32 0.0, %v1117
      %v1119 = vpop.f32.mrb[0].mxu0
      %v1120 = vadd.f32 0.0, %v1119
      %1121 = vmatprep.mubr.bf16.mxu0 0
      %1122 = vmatmul.mubr.bf16.gmra.mrb[0].mxu0 %v744
      %v1123 = vpop.f32.mrb[0].mxu0
      %v1124 = vadd.f32 0.0, %v1123
      %v1125 = vpop.f32.mrb[0].mxu0
      %v1126 = vadd.f32 0.0, %v1125
      %v1127 = vpop.f32.mrb[0].mxu0
      %v1128 = vadd.f32 0.0, %v1127
      %v1129 = vpop.f32.mrb[0].mxu0
      %v1130 = vadd.f32 0.0, %v1129
      %1131 = vmatprep.mubr.bf16.mxu0 0
      %1132 = vmatmul.mubr.bf16.gmra.mrb[0].mxu0 %v747
      %v1133 = vpop.f32.mrb[0].mxu0
      %v1134 = vadd.f32 0.0, %v1133
      %v1135 = vpop.f32.mrb[0].mxu0
      %v1136 = vadd.f32 0.0, %v1135
      %v1137 = vpop.f32.mrb[0].mxu0
      %v1138 = vadd.f32 0.0, %v1137
      %v1139 = vpop.f32.mrb[0].mxu0
      %v1140 = vadd.f32 0.0, %v1139
      %1141 = vmatprep.mubr.bf16.mxu0 0
      %1142 = vmatmul.mubr.bf16.gmra.mrb[0].mxu0 %v750
      %v1143 = vpop.f32.mrb[0].mxu0
      %v1144 = vadd.f32 0.0, %v1143
      %v1145 = vpop.f32.mrb[0].mxu0
      %v1146 = vadd.f32 0.0, %v1145
      %v1147 = vpop.f32.mrb[0].mxu0
      %v1148 = vadd.f32 0.0, %v1147
      %v1149 = vpop.f32.mrb[0].mxu0
      %v1150 = vadd.f32 0.0, %v1149
      %1151 = vmatprep.mubr.bf16.mxu0 0
      %1152 = vmatmul.mubr.bf16.gmra.mrb[0].mxu0 %v753
      %v1153 = vpop.f32.mrb[0].mxu0
      %v1154 = vadd.f32 0.0, %v1153
      %v1155 = vpop.f32.mrb[0].mxu0
      %v1156 = vadd.f32 0.0, %v1155
      %v1157 = vpop.f32.mrb[0].mxu0
      %v1158 = vadd.f32 0.0, %v1157
      %v1159 = vpop.f32.mrb[0].mxu0
      %v1160 = vadd.f32 0.0, %v1159
      %1161 = vmatprep.mubr.bf16.mxu0 0
      %1162 = vmatmul.mubr.bf16.gmra.mrb[0].mxu0 %v756
      %v1163 = vpop.f32.mrb[0].mxu0
      %v1164 = vadd.f32 0.0, %v1163
      %v1165 = vpop.f32.mrb[0].mxu0
      %v1166 = vadd.f32 0.0, %v1165
      %v1167 = vpop.f32.mrb[0].mxu0
      %v1168 = vadd.f32 0.0, %v1167
      %v1169 = vpop.f32.mrb[0].mxu0
      %v1170 = vadd.f32 0.0, %v1169
      %1171 = vmatprep.mubr.bf16.mxu0 0
      %1172 = vmatmul.mubr.bf16.gmra.mrb[0].mxu0 %v759
      %v1173 = vpop.f32.mrb[0].mxu0
      %v1174 = vadd.f32 0.0, %v1173
      %v1175 = vpop.f32.mrb[0].mxu0
      %v1176 = vadd.f32 0.0, %v1175
      %v1177 = vpop.f32.mrb[0].mxu0
      %v1178 = vadd.f32 0.0, %v1177
      %v1179 = vpop.f32.mrb[0].mxu0
      %v1180 = vadd.f32 0.0, %v1179
      %1181 = vmatprep.mubr.bf16.mxu0 0
      %1182 = vmatmul.mubr.bf16.gmra.mrb[0].mxu0 %v762
      %v1183 = vpop.f32.mrb[0].mxu0
      %v1184 = vadd.f32 0.0, %v1183
      %v1185 = vpop.f32.mrb[0].mxu0
      %v1186 = vadd.f32 0.0, %v1185
      %v1187 = vpop.f32.mrb[0].mxu0
      %v1188 = vadd.f32 0.0, %v1187
      %v1189 = vpop.f32.mrb[0].mxu0
      %v1190 = vadd.f32 0.0, %v1189
      %1191 = vmatprep.mubr.bf16.mxu0 0
      %1192 = vmatmul.mubr.bf16.gmra.mrb[0].mxu0 %v765
      %v1193 = vpop.f32.mrb[0].mxu0
      %v1194 = vadd.f32 0.0, %v1193
      %v1195 = vpop.f32.mrb[0].mxu0
      %v1196 = vadd.f32 0.0, %v1195
      %v1197 = vpop.f32.mrb[0].mxu0
      %v1198 = vadd.f32 0.0, %v1197
      %v1199 = vpop.f32.mrb[0].mxu0
      %v1200 = vadd.f32 0.0, %v1199
      %1201 = vmatprep.mubr.bf16.mxu0 0
      %1202 = vmatmul.mubr.bf16.gmra.mrb[0].mxu0 %v768
      %v1203 = vpop.f32.mrb[0].mxu0
      %v1204 = vadd.f32 0.0, %v1203
      %v1205 = vpop.f32.mrb[0].mxu0
      %v1206 = vadd.f32 0.0, %v1205
      %v1207 = vpop.f32.mrb[0].mxu0
      %v1208 = vadd.f32 0.0, %v1207
      %v1209 = vpop.f32.mrb[0].mxu0
      %v1210 = vadd.f32 0.0, %v1209
      %1211 = vmatprep.mubr.bf16.mxu0 0
      %1212 = vmatmul.mubr.bf16.gmra.mrb[0].mxu0 %v771
      %v1213 = vpop.f32.mrb[0].mxu0
      %v1214 = vadd.f32 0.0, %v1213
      %v1215 = vpop.f32.mrb[0].mxu0
      %v1216 = vadd.f32 0.0, %v1215
      %v1217 = vpop.f32.mrb[0].mxu0
      %v1218 = vadd.f32 0.0, %v1217
      %v1219 = vpop.f32.mrb[0].mxu0
      %v1220 = vadd.f32 0.0, %v1219
      %1221 = vmatprep.mubr.bf16.mxu0 0
      %1222 = vmatmul.mubr.bf16.gmra.mrb[0].mxu0 %v774
      %v1223 = vpop.f32.mrb[0].mxu0
      %v1224 = vadd.f32 0.0, %v1223
      %v1225 = vpop.f32.mrb[0].mxu0
      %v1226 = vadd.f32 0.0, %v1225
      %v1227 = vpop.f32.mrb[0].mxu0
      %v1228 = vadd.f32 0.0, %v1227
      %v1229 = vpop.f32.mrb[0].mxu0
      %v1230 = vadd.f32 0.0, %v1229
      %1231 = vmatprep.mubr.bf16.mxu0 0
      %1232 = vmatmul.mubr.bf16.gmra.mrb[0].mxu0 %v777
      %v1233 = vpop.f32.mrb[0].mxu0
      %v1234 = vadd.f32 0.0, %v1233
      %v1235 = vpop.f32.mrb[0].mxu0
      %v1236 = vadd.f32 0.0, %v1235
      %v1237 = vpop.f32.mrb[0].mxu0
      %v1238 = vadd.f32 0.0, %v1237
      %v1239 = vpop.f32.mrb[0].mxu0
      %v1240 = vadd.f32 0.0, %v1239
      %1241 = vmatprep.mubr.bf16.mxu0 0
      %1242 = vmatmul.mubr.bf16.gmra.mrb[0].mxu0 %v780
      %v1243 = vpop.f32.mrb[0].mxu0
      %v1244 = vadd.f32 0.0, %v1243
      %v1245 = vpop.f32.mrb[0].mxu0
      %v1246 = vadd.f32 0.0, %v1245
      %v1247 = vpop.f32.mrb[0].mxu0
      %v1248 = vadd.f32 0.0, %v1247
      %v1249 = vpop.f32.mrb[0].mxu0
      %v1250 = vadd.f32 0.0, %v1249
      %1251 = vmatprep.mubr.bf16.mxu0 0
      %1252 = vmatmul.mubr.bf16.gmra.mrb[0].mxu0 %v783
      %v1253 = vpop.f32.mrb[0].mxu0
      %v1254 = vadd.f32 0.0, %v1253
      %v1255 = vpop.f32.mrb[0].mxu0
      %v1256 = vadd.f32 0.0, %v1255
      %v1257 = vpop.f32.mrb[0].mxu0
      %v1258 = vadd.f32 0.0, %v1257
      %v1259 = vpop.f32.mrb[0].mxu0
      %v1260 = vadd.f32 0.0, %v1259
      %1261 = vmatprep.mubr.bf16.mxu0 0
      %1262 = vmatmul.mubr.bf16.gmra.mrb[0].mxu0 %v786
      %v1263 = vpop.f32.mrb[0].mxu0
      %v1264 = vadd.f32 0.0, %v1263
      %v1265 = vpop.f32.mrb[0].mxu0
      %v1266 = vadd.f32 0.0, %v1265
      %v1267 = vpop.f32.mrb[0].mxu0
      %v1268 = vadd.f32 0.0, %v1267
      %v1269 = vpop.f32.mrb[0].mxu0
      %v1270 = vadd.f32 0.0, %v1269
      %1271 = vmatprep.mubr.bf16.mxu0 0
      %1272 = vmatmul.mubr.bf16.gmra.mrb[0].mxu0 %v789
      %v1273 = vpop.f32.mrb[0].mxu0
      %v1274 = vadd.f32 0.0, %v1273
      %v1275 = vpop.f32.mrb[0].mxu0
      %v1276 = vadd.f32 0.0, %v1275
      %v1277 = vpop.f32.mrb[0].mxu0
      %v1278 = vadd.f32 0.0, %v1277
      %v1279 = vpop.f32.mrb[0].mxu0
      %v1280 = vadd.f32 0.0, %v1279
      %1281 = vmatprep.mubr.bf16.mxu0 0
      %1282 = vmatmul.mubr.bf16.gmra.mrb[0].mxu0 %v792
      %v1283 = vpop.f32.mrb[0].mxu0
      %v1284 = vadd.f32 0.0, %v1283
      %v1285 = vpop.f32.mrb[0].mxu0
      %v1286 = vadd.f32 0.0, %v1285
      %v1287 = vpop.f32.mrb[0].mxu0
      %v1288 = vadd.f32 0.0, %v1287
      %v1289 = vpop.f32.mrb[0].mxu0
      %v1290 = vadd.f32 0.0, %v1289
      %1291 = vmatprep.mubr.bf16.mxu0 0
      %1292 = vmatmul.mubr.bf16.gmra.mrb[0].mxu0 %v795
      %v1293 = vpop.f32.mrb[0].mxu0
      %v1294 = vadd.f32 0.0, %v1293
      %v1295 = vpop.f32.mrb[0].mxu0
      %v1296 = vadd.f32 0.0, %v1295
      %v1297 = vpop.f32.mrb[0].mxu0
      %v1298 = vadd.f32 0.0, %v1297
      %v1299 = vpop.f32.mrb[0].mxu0
      %v1300 = vadd.f32 0.0, %v1299
      %1301 = vmatprep.mubr.bf16.mxu0 0
      %1302 = vmatmul.mubr.bf16.gmra.mrb[0].mxu0 %v798
      %v1303 = vpop.f32.mrb[0].mxu0
      %v1304 = vadd.f32 0.0, %v1303
      %v1305 = vpop.f32.mrb[0].mxu0
      %v1306 = vadd.f32 0.0, %v1305
      %v1307 = vpop.f32.mrb[0].mxu0
      %v1308 = vadd.f32 0.0, %v1307
      %v1309 = vpop.f32.mrb[0].mxu0
      %v1310 = vadd.f32 0.0, %v1309
      %1311 = vmatprep.mubr.bf16.mxu0 0
      %1312 = vmatmul.mubr.bf16.gmra.mrb[0].mxu0 %v801
      %v1313 = vpop.f32.mrb[0].mxu0
      %v1314 = vadd.f32 0.0, %v1313
      %v1315 = vpop.f32.mrb[0].mxu0
      %v1316 = vadd.f32 0.0, %v1315
      %v1317 = vpop.f32.mrb[0].mxu0
      %v1318 = vadd.f32 0.0, %v1317
      %v1319 = vpop.f32.mrb[0].mxu0
      %v1320 = vadd.f32 0.0, %v1319
      %1321 = vmatprep.mubr.bf16.mxu0 0
      %1322 = vmatmul.mubr.bf16.gmra.mrb[0].mxu0 %v804
      %v1323 = vpop.f32.mrb[0].mxu0
      %v1324 = vadd.f32 0.0, %v1323
      %v1325 = vpop.f32.mrb[0].mxu0
      %v1326 = vadd.f32 0.0, %v1325
      %v1327 = vpop.f32.mrb[0].mxu0
      %v1328 = vadd.f32 0.0, %v1327
      %v1329 = vpop.f32.mrb[0].mxu0
      %v1330 = vadd.f32 0.0, %v1329
      %1331 = vmatprep.mubr.bf16.mxu0 0
      %1332 = vmatmul.mubr.bf16.gmra.mrb[0].mxu0 %v807
      %v1333 = vpop.f32.mrb[0].mxu0
      %v1334 = vadd.f32 0.0, %v1333
      %v1335 = vpop.f32.mrb[0].mxu0
      %v1336 = vadd.f32 0.0, %v1335
      %v1337 = vpop.f32.mrb[0].mxu0
      %v1338 = vadd.f32 0.0, %v1337
      %v1339 = vpop.f32.mrb[0].mxu0
      %v1340 = vadd.f32 0.0, %v1339
      %1341 = vmatprep.mubr.bf16.mxu0 0
      %1342 = vmatmul.mubr.bf16.gmra.mrb[0].mxu0 %v810
      %v1343 = vpop.f32.mrb[0].mxu0
      %v1344 = vadd.f32 0.0, %v1343
      %v1345 = vpop.f32.mrb[0].mxu0
      %v1346 = vadd.f32 0.0, %v1345
      %v1347 = vpop.f32.mrb[0].mxu0
      %v1348 = vadd.f32 0.0, %v1347
      %v1349 = vpop.f32.mrb[0].mxu0
      %v1350 = vadd.f32 0.0, %v1349
      %1351 = vmatprep.mubr.bf16.mxu0 0
      %1352 = vmatmul.mubr.bf16.gmra.mrb[0].mxu0 %v813
      %v1353 = vpop.f32.mrb[0].mxu0
      %v1354 = vadd.f32 0.0, %v1353
      %v1355 = vpop.f32.mrb[0].mxu0
      %v1356 = vadd.f32 0.0, %v1355
      %v1357 = vpop.f32.mrb[0].mxu0
      %v1358 = vadd.f32 0.0, %v1357
      %v1359 = vpop.f32.mrb[0].mxu0
      %v1360 = vadd.f32 0.0, %v1359
      %1361 = vmatprep.mubr.bf16.mxu0 0
      %1362 = vmatmul.mubr.bf16.gmra.mrb[0].mxu0 %v816
      %v1363 = vpop.f32.mrb[0].mxu0
      %v1364 = vadd.f32 0.0, %v1363
      %v1365 = vpop.f32.mrb[0].mxu0
      %v1366 = vadd.f32 0.0, %v1365
      %v1367 = vpop.f32.mrb[0].mxu0
      %v1368 = vadd.f32 0.0, %v1367
      %v1369 = vpop.f32.mrb[0].mxu0
      %v1370 = vadd.f32 0.0, %v1369
      %1371 = vmatprep.mubr.bf16.mxu0 0
      %1372 = vmatmul.mubr.bf16.gmra.mrb[0].mxu0 %v819
      %v1373 = vpop.f32.mrb[0].mxu0
      %v1374 = vadd.f32 0.0, %v1373
      %v1375 = vpop.f32.mrb[0].mxu0
      %v1376 = vadd.f32 0.0, %v1375
      %v1377 = vpop.f32.mrb[0].mxu0
      %v1378 = vadd.f32 0.0, %v1377
      %v1379 = vpop.f32.mrb[0].mxu0
      %v1380 = vadd.f32 0.0, %v1379
      %1381 = vmatprep.mubr.bf16.mxu0 0
      %1382 = vmatmul.mubr.bf16.gmra.mrb[0].mxu0 %v822
      %v1383 = vpop.f32.mrb[0].mxu0
      %v1384 = vadd.f32 0.0, %v1383
      %v1385 = vpop.f32.mrb[0].mxu0
      %v1386 = vadd.f32 0.0, %v1385
      %v1387 = vpop.f32.mrb[0].mxu0
      %v1388 = vadd.f32 0.0, %v1387
      %v1389 = vpop.f32.mrb[0].mxu0
      %v1390 = vadd.f32 0.0, %v1389
      %1391 = vmatprep.mubr.bf16.mxu0 0
      %1392 = vmatmul.mubr.bf16.gmra.mrb[0].mxu0 %v825
      %v1393 = vpop.f32.mrb[0].mxu0
      %v1394 = vadd.f32 0.0, %v1393
      %v1395 = vpop.f32.mrb[0].mxu0
      %v1396 = vadd.f32 0.0, %v1395
      %v1397 = vpop.f32.mrb[0].mxu0
      %v1398 = vadd.f32 0.0, %v1397
      %v1399 = vpop.f32.mrb[0].mxu0
      %v1400 = vadd.f32 0.0, %v1399
      %1401 = vmatprep.mubr.bf16.mxu0 0
      %1402 = vmatmul.mubr.bf16.gmra.mrb[0].mxu0 %v828
      %v1403 = vpop.f32.mrb[0].mxu0
      %v1404 = vadd.f32 0.0, %v1403
      %v1405 = vpop.f32.mrb[0].mxu0
      %v1406 = vadd.f32 0.0, %v1405
      %v1407 = vpop.f32.mrb[0].mxu0
      %v1408 = vadd.f32 0.0, %v1407
      %v1409 = vpop.f32.mrb[0].mxu0
      %v1410 = vadd.f32 0.0, %v1409
      %1411 = vmatprep.mubr.bf16.mxu0 0
      %1412 = vmatmul.mubr.bf16.gmra.mrb[0].mxu0 %v831
      %v1413 = vpop.f32.mrb[0].mxu0
      %v1414 = vadd.f32 0.0, %v1413
      %v1415 = vpop.f32.mrb[0].mxu0
      %v1416 = vadd.f32 0.0, %v1415
      %v1417 = vpop.f32.mrb[0].mxu0
      %v1418 = vadd.f32 0.0, %v1417
      %v1419 = vpop.f32.mrb[0].mxu0
      %v1420 = vadd.f32 0.0, %v1419
      %1421 = vmatprep.mubr.bf16.mxu0 0
      %1422 = vmatmul.mubr.bf16.gmra.mrb[0].mxu0 %v834
      %v1423 = vpop.f32.mrb[0].mxu0
      %v1424 = vadd.f32 0.0, %v1423
      %v1425 = vpop.f32.mrb[0].mxu0
      %v1426 = vadd.f32 0.0, %v1425
      %v1427 = vpop.f32.mrb[0].mxu0
      %v1428 = vadd.f32 0.0, %v1427
      %v1429 = vpop.f32.mrb[0].mxu0
      %v1430 = vadd.f32 0.0, %v1429
      %1431 = vmatprep.mubr.bf16.mxu0 0
      %1432 = vmatmul.mubr.bf16.gmra.mrb[0].mxu0 %v837
      %v1433 = vpop.f32.mrb[0].mxu0
      %v1434 = vadd.f32 0.0, %v1433
      %v1435 = vpop.f32.mrb[0].mxu0
      %v1436 = vadd.f32 0.0, %v1435
      %v1437 = vpop.f32.mrb[0].mxu0
      %v1438 = vadd.f32 0.0, %v1437
      %v1439 = vpop.f32.mrb[0].mxu0
      %v1440 = vadd.f32 0.0, %v1439
      %1441 = vmatprep.mubr.bf16.mxu0 0
      %1442 = vmatmul.mubr.bf16.gmra.mrb[0].mxu0 %v840
      %v1443 = vpop.f32.mrb[0].mxu0
      %v1444 = vadd.f32 0.0, %v1443
      %v1445 = vpop.f32.mrb[0].mxu0
      %v1446 = vadd.f32 0.0, %v1445
      %v1447 = vpop.f32.mrb[0].mxu0
      %v1448 = vadd.f32 0.0, %v1447
      %v1449 = vpop.f32.mrb[0].mxu0
      %v1450 = vadd.f32 0.0, %v1449
      %1451 = vmatprep.mubr.bf16.mxu0 0
      %1452 = vmatmul.mubr.bf16.gmra.mrb[0].mxu0 %v843
      %v1453 = vpop.f32.mrb[0].mxu0
      %v1454 = vadd.f32 0.0, %v1453
      %v1455 = vpop.f32.mrb[0].mxu0
      %v1456 = vadd.f32 0.0, %v1455
      %v1457 = vpop.f32.mrb[0].mxu0
      %v1458 = vadd.f32 0.0, %v1457
      %v1459 = vpop.f32.mrb[0].mxu0
      %v1460 = vadd.f32 0.0, %v1459
      %1461 = vmatprep.mubr.bf16.mxu0 0
      %1462 = vmatmul.mubr.bf16.gmra.mrb[0].mxu0 %v846
      %v1463 = vpop.f32.mrb[0].mxu0
      %v1464 = vadd.f32 0.0, %v1463
      %v1465 = vpop.f32.mrb[0].mxu0
      %v1466 = vadd.f32 0.0, %v1465
      %v1467 = vpop.f32.mrb[0].mxu0
      %v1468 = vadd.f32 0.0, %v1467
      %v1469 = vpop.f32.mrb[0].mxu0
      %v1470 = vadd.f32 0.0, %v1469
      %1471 = vmatprep.mubr.bf16.mxu0 0
      %1472 = vmatmul.mubr.bf16.gmra.mrb[0].mxu0 %v849
      %v1473 = vpop.f32.mrb[0].mxu0
      %v1474 = vadd.f32 0.0, %v1473
      %v1475 = vpop.f32.mrb[0].mxu0
      %v1476 = vadd.f32 0.0, %v1475
      %v1477 = vpop.f32.mrb[0].mxu0
      %v1478 = vadd.f32 0.0, %v1477
      %v1479 = vpop.f32.mrb[0].mxu0
      %v1480 = vadd.f32 0.0, %v1479
      %1481 = vmatprep.mubr.bf16.mxu0 0
      %1482 = vmatmul.mubr.bf16.gmra.mrb[0].mxu0 %v852
      %v1483 = vpop.f32.mrb[0].mxu0
      %v1484 = vadd.f32 0.0, %v1483
      %v1485 = vpop.f32.mrb[0].mxu0
      %v1486 = vadd.f32 0.0, %v1485
      %v1487 = vpop.f32.mrb[0].mxu0
      %v1488 = vadd.f32 0.0, %v1487
      %v1489 = vpop.f32.mrb[0].mxu0
      %v1490 = vadd.f32 0.0, %v1489
      %1491 = vmatprep.mubr.bf16.mxu0 0
      %1492 = vmatmul.mubr.bf16.gmra.mrb[0].mxu0 %v855
      %v1493 = vpop.f32.mrb[0].mxu0
      %v1494 = vadd.f32 0.0, %v1493
      %v1495 = vpop.f32.mrb[0].mxu0
      %v1496 = vadd.f32 0.0, %v1495
      %v1497 = vpop.f32.mrb[0].mxu0
      %v1498 = vadd.f32 0.0, %v1497
      %v1499 = vpop.f32.mrb[0].mxu0
      %v1500 = vadd.f32 0.0, %v1499
      %1501 = vmatprep.mubr.bf16.mxu0 0
      %1502 = vmatmul.mubr.bf16.gmra.mrb[0].mxu0 %v858
      %v1503 = vpop.f32.mrb[0].mxu0
      %v1504 = vadd.f32 0.0, %v1503
      %v1505 = vpop.f32.mrb[0].mxu0
      %v1506 = vadd.f32 0.0, %v1505
      %v1507 = vpop.f32.mrb[0].mxu0
      %v1508 = vadd.f32 0.0, %v1507
      %v1509 = vpop.f32.mrb[0].mxu0
      %v1510 = vadd.f32 0.0, %v1509
      %1511 = vmatprep.mubr.bf16.mxu0 0
      %1512 = vmatmul.mubr.bf16.gmra.mrb[0].mxu0 %v861
      %v1513 = vpop.f32.mrb[0].mxu0
      %v1514 = vadd.f32 0.0, %v1513
      %v1515 = vpop.f32.mrb[0].mxu0
      %v1516 = vadd.f32 0.0, %v1515
      %v1517 = vpop.f32.mrb[0].mxu0
      %v1518 = vadd.f32 0.0, %v1517
      %v1519 = vpop.f32.mrb[0].mxu0
      %v1520 = vadd.f32 0.0, %v1519
      %1521 = vmatprep.mubr.bf16.mxu0 0
      %1522 = vmatmul.mubr.bf16.gmra.mrb[0].mxu0 %v864
      %v1523 = vpop.f32.mrb[0].mxu0
      %v1524 = vadd.f32 0.0, %v1523
      %v1525 = vpop.f32.mrb[0].mxu0
      %v1526 = vadd.f32 0.0, %v1525
      %v1527 = vpop.f32.mrb[0].mxu0
      %v1528 = vadd.f32 0.0, %v1527
      %v1529 = vpop.f32.mrb[0].mxu0
      %v1530 = vadd.f32 0.0, %v1529
      %1531 = vmatprep.mubr.bf16.mxu0 0
      %1532 = vmatmul.mubr.bf16.gmra.mrb[0].mxu0 %v867
      %v1533 = vpop.f32.mrb[0].mxu0
      %v1534 = vadd.f32 0.0, %v1533
      %v1535 = vpop.f32.mrb[0].mxu0
      %v1536 = vadd.f32 0.0, %v1535
      %v1537 = vpop.f32.mrb[0].mxu0
      %v1538 = vadd.f32 0.0, %v1537
      %v1539 = vpop.f32.mrb[0].mxu0
      %v1540 = vadd.f32 0.0, %v1539
      %1541 = vdwg.mxu0
      %1542 = vmatprep.subr.bf16.mxu0 %v663
      %1543 = vmatpush1.bf16.msra.mxu0 %v662
      %1544 = vmatprep.subr.bf16.mxu0 %v667
      %1545 = vmatpush1.bf16.msra.mxu0 %v666
      %1546 = vmatprep.subr.bf16.mxu0 0
      %1547 = vmatpush1.bf16.msra.mxu0 0
      %1548 = vmatprep.subr.bf16.mxu0 0
      %1549 = vmatpush1.bf16.msra.mxu0 0
      %1550 = vmatprep.subr.bf16.mxu0 0
      %1551 = vmatpush1.bf16.msra.mxu0 0
      %1552 = vmatprep.subr.bf16.mxu0 0
      %1553 = vmatpush1.bf16.msra.mxu0 0
      %1554 = vmatprep.subr.bf16.mxu0 0
      %1555 = vmatpush1.bf16.msra.mxu0 0
      %1556 = vmatprep.subr.bf16.mxu0 0
      %1557 = vmatpush1.bf16.msra.mxu0 0
      %1558 = vmatprep.subr.bf16.mxu0 0
      %1559 = vmatpush1.bf16.msra.mxu0 0
      %1560 = vmatprep.subr.bf16.mxu0 0
      %1561 = vmatpush1.bf16.msra.mxu0 0
      %1562 = vmatprep.subr.bf16.mxu0 0
      %1563 = vmatpush1.bf16.msra.mxu0 0
      %1564 = vmatprep.subr.bf16.mxu0 0
      %1565 = vmatpush1.bf16.msra.mxu0 0
      %1566 = vmatprep.subr.bf16.mxu0 0
      %1567 = vmatpush1.bf16.msra.mxu0 0
      %1568 = vmatprep.subr.bf16.mxu0 0
      %1569 = vmatpush1.bf16.msra.mxu0 0
      %1570 = vmatprep.subr.bf16.mxu0 0
      %1571 = vmatpush1.bf16.msra.mxu0 0
      %1572 = vmatprep.subr.bf16.mxu0 0
      %1573 = vmatpush1.bf16.msra.mxu0 0
      %1574 = vmatprep.mubr.bf16.mxu0 0
      %1575 = vmatmul.mubr.bf16.gmra.mrb[0].mxu0 %v678
      %v1576 = vpop.f32.mrb[0].mxu0
      %v1577 = vadd.f32 0.0, %v1576
      %v1578 = vpop.f32.mrb[0].mxu0
      %v1579 = vadd.f32 0.0, %v1578
      %v1580 = vpop.f32.mrb[0].mxu0
      %v1581 = vadd.f32 0.0, %v1580
      %v1582 = vpop.f32.mrb[0].mxu0
      %v1583 = vadd.f32 0.0, %v1582
      %1584 = vmatprep.mubr.bf16.mxu0 0
      %1585 = vmatmul.mubr.bf16.gmra.mrb[0].mxu0 %v681
      %v1586 = vpop.f32.mrb[0].mxu0
      %v1587 = vadd.f32 0.0, %v1586
      %v1588 = vpop.f32.mrb[0].mxu0
      %v1589 = vadd.f32 0.0, %v1588
      %v1590 = vpop.f32.mrb[0].mxu0
      %v1591 = vadd.f32 0.0, %v1590
      %v1592 = vpop.f32.mrb[0].mxu0
      %v1593 = vadd.f32 0.0, %v1592
      %1594 = vmatprep.mubr.bf16.mxu0 0
      %1595 = vmatmul.mubr.bf16.gmra.mrb[0].mxu0 %v684
      %v1596 = vpop.f32.mrb[0].mxu0
      %v1597 = vadd.f32 0.0, %v1596
      %v1598 = vpop.f32.mrb[0].mxu0
      %v1599 = vadd.f32 0.0, %v1598
      %v1600 = vpop.f32.mrb[0].mxu0
      %v1601 = vadd.f32 0.0, %v1600
      %v1602 = vpop.f32.mrb[0].mxu0
      %v1603 = vadd.f32 0.0, %v1602
      %1604 = vmatprep.mubr.bf16.mxu0 0
      %1605 = vmatmul.mubr.bf16.gmra.mrb[0].mxu0 %v687
      %v1606 = vpop.f32.mrb[0].mxu0
      %v1607 = vadd.f32 0.0, %v1606
      %v1608 = vpop.f32.mrb[0].mxu0
      %v1609 = vadd.f32 0.0, %v1608
      %v1610 = vpop.f32.mrb[0].mxu0
      %v1611 = vadd.f32 0.0, %v1610
      %v1612 = vpop.f32.mrb[0].mxu0
      %v1613 = vadd.f32 0.0, %v1612
      %1614 = vmatprep.mubr.bf16.mxu0 0
      %1615 = vmatmul.mubr.bf16.gmra.mrb[0].mxu0 %v690
      %v1616 = vpop.f32.mrb[0].mxu0
      %v1617 = vadd.f32 0.0, %v1616
      %v1618 = vpop.f32.mrb[0].mxu0
      %v1619 = vadd.f32 0.0, %v1618
      %v1620 = vpop.f32.mrb[0].mxu0
      %v1621 = vadd.f32 0.0, %v1620
      %v1622 = vpop.f32.mrb[0].mxu0
      %v1623 = vadd.f32 0.0, %v1622
      %1624 = vmatprep.mubr.bf16.mxu0 0
      %1625 = vmatmul.mubr.bf16.gmra.mrb[0].mxu0 %v693
      %v1626 = vpop.f32.mrb[0].mxu0
      %v1627 = vadd.f32 0.0, %v1626
      %v1628 = vpop.f32.mrb[0].mxu0
      %v1629 = vadd.f32 0.0, %v1628
      %v1630 = vpop.f32.mrb[0].mxu0
      %v1631 = vadd.f32 0.0, %v1630
      %v1632 = vpop.f32.mrb[0].mxu0
      %v1633 = vadd.f32 0.0, %v1632
      %1634 = vmatprep.mubr.bf16.mxu0 0
      %1635 = vmatmul.mubr.bf16.gmra.mrb[0].mxu0 %v696
      %v1636 = vpop.f32.mrb[0].mxu0
      %v1637 = vadd.f32 0.0, %v1636
      %v1638 = vpop.f32.mrb[0].mxu0
      %v1639 = vadd.f32 0.0, %v1638
      %v1640 = vpop.f32.mrb[0].mxu0
      %v1641 = vadd.f32 0.0, %v1640
      %v1642 = vpop.f32.mrb[0].mxu0
      %v1643 = vadd.f32 0.0, %v1642
      %1644 = vmatprep.mubr.bf16.mxu0 0
      %1645 = vmatmul.mubr.bf16.gmra.mrb[0].mxu0 %v699
      %v1646 = vpop.f32.mrb[0].mxu0
      %v1647 = vadd.f32 0.0, %v1646
      %v1648 = vpop.f32.mrb[0].mxu0
      %v1649 = vadd.f32 0.0, %v1648
      %v1650 = vpop.f32.mrb[0].mxu0
      %v1651 = vadd.f32 0.0, %v1650
      %v1652 = vpop.f32.mrb[0].mxu0
      %v1653 = vadd.f32 0.0, %v1652
      %1654 = vmatprep.mubr.bf16.mxu0 0
      %1655 = vmatmul.mubr.bf16.gmra.mrb[0].mxu0 %v702
      %v1656 = vpop.f32.mrb[0].mxu0
      %v1657 = vadd.f32 0.0, %v1656
      %v1658 = vpop.f32.mrb[0].mxu0
      %v1659 = vadd.f32 0.0, %v1658
      %v1660 = vpop.f32.mrb[0].mxu0
      %v1661 = vadd.f32 0.0, %v1660
      %v1662 = vpop.f32.mrb[0].mxu0
      %v1663 = vadd.f32 0.0, %v1662
      %1664 = vmatprep.mubr.bf16.mxu0 0
      %1665 = vmatmul.mubr.bf16.gmra.mrb[0].mxu0 %v705
      %v1666 = vpop.f32.mrb[0].mxu0
      %v1667 = vadd.f32 0.0, %v1666
      %v1668 = vpop.f32.mrb[0].mxu0
      %v1669 = vadd.f32 0.0, %v1668
      %v1670 = vpop.f32.mrb[0].mxu0
      %v1671 = vadd.f32 0.0, %v1670
      %v1672 = vpop.f32.mrb[0].mxu0
      %v1673 = vadd.f32 0.0, %v1672
      %1674 = vmatprep.mubr.bf16.mxu0 0
      %1675 = vmatmul.mubr.bf16.gmra.mrb[0].mxu0 %v708
      %v1676 = vpop.f32.mrb[0].mxu0
      %v1677 = vadd.f32 0.0, %v1676
      %v1678 = vpop.f32.mrb[0].mxu0
      %v1679 = vadd.f32 0.0, %v1678
      %v1680 = vpop.f32.mrb[0].mxu0
      %v1681 = vadd.f32 0.0, %v1680
      %v1682 = vpop.f32.mrb[0].mxu0
      %v1683 = vadd.f32 0.0, %v1682
      %1684 = vmatprep.mubr.bf16.mxu0 0
      %1685 = vmatmul.mubr.bf16.gmra.mrb[0].mxu0 %v711
      %v1686 = vpop.f32.mrb[0].mxu0
      %v1687 = vadd.f32 0.0, %v1686
      %v1688 = vpop.f32.mrb[0].mxu0
      %v1689 = vadd.f32 0.0, %v1688
      %v1690 = vpop.f32.mrb[0].mxu0
      %v1691 = vadd.f32 0.0, %v1690
      %v1692 = vpop.f32.mrb[0].mxu0
      %v1693 = vadd.f32 0.0, %v1692
      %1694 = vmatprep.mubr.bf16.mxu0 0
      %1695 = vmatmul.mubr.bf16.gmra.mrb[0].mxu0 %v714
      %v1696 = vpop.f32.mrb[0].mxu0
      %v1697 = vadd.f32 0.0, %v1696
      %v1698 = vpop.f32.mrb[0].mxu0
      %v1699 = vadd.f32 0.0, %v1698
      %v1700 = vpop.f32.mrb[0].mxu0
      %v1701 = vadd.f32 0.0, %v1700
      %v1702 = vpop.f32.mrb[0].mxu0
      %v1703 = vadd.f32 0.0, %v1702
      %1704 = vmatprep.mubr.bf16.mxu0 0
      %1705 = vmatmul.mubr.bf16.gmra.mrb[0].mxu0 %v717
      %v1706 = vpop.f32.mrb[0].mxu0
      %v1707 = vadd.f32 0.0, %v1706
      %v1708 = vpop.f32.mrb[0].mxu0
      %v1709 = vadd.f32 0.0, %v1708
      %v1710 = vpop.f32.mrb[0].mxu0
      %v1711 = vadd.f32 0.0, %v1710
      %v1712 = vpop.f32.mrb[0].mxu0
      %v1713 = vadd.f32 0.0, %v1712
      %1714 = vmatprep.mubr.bf16.mxu0 0
      %1715 = vmatmul.mubr.bf16.gmra.mrb[0].mxu0 %v720
      %v1716 = vpop.f32.mrb[0].mxu0
      %v1717 = vadd.f32 0.0, %v1716
      %v1718 = vpop.f32.mrb[0].mxu0
      %v1719 = vadd.f32 0.0, %v1718
      %v1720 = vpop.f32.mrb[0].mxu0
      %v1721 = vadd.f32 0.0, %v1720
      %v1722 = vpop.f32.mrb[0].mxu0
      %v1723 = vadd.f32 0.0, %v1722
      %1724 = vmatprep.mubr.bf16.mxu0 0
      %1725 = vmatmul.mubr.bf16.gmra.mrb[0].mxu0 %v723
      %v1726 = vpop.f32.mrb[0].mxu0
      %v1727 = vadd.f32 0.0, %v1726
      %v1728 = vpop.f32.mrb[0].mxu0
      %v1729 = vadd.f32 0.0, %v1728
      %v1730 = vpop.f32.mrb[0].mxu0
      %v1731 = vadd.f32 0.0, %v1730
      %v1732 = vpop.f32.mrb[0].mxu0
      %v1733 = vadd.f32 0.0, %v1732
      %1734 = vmatprep.mubr.bf16.mxu0 0
      %1735 = vmatmul.mubr.bf16.gmra.mrb[0].mxu0 %v726
      %v1736 = vpop.f32.mrb[0].mxu0
      %v1737 = vadd.f32 0.0, %v1736
      %v1738 = vpop.f32.mrb[0].mxu0
      %v1739 = vadd.f32 0.0, %v1738
      %v1740 = vpop.f32.mrb[0].mxu0
      %v1741 = vadd.f32 0.0, %v1740
      %v1742 = vpop.f32.mrb[0].mxu0
      %v1743 = vadd.f32 0.0, %v1742
      %1744 = vmatprep.mubr.bf16.mxu0 0
      %1745 = vmatmul.mubr.bf16.gmra.mrb[0].mxu0 %v729
      %v1746 = vpop.f32.mrb[0].mxu0
      %v1747 = vadd.f32 0.0, %v1746
      %v1748 = vpop.f32.mrb[0].mxu0
      %v1749 = vadd.f32 0.0, %v1748
      %v1750 = vpop.f32.mrb[0].mxu0
      %v1751 = vadd.f32 0.0, %v1750
      %v1752 = vpop.f32.mrb[0].mxu0
      %v1753 = vadd.f32 0.0, %v1752
      %1754 = vmatprep.mubr.bf16.mxu0 0
      %1755 = vmatmul.mubr.bf16.gmra.mrb[0].mxu0 %v732
      %v1756 = vpop.f32.mrb[0].mxu0
      %v1757 = vadd.f32 0.0, %v1756
      %v1758 = vpop.f32.mrb[0].mxu0
      %v1759 = vadd.f32 0.0, %v1758
      %v1760 = vpop.f32.mrb[0].mxu0
      %v1761 = vadd.f32 0.0, %v1760
      %v1762 = vpop.f32.mrb[0].mxu0
      %v1763 = vadd.f32 0.0, %v1762
      %1764 = vmatprep.mubr.bf16.mxu0 0
      %1765 = vmatmul.mubr.bf16.gmra.mrb[0].mxu0 %v735
      %v1766 = vpop.f32.mrb[0].mxu0
      %v1767 = vadd.f32 0.0, %v1766
      %v1768 = vpop.f32.mrb[0].mxu0
      %v1769 = vadd.f32 0.0, %v1768
      %v1770 = vpop.f32.mrb[0].mxu0
      %v1771 = vadd.f32 0.0, %v1770
      %v1772 = vpop.f32.mrb[0].mxu0
      %v1773 = vadd.f32 0.0, %v1772
      %1774 = vmatprep.mubr.bf16.mxu0 0
      %1775 = vmatmul.mubr.bf16.gmra.mrb[0].mxu0 %v738
      %v1776 = vpop.f32.mrb[0].mxu0
      %v1777 = vadd.f32 0.0, %v1776
      %v1778 = vpop.f32.mrb[0].mxu0
      %v1779 = vadd.f32 0.0, %v1778
      %v1780 = vpop.f32.mrb[0].mxu0
      %v1781 = vadd.f32 0.0, %v1780
      %v1782 = vpop.f32.mrb[0].mxu0
      %v1783 = vadd.f32 0.0, %v1782
      %1784 = vmatprep.mubr.bf16.mxu0 0
      %1785 = vmatmul.mubr.bf16.gmra.mrb[0].mxu0 %v741
      %v1786 = vpop.f32.mrb[0].mxu0
      %v1787 = vadd.f32 0.0, %v1786
      %v1788 = vpop.f32.mrb[0].mxu0
      %v1789 = vadd.f32 0.0, %v1788
      %v1790 = vpop.f32.mrb[0].mxu0
      %v1791 = vadd.f32 0.0, %v1790
      %v1792 = vpop.f32.mrb[0].mxu0
      %v1793 = vadd.f32 0.0, %v1792
      %1794 = vmatprep.mubr.bf16.mxu0 0
      %1795 = vmatmul.mubr.bf16.gmra.mrb[0].mxu0 %v744
      %v1796 = vpop.f32.mrb[0].mxu0
      %v1797 = vadd.f32 0.0, %v1796
      %v1798 = vpop.f32.mrb[0].mxu0
      %v1799 = vadd.f32 0.0, %v1798
      %v1800 = vpop.f32.mrb[0].mxu0
      %v1801 = vadd.f32 0.0, %v1800
      %v1802 = vpop.f32.mrb[0].mxu0
      %v1803 = vadd.f32 0.0, %v1802
      %1804 = vmatprep.mubr.bf16.mxu0 0
      %1805 = vmatmul.mubr.bf16.gmra.mrb[0].mxu0 %v747
      %v1806 = vpop.f32.mrb[0].mxu0
      %v1807 = vadd.f32 0.0, %v1806
      %v1808 = vpop.f32.mrb[0].mxu0
      %v1809 = vadd.f32 0.0, %v1808
      %v1810 = vpop.f32.mrb[0].mxu0
      %v1811 = vadd.f32 0.0, %v1810
      %v1812 = vpop.f32.mrb[0].mxu0
      %v1813 = vadd.f32 0.0, %v1812
      %1814 = vmatprep.mubr.bf16.mxu0 0
      %1815 = vmatmul.mubr.bf16.gmra.mrb[0].mxu0 %v750
      %v1816 = vpop.f32.mrb[0].mxu0
      %v1817 = vadd.f32 0.0, %v1816
      %v1818 = vpop.f32.mrb[0].mxu0
      %v1819 = vadd.f32 0.0, %v1818
      %v1820 = vpop.f32.mrb[0].mxu0
      %v1821 = vadd.f32 0.0, %v1820
      %v1822 = vpop.f32.mrb[0].mxu0
      %v1823 = vadd.f32 0.0, %v1822
      %1824 = vmatprep.mubr.bf16.mxu0 0
      %1825 = vmatmul.mubr.bf16.gmra.mrb[0].mxu0 %v753
      %v1826 = vpop.f32.mrb[0].mxu0
      %v1827 = vadd.f32 0.0, %v1826
      %v1828 = vpop.f32.mrb[0].mxu0
      %v1829 = vadd.f32 0.0, %v1828
      %v1830 = vpop.f32.mrb[0].mxu0
      %v1831 = vadd.f32 0.0, %v1830
      %v1832 = vpop.f32.mrb[0].mxu0
      %v1833 = vadd.f32 0.0, %v1832
      %1834 = vmatprep.mubr.bf16.mxu0 0
      %1835 = vmatmul.mubr.bf16.gmra.mrb[0].mxu0 %v756
      %v1836 = vpop.f32.mrb[0].mxu0
      %v1837 = vadd.f32 0.0, %v1836
      %v1838 = vpop.f32.mrb[0].mxu0
      %v1839 = vadd.f32 0.0, %v1838
      %v1840 = vpop.f32.mrb[0].mxu0
      %v1841 = vadd.f32 0.0, %v1840
      %v1842 = vpop.f32.mrb[0].mxu0
      %v1843 = vadd.f32 0.0, %v1842
      %1844 = vmatprep.mubr.bf16.mxu0 0
      %1845 = vmatmul.mubr.bf16.gmra.mrb[0].mxu0 %v759
      %v1846 = vpop.f32.mrb[0].mxu0
      %v1847 = vadd.f32 0.0, %v1846
      %v1848 = vpop.f32.mrb[0].mxu0
      %v1849 = vadd.f32 0.0, %v1848
      %v1850 = vpop.f32.mrb[0].mxu0
      %v1851 = vadd.f32 0.0, %v1850
      %v1852 = vpop.f32.mrb[0].mxu0
      %v1853 = vadd.f32 0.0, %v1852
      %1854 = vmatprep.mubr.bf16.mxu0 0
      %1855 = vmatmul.mubr.bf16.gmra.mrb[0].mxu0 %v762
      %v1856 = vpop.f32.mrb[0].mxu0
      %v1857 = vadd.f32 0.0, %v1856
      %v1858 = vpop.f32.mrb[0].mxu0
      %v1859 = vadd.f32 0.0, %v1858
      %v1860 = vpop.f32.mrb[0].mxu0
      %v1861 = vadd.f32 0.0, %v1860
      %v1862 = vpop.f32.mrb[0].mxu0
      %v1863 = vadd.f32 0.0, %v1862
      %1864 = vmatprep.mubr.bf16.mxu0 0
      %1865 = vmatmul.mubr.bf16.gmra.mrb[0].mxu0 %v765
      %v1866 = vpop.f32.mrb[0].mxu0
      %v1867 = vadd.f32 0.0, %v1866
      %v1868 = vpop.f32.mrb[0].mxu0
      %v1869 = vadd.f32 0.0, %v1868
      %v1870 = vpop.f32.mrb[0].mxu0
      %v1871 = vadd.f32 0.0, %v1870
      %v1872 = vpop.f32.mrb[0].mxu0
      %v1873 = vadd.f32 0.0, %v1872
      %1874 = vmatprep.mubr.bf16.mxu0 0
      %1875 = vmatmul.mubr.bf16.gmra.mrb[0].mxu0 %v768
      %v1876 = vpop.f32.mrb[0].mxu0
      %v1877 = vadd.f32 0.0, %v1876
      %v1878 = vpop.f32.mrb[0].mxu0
      %v1879 = vadd.f32 0.0, %v1878
      %v1880 = vpop.f32.mrb[0].mxu0
      %v1881 = vadd.f32 0.0, %v1880
      %v1882 = vpop.f32.mrb[0].mxu0
      %v1883 = vadd.f32 0.0, %v1882
      %1884 = vmatprep.mubr.bf16.mxu0 0
      %1885 = vmatmul.mubr.bf16.gmra.mrb[0].mxu0 %v771
      %v1886 = vpop.f32.mrb[0].mxu0
      %v1887 = vadd.f32 0.0, %v1886
      %v1888 = vpop.f32.mrb[0].mxu0
      %v1889 = vadd.f32 0.0, %v1888
      %v1890 = vpop.f32.mrb[0].mxu0
      %v1891 = vadd.f32 0.0, %v1890
      %v1892 = vpop.f32.mrb[0].mxu0
      %v1893 = vadd.f32 0.0, %v1892
      %1894 = vmatprep.mubr.bf16.mxu0 0
      %1895 = vmatmul.mubr.bf16.gmra.mrb[0].mxu0 %v774
      %v1896 = vpop.f32.mrb[0].mxu0
      %v1897 = vadd.f32 0.0, %v1896
      %v1898 = vpop.f32.mrb[0].mxu0
      %v1899 = vadd.f32 0.0, %v1898
      %v1900 = vpop.f32.mrb[0].mxu0
      %v1901 = vadd.f32 0.0, %v1900
      %v1902 = vpop.f32.mrb[0].mxu0
      %v1903 = vadd.f32 0.0, %v1902
      %1904 = vmatprep.mubr.bf16.mxu0 0
      %1905 = vmatmul.mubr.bf16.gmra.mrb[0].mxu0 %v777
      %v1906 = vpop.f32.mrb[0].mxu0
      %v1907 = vadd.f32 0.0, %v1906
      %v1908 = vpop.f32.mrb[0].mxu0
      %v1909 = vadd.f32 0.0, %v1908
      %v1910 = vpop.f32.mrb[0].mxu0
      %v1911 = vadd.f32 0.0, %v1910
      %v1912 = vpop.f32.mrb[0].mxu0
      %v1913 = vadd.f32 0.0, %v1912
      %1914 = vmatprep.mubr.bf16.mxu0 0
      %1915 = vmatmul.mubr.bf16.gmra.mrb[0].mxu0 %v780
      %v1916 = vpop.f32.mrb[0].mxu0
      %v1917 = vadd.f32 0.0, %v1916
      %v1918 = vpop.f32.mrb[0].mxu0
      %v1919 = vadd.f32 0.0, %v1918
      %v1920 = vpop.f32.mrb[0].mxu0
      %v1921 = vadd.f32 0.0, %v1920
      %v1922 = vpop.f32.mrb[0].mxu0
      %v1923 = vadd.f32 0.0, %v1922
      %1924 = vmatprep.mubr.bf16.mxu0 0
      %1925 = vmatmul.mubr.bf16.gmra.mrb[0].mxu0 %v783
      %v1926 = vpop.f32.mrb[0].mxu0
      %v1927 = vadd.f32 0.0, %v1926
      %v1928 = vpop.f32.mrb[0].mxu0
      %v1929 = vadd.f32 0.0, %v1928
      %v1930 = vpop.f32.mrb[0].mxu0
      %v1931 = vadd.f32 0.0, %v1930
      %v1932 = vpop.f32.mrb[0].mxu0
      %v1933 = vadd.f32 0.0, %v1932
      %1934 = vmatprep.mubr.bf16.mxu0 0
      %1935 = vmatmul.mubr.bf16.gmra.mrb[0].mxu0 %v786
      %v1936 = vpop.f32.mrb[0].mxu0
      %v1937 = vadd.f32 0.0, %v1936
      %v1938 = vpop.f32.mrb[0].mxu0
      %v1939 = vadd.f32 0.0, %v1938
      %v1940 = vpop.f32.mrb[0].mxu0
      %v1941 = vadd.f32 0.0, %v1940
      %v1942 = vpop.f32.mrb[0].mxu0
      %v1943 = vadd.f32 0.0, %v1942
      %1944 = vmatprep.mubr.bf16.mxu0 0
      %1945 = vmatmul.mubr.bf16.gmra.mrb[0].mxu0 %v789
      %v1946 = vpop.f32.mrb[0].mxu0
      %v1947 = vadd.f32 0.0, %v1946
      %v1948 = vpop.f32.mrb[0].mxu0
      %v1949 = vadd.f32 0.0, %v1948
      %v1950 = vpop.f32.mrb[0].mxu0
      %v1951 = vadd.f32 0.0, %v1950
      %v1952 = vpop.f32.mrb[0].mxu0
      %v1953 = vadd.f32 0.0, %v1952
      %1954 = vmatprep.mubr.bf16.mxu0 0
      %1955 = vmatmul.mubr.bf16.gmra.mrb[0].mxu0 %v792
      %v1956 = vpop.f32.mrb[0].mxu0
      %v1957 = vadd.f32 0.0, %v1956
      %v1958 = vpop.f32.mrb[0].mxu0
      %v1959 = vadd.f32 0.0, %v1958
      %v1960 = vpop.f32.mrb[0].mxu0
      %v1961 = vadd.f32 0.0, %v1960
      %v1962 = vpop.f32.mrb[0].mxu0
      %v1963 = vadd.f32 0.0, %v1962
      %1964 = vmatprep.mubr.bf16.mxu0 0
      %1965 = vmatmul.mubr.bf16.gmra.mrb[0].mxu0 %v795
      %v1966 = vpop.f32.mrb[0].mxu0
      %v1967 = vadd.f32 0.0, %v1966
      %v1968 = vpop.f32.mrb[0].mxu0
      %v1969 = vadd.f32 0.0, %v1968
      %v1970 = vpop.f32.mrb[0].mxu0
      %v1971 = vadd.f32 0.0, %v1970
      %v1972 = vpop.f32.mrb[0].mxu0
      %v1973 = vadd.f32 0.0, %v1972
      %1974 = vmatprep.mubr.bf16.mxu0 0
      %1975 = vmatmul.mubr.bf16.gmra.mrb[0].mxu0 %v798
      %v1976 = vpop.f32.mrb[0].mxu0
      %v1977 = vadd.f32 0.0, %v1976
      %v1978 = vpop.f32.mrb[0].mxu0
      %v1979 = vadd.f32 0.0, %v1978
      %v1980 = vpop.f32.mrb[0].mxu0
      %v1981 = vadd.f32 0.0, %v1980
      %v1982 = vpop.f32.mrb[0].mxu0
      %v1983 = vadd.f32 0.0, %v1982
      %1984 = vmatprep.mubr.bf16.mxu0 0
      %1985 = vmatmul.mubr.bf16.gmra.mrb[0].mxu0 %v801
      %v1986 = vpop.f32.mrb[0].mxu0
      %v1987 = vadd.f32 0.0, %v1986
      %v1988 = vpop.f32.mrb[0].mxu0
      %v1989 = vadd.f32 0.0, %v1988
      %v1990 = vpop.f32.mrb[0].mxu0
      %v1991 = vadd.f32 0.0, %v1990
      %v1992 = vpop.f32.mrb[0].mxu0
      %v1993 = vadd.f32 0.0, %v1992
      %1994 = vmatprep.mubr.bf16.mxu0 0
      %1995 = vmatmul.mubr.bf16.gmra.mrb[0].mxu0 %v804
      %v1996 = vpop.f32.mrb[0].mxu0
      %v1997 = vadd.f32 0.0, %v1996
      %v1998 = vpop.f32.mrb[0].mxu0
      %v1999 = vadd.f32 0.0, %v1998
      %v2000 = vpop.f32.mrb[0].mxu0
      %v2001 = vadd.f32 0.0, %v2000
      %v2002 = vpop.f32.mrb[0].mxu0
      %v2003 = vadd.f32 0.0, %v2002
      %2004 = vmatprep.mubr.bf16.mxu0 0
      %2005 = vmatmul.mubr.bf16.gmra.mrb[0].mxu0 %v807
      %v2006 = vpop.f32.mrb[0].mxu0
      %v2007 = vadd.f32 0.0, %v2006
      %v2008 = vpop.f32.mrb[0].mxu0
      %v2009 = vadd.f32 0.0, %v2008
      %v2010 = vpop.f32.mrb[0].mxu0
      %v2011 = vadd.f32 0.0, %v2010
      %v2012 = vpop.f32.mrb[0].mxu0
      %v2013 = vadd.f32 0.0, %v2012
      %2014 = vmatprep.mubr.bf16.mxu0 0
      %2015 = vmatmul.mubr.bf16.gmra.mrb[0].mxu0 %v810
      %v2016 = vpop.f32.mrb[0].mxu0
      %v2017 = vadd.f32 0.0, %v2016
      %v2018 = vpop.f32.mrb[0].mxu0
      %v2019 = vadd.f32 0.0, %v2018
      %v2020 = vpop.f32.mrb[0].mxu0
      %v2021 = vadd.f32 0.0, %v2020
      %v2022 = vpop.f32.mrb[0].mxu0
      %v2023 = vadd.f32 0.0, %v2022
      %2024 = vmatprep.mubr.bf16.mxu0 0
      %2025 = vmatmul.mubr.bf16.gmra.mrb[0].mxu0 %v813
      %v2026 = vpop.f32.mrb[0].mxu0
      %v2027 = vadd.f32 0.0, %v2026
      %v2028 = vpop.f32.mrb[0].mxu0
      %v2029 = vadd.f32 0.0, %v2028
      %v2030 = vpop.f32.mrb[0].mxu0
      %v2031 = vadd.f32 0.0, %v2030
      %v2032 = vpop.f32.mrb[0].mxu0
      %v2033 = vadd.f32 0.0, %v2032
      %2034 = vmatprep.mubr.bf16.mxu0 0
      %2035 = vmatmul.mubr.bf16.gmra.mrb[0].mxu0 %v816
      %v2036 = vpop.f32.mrb[0].mxu0
      %v2037 = vadd.f32 0.0, %v2036
      %v2038 = vpop.f32.mrb[0].mxu0
      %v2039 = vadd.f32 0.0, %v2038
      %v2040 = vpop.f32.mrb[0].mxu0
      %v2041 = vadd.f32 0.0, %v2040
      %v2042 = vpop.f32.mrb[0].mxu0
      %v2043 = vadd.f32 0.0, %v2042
      %2044 = vmatprep.mubr.bf16.mxu0 0
      %2045 = vmatmul.mubr.bf16.gmra.mrb[0].mxu0 %v819
      %v2046 = vpop.f32.mrb[0].mxu0
      %v2047 = vadd.f32 0.0, %v2046
      %v2048 = vpop.f32.mrb[0].mxu0
      %v2049 = vadd.f32 0.0, %v2048
      %v2050 = vpop.f32.mrb[0].mxu0
      %v2051 = vadd.f32 0.0, %v2050
      %v2052 = vpop.f32.mrb[0].mxu0
      %v2053 = vadd.f32 0.0, %v2052
      %2054 = vmatprep.mubr.bf16.mxu0 0
      %2055 = vmatmul.mubr.bf16.gmra.mrb[0].mxu0 %v822
      %v2056 = vpop.f32.mrb[0].mxu0
      %v2057 = vadd.f32 0.0, %v2056
      %v2058 = vpop.f32.mrb[0].mxu0
      %v2059 = vadd.f32 0.0, %v2058
      %v2060 = vpop.f32.mrb[0].mxu0
      %v2061 = vadd.f32 0.0, %v2060
      %v2062 = vpop.f32.mrb[0].mxu0
      %v2063 = vadd.f32 0.0, %v2062
      %2064 = vmatprep.mubr.bf16.mxu0 0
      %2065 = vmatmul.mubr.bf16.gmra.mrb[0].mxu0 %v825
      %v2066 = vpop.f32.mrb[0].mxu0
      %v2067 = vadd.f32 0.0, %v2066
      %v2068 = vpop.f32.mrb[0].mxu0
      %v2069 = vadd.f32 0.0, %v2068
      %v2070 = vpop.f32.mrb[0].mxu0
      %v2071 = vadd.f32 0.0, %v2070
      %v2072 = vpop.f32.mrb[0].mxu0
      %v2073 = vadd.f32 0.0, %v2072
      %2074 = vmatprep.mubr.bf16.mxu0 0
      %2075 = vmatmul.mubr.bf16.gmra.mrb[0].mxu0 %v828
      %v2076 = vpop.f32.mrb[0].mxu0
      %v2077 = vadd.f32 0.0, %v2076
      %v2078 = vpop.f32.mrb[0].mxu0
      %v2079 = vadd.f32 0.0, %v2078
      %v2080 = vpop.f32.mrb[0].mxu0
      %v2081 = vadd.f32 0.0, %v2080
      %v2082 = vpop.f32.mrb[0].mxu0
      %v2083 = vadd.f32 0.0, %v2082
      %2084 = vmatprep.mubr.bf16.mxu0 0
      %2085 = vmatmul.mubr.bf16.gmra.mrb[0].mxu0 %v831
      %v2086 = vpop.f32.mrb[0].mxu0
      %v2087 = vadd.f32 0.0, %v2086
      %v2088 = vpop.f32.mrb[0].mxu0
      %v2089 = vadd.f32 0.0, %v2088
      %v2090 = vpop.f32.mrb[0].mxu0
      %v2091 = vadd.f32 0.0, %v2090
      %v2092 = vpop.f32.mrb[0].mxu0
      %v2093 = vadd.f32 0.0, %v2092
      %2094 = vmatprep.mubr.bf16.mxu0 0
      %2095 = vmatmul.mubr.bf16.gmra.mrb[0].mxu0 %v834
      %v2096 = vpop.f32.mrb[0].mxu0
      %v2097 = vadd.f32 0.0, %v2096
      %v2098 = vpop.f32.mrb[0].mxu0
      %v2099 = vadd.f32 0.0, %v2098
      %v2100 = vpop.f32.mrb[0].mxu0
      %v2101 = vadd.f32 0.0, %v2100
      %v2102 = vpop.f32.mrb[0].mxu0
      %v2103 = vadd.f32 0.0, %v2102
      %2104 = vmatprep.mubr.bf16.mxu0 0
      %2105 = vmatmul.mubr.bf16.gmra.mrb[0].mxu0 %v837
      %v2106 = vpop.f32.mrb[0].mxu0
      %v2107 = vadd.f32 0.0, %v2106
      %v2108 = vpop.f32.mrb[0].mxu0
      %v2109 = vadd.f32 0.0, %v2108
      %v2110 = vpop.f32.mrb[0].mxu0
      %v2111 = vadd.f32 0.0, %v2110
      %v2112 = vpop.f32.mrb[0].mxu0
      %v2113 = vadd.f32 0.0, %v2112
      %2114 = vmatprep.mubr.bf16.mxu0 0
      %2115 = vmatmul.mubr.bf16.gmra.mrb[0].mxu0 %v840
      %v2116 = vpop.f32.mrb[0].mxu0
      %v2117 = vadd.f32 0.0, %v2116
      %v2118 = vpop.f32.mrb[0].mxu0
      %v2119 = vadd.f32 0.0, %v2118
      %v2120 = vpop.f32.mrb[0].mxu0
      %v2121 = vadd.f32 0.0, %v2120
      %v2122 = vpop.f32.mrb[0].mxu0
      %v2123 = vadd.f32 0.0, %v2122
      %2124 = vmatprep.mubr.bf16.mxu0 0
      %2125 = vmatmul.mubr.bf16.gmra.mrb[0].mxu0 %v843
      %v2126 = vpop.f32.mrb[0].mxu0
      %v2127 = vadd.f32 0.0, %v2126
      %v2128 = vpop.f32.mrb[0].mxu0
      %v2129 = vadd.f32 0.0, %v2128
      %v2130 = vpop.f32.mrb[0].mxu0
      %v2131 = vadd.f32 0.0, %v2130
      %v2132 = vpop.f32.mrb[0].mxu0
      %v2133 = vadd.f32 0.0, %v2132
      %2134 = vmatprep.mubr.bf16.mxu0 0
      %2135 = vmatmul.mubr.bf16.gmra.mrb[0].mxu0 %v846
      %v2136 = vpop.f32.mrb[0].mxu0
      %v2137 = vadd.f32 0.0, %v2136
      %v2138 = vpop.f32.mrb[0].mxu0
      %v2139 = vadd.f32 0.0, %v2138
      %v2140 = vpop.f32.mrb[0].mxu0
      %v2141 = vadd.f32 0.0, %v2140
      %v2142 = vpop.f32.mrb[0].mxu0
      %v2143 = vadd.f32 0.0, %v2142
      %2144 = vmatprep.mubr.bf16.mxu0 0
      %2145 = vmatmul.mubr.bf16.gmra.mrb[0].mxu0 %v849
      %v2146 = vpop.f32.mrb[0].mxu0
      %v2147 = vadd.f32 0.0, %v2146
      %v2148 = vpop.f32.mrb[0].mxu0
      %v2149 = vadd.f32 0.0, %v2148
      %v2150 = vpop.f32.mrb[0].mxu0
      %v2151 = vadd.f32 0.0, %v2150
      %v2152 = vpop.f32.mrb[0].mxu0
      %v2153 = vadd.f32 0.0, %v2152
      %2154 = vmatprep.mubr.bf16.mxu0 0
      %2155 = vmatmul.mubr.bf16.gmra.mrb[0].mxu0 %v852
      %v2156 = vpop.f32.mrb[0].mxu0
      %v2157 = vadd.f32 0.0, %v2156
      %v2158 = vpop.f32.mrb[0].mxu0
      %v2159 = vadd.f32 0.0, %v2158
      %v2160 = vpop.f32.mrb[0].mxu0
      %v2161 = vadd.f32 0.0, %v2160
      %v2162 = vpop.f32.mrb[0].mxu0
      %v2163 = vadd.f32 0.0, %v2162
      %2164 = vmatprep.mubr.bf16.mxu0 0
      %2165 = vmatmul.mubr.bf16.gmra.mrb[0].mxu0 %v855
      %v2166 = vpop.f32.mrb[0].mxu0
      %v2167 = vadd.f32 0.0, %v2166
      %v2168 = vpop.f32.mrb[0].mxu0
      %v2169 = vadd.f32 0.0, %v2168
      %v2170 = vpop.f32.mrb[0].mxu0
      %v2171 = vadd.f32 0.0, %v2170
      %v2172 = vpop.f32.mrb[0].mxu0
      %v2173 = vadd.f32 0.0, %v2172
      %2174 = vmatprep.mubr.bf16.mxu0 0
      %2175 = vmatmul.mubr.bf16.gmra.mrb[0].mxu0 %v858
      %v2176 = vpop.f32.mrb[0].mxu0
      %v2177 = vadd.f32 0.0, %v2176
      %v2178 = vpop.f32.mrb[0].mxu0
      %v2179 = vadd.f32 0.0, %v2178
      %v2180 = vpop.f32.mrb[0].mxu0
      %v2181 = vadd.f32 0.0, %v2180
      %v2182 = vpop.f32.mrb[0].mxu0
      %v2183 = vadd.f32 0.0, %v2182
      %2184 = vmatprep.mubr.bf16.mxu0 0
      %2185 = vmatmul.mubr.bf16.gmra.mrb[0].mxu0 %v861
      %v2186 = vpop.f32.mrb[0].mxu0
      %v2187 = vadd.f32 0.0, %v2186
      %v2188 = vpop.f32.mrb[0].mxu0
      %v2189 = vadd.f32 0.0, %v2188
      %v2190 = vpop.f32.mrb[0].mxu0
      %v2191 = vadd.f32 0.0, %v2190
      %v2192 = vpop.f32.mrb[0].mxu0
      %v2193 = vadd.f32 0.0, %v2192
      %2194 = vmatprep.mubr.bf16.mxu0 0
      %2195 = vmatmul.mubr.bf16.gmra.mrb[0].mxu0 %v864
      %v2196 = vpop.f32.mrb[0].mxu0
      %v2197 = vadd.f32 0.0, %v2196
      %v2198 = vpop.f32.mrb[0].mxu0
      %v2199 = vadd.f32 0.0, %v2198
      %v2200 = vpop.f32.mrb[0].mxu0
      %v2201 = vadd.f32 0.0, %v2200
      %v2202 = vpop.f32.mrb[0].mxu0
      %v2203 = vadd.f32 0.0, %v2202
      %2204 = vmatprep.mubr.bf16.mxu0 0
      %2205 = vmatmul.mubr.bf16.gmra.mrb[0].mxu0 %v867
      %v2206 = vpop.f32.mrb[0].mxu0
      %v2207 = vadd.f32 0.0, %v2206
      %v2208 = vpop.f32.mrb[0].mxu0
      %v2209 = vadd.f32 0.0, %v2208
      %v2210 = vpop.f32.mrb[0].mxu0
      %v2211 = vadd.f32 0.0, %v2210
      %v2212 = vpop.f32.mrb[0].mxu0
      %v2213 = vadd.f32 0.0, %v2212
      %2214 = vdwg.mxu0
      %v2215 = vmax.f32 %v904, 0.0
      %v2216 = vmax.f32 %v906, 0.0
      %v2217 = vmax.f32 %v1577, 0.0
      %v2218 = vmax.f32 %v1579, 0.0
      %v2219 = vmax.f32 %v908, 0.0
      %v2220 = vmax.f32 %v910, 0.0
      %v2221 = vmax.f32 %v1581, 0.0
      %v2222 = vmax.f32 %v1583, 0.0
      %v2223 = vmax.f32 %v914, 0.0
      %v2224 = vmax.f32 %v916, 0.0
      %v2225 = vmax.f32 %v1587, 0.0
      %v2226 = vmax.f32 %v1589, 0.0
      %v2227 = vmax.f32 %v918, 0.0
      %v2228 = vmax.f32 %v920, 0.0
      %v2229 = vmax.f32 %v1591, 0.0
      %v2230 = vmax.f32 %v1593, 0.0
      %v2231 = vmax.f32 %v924, 0.0
      %v2232 = vmax.f32 %v926, 0.0
      %v2233 = vmax.f32 %v1597, 0.0
      %v2234 = vmax.f32 %v1599, 0.0
      %v2235 = vmax.f32 %v928, 0.0
      %v2236 = vmax.f32 %v930, 0.0
      %v2237 = vmax.f32 %v1601, 0.0
      %v2238 = vmax.f32 %v1603, 0.0
      %v2239 = vmax.f32 %v934, 0.0
      %v2240 = vmax.f32 %v936, 0.0
      %v2241 = vmax.f32 %v1607, 0.0
      %v2242 = vmax.f32 %v1609, 0.0
      %v2243 = vmax.f32 %v938, 0.0
      %v2244 = vmax.f32 %v940, 0.0
      %v2245 = vmax.f32 %v1611, 0.0
      %v2246 = vmax.f32 %v1613, 0.0
      %v2247 = vmax.f32 %v944, 0.0
      %v2248 = vmax.f32 %v946, 0.0
      %v2249 = vmax.f32 %v1617, 0.0
      %v2250 = vmax.f32 %v1619, 0.0
      %v2251 = vmax.f32 %v948, 0.0
      %v2252 = vmax.f32 %v950, 0.0
      %v2253 = vmax.f32 %v1621, 0.0
      %v2254 = vmax.f32 %v1623, 0.0
      %v2255 = vmax.f32 %v954, 0.0
      %v2256 = vmax.f32 %v956, 0.0
      %v2257 = vmax.f32 %v1627, 0.0
      %v2258 = vmax.f32 %v1629, 0.0
      %v2259 = vmax.f32 %v958, 0.0
      %v2260 = vmax.f32 %v960, 0.0
      %v2261 = vmax.f32 %v1631, 0.0
      %v2262 = vmax.f32 %v1633, 0.0
      %v2263 = vmax.f32 %v964, 0.0
      %v2264 = vmax.f32 %v966, 0.0
      %v2265 = vmax.f32 %v1637, 0.0
      %v2266 = vmax.f32 %v1639, 0.0
      %v2267 = vmax.f32 %v968, 0.0
      %v2268 = vmax.f32 %v970, 0.0
      %v2269 = vmax.f32 %v1641, 0.0
      %v2270 = vmax.f32 %v1643, 0.0
      %v2271 = vmax.f32 %v974, 0.0
      %v2272 = vmax.f32 %v976, 0.0
      %v2273 = vmax.f32 %v1647, 0.0
      %v2274 = vmax.f32 %v1649, 0.0
      %v2275 = vmax.f32 %v978, 0.0
      %v2276 = vmax.f32 %v980, 0.0
      %v2277 = vmax.f32 %v1651, 0.0
      %v2278 = vmax.f32 %v1653, 0.0
      %v2279 = vmax.f32 %v984, 0.0
      %v2280 = vmax.f32 %v986, 0.0
      %v2281 = vmax.f32 %v1657, 0.0
      %v2282 = vmax.f32 %v1659, 0.0
      %v2283 = vmax.f32 %v988, 0.0
      %v2284 = vmax.f32 %v990, 0.0
      %v2285 = vmax.f32 %v1661, 0.0
      %v2286 = vmax.f32 %v1663, 0.0
      %v2287 = vmax.f32 %v994, 0.0
      %v2288 = vmax.f32 %v996, 0.0
      %v2289 = vmax.f32 %v1667, 0.0
      %v2290 = vmax.f32 %v1669, 0.0
      %v2291 = vmax.f32 %v998, 0.0
      %v2292 = vmax.f32 %v1000, 0.0
      %v2293 = vmax.f32 %v1671, 0.0
      %v2294 = vmax.f32 %v1673, 0.0
      %v2295 = vmax.f32 %v1004, 0.0
      %v2296 = vmax.f32 %v1006, 0.0
      %v2297 = vmax.f32 %v1677, 0.0
      %v2298 = vmax.f32 %v1679, 0.0
      %v2299 = vmax.f32 %v1008, 0.0
      %v2300 = vmax.f32 %v1010, 0.0
      %v2301 = vmax.f32 %v1681, 0.0
      %v2302 = vmax.f32 %v1683, 0.0
      %v2303 = vmax.f32 %v1014, 0.0
      %v2304 = vmax.f32 %v1016, 0.0
      %v2305 = vmax.f32 %v1687, 0.0
      %v2306 = vmax.f32 %v1689, 0.0
      %v2307 = vmax.f32 %v1018, 0.0
      %v2308 = vmax.f32 %v1020, 0.0
      %v2309 = vmax.f32 %v1691, 0.0
      %v2310 = vmax.f32 %v1693, 0.0
      %v2311 = vmax.f32 %v1024, 0.0
      %v2312 = vmax.f32 %v1026, 0.0
      %v2313 = vmax.f32 %v1697, 0.0
      %v2314 = vmax.f32 %v1699, 0.0
      %v2315 = vmax.f32 %v1028, 0.0
      %v2316 = vmax.f32 %v1030, 0.0
      %v2317 = vmax.f32 %v1701, 0.0
      %v2318 = vmax.f32 %v1703, 0.0
      %v2319 = vmax.f32 %v1034, 0.0
      %v2320 = vmax.f32 %v1036, 0.0
      %v2321 = vmax.f32 %v1707, 0.0
      %v2322 = vmax.f32 %v1709, 0.0
      %v2323 = vmax.f32 %v1038, 0.0
      %v2324 = vmax.f32 %v1040, 0.0
      %v2325 = vmax.f32 %v1711, 0.0
      %v2326 = vmax.f32 %v1713, 0.0
      %v2327 = vmax.f32 %v1044, 0.0
      %v2328 = vmax.f32 %v1046, 0.0
      %v2329 = vmax.f32 %v1717, 0.0
      %v2330 = vmax.f32 %v1719, 0.0
      %v2331 = vmax.f32 %v1048, 0.0
      %v2332 = vmax.f32 %v1050, 0.0
      %v2333 = vmax.f32 %v1721, 0.0
      %v2334 = vmax.f32 %v1723, 0.0
      %v2335 = vmax.f32 %v1054, 0.0
      %v2336 = vmax.f32 %v1056, 0.0
      %v2337 = vmax.f32 %v1727, 0.0
      %v2338 = vmax.f32 %v1729, 0.0
      %v2339 = vmax.f32 %v1058, 0.0
      %v2340 = vmax.f32 %v1060, 0.0
      %v2341 = vmax.f32 %v1731, 0.0
      %v2342 = vmax.f32 %v1733, 0.0
      %v2343 = vmax.f32 %v1064, 0.0
      %v2344 = vmax.f32 %v1066, 0.0
      %v2345 = vmax.f32 %v1737, 0.0
      %v2346 = vmax.f32 %v1739, 0.0
      %v2347 = vmax.f32 %v1068, 0.0
      %v2348 = vmax.f32 %v1070, 0.0
      %v2349 = vmax.f32 %v1741, 0.0
      %v2350 = vmax.f32 %v1743, 0.0
      %v2351 = vmax.f32 %v1074, 0.0
      %v2352 = vmax.f32 %v1076, 0.0
      %v2353 = vmax.f32 %v1747, 0.0
      %v2354 = vmax.f32 %v1749, 0.0
      %v2355 = vmax.f32 %v1078, 0.0
      %v2356 = vmax.f32 %v1080, 0.0
      %v2357 = vmax.f32 %v1751, 0.0
      %v2358 = vmax.f32 %v1753, 0.0
      %v2359 = vmax.f32 %v1084, 0.0
      %v2360 = vmax.f32 %v1086, 0.0
      %v2361 = vmax.f32 %v1757, 0.0
      %v2362 = vmax.f32 %v1759, 0.0
      %v2363 = vmax.f32 %v1088, 0.0
      %v2364 = vmax.f32 %v1090, 0.0
      %v2365 = vmax.f32 %v1761, 0.0
      %v2366 = vmax.f32 %v1763, 0.0
      %v2367 = vmax.f32 %v1094, 0.0
      %v2368 = vmax.f32 %v1096, 0.0
      %v2369 = vmax.f32 %v1767, 0.0
      %v2370 = vmax.f32 %v1769, 0.0
      %v2371 = vmax.f32 %v1098, 0.0
      %v2372 = vmax.f32 %v1100, 0.0
      %v2373 = vmax.f32 %v1771, 0.0
      %v2374 = vmax.f32 %v1773, 0.0
      %v2375 = vmax.f32 %v1104, 0.0
      %v2376 = vmax.f32 %v1106, 0.0
      %v2377 = vmax.f32 %v1777, 0.0
      %v2378 = vmax.f32 %v1779, 0.0
      %v2379 = vmax.f32 %v1108, 0.0
      %v2380 = vmax.f32 %v1110, 0.0
      %v2381 = vmax.f32 %v1781, 0.0
      %v2382 = vmax.f32 %v1783, 0.0
      %v2383 = vmax.f32 %v1114, 0.0
      %v2384 = vmax.f32 %v1116, 0.0
      %v2385 = vmax.f32 %v1787, 0.0
      %v2386 = vmax.f32 %v1789, 0.0
      %v2387 = vmax.f32 %v1118, 0.0
      %v2388 = vmax.f32 %v1120, 0.0
      %v2389 = vmax.f32 %v1791, 0.0
      %v2390 = vmax.f32 %v1793, 0.0
      %v2391 = vmax.f32 %v1124, 0.0
      %v2392 = vmax.f32 %v1126, 0.0
      %v2393 = vmax.f32 %v1797, 0.0
      %v2394 = vmax.f32 %v1799, 0.0
      %v2395 = vmax.f32 %v1128, 0.0
      %v2396 = vmax.f32 %v1130, 0.0
      %v2397 = vmax.f32 %v1801, 0.0
      %v2398 = vmax.f32 %v1803, 0.0
      %v2399 = vmax.f32 %v1134, 0.0
      %v2400 = vmax.f32 %v1136, 0.0
      %v2401 = vmax.f32 %v1807, 0.0
      %v2402 = vmax.f32 %v1809, 0.0
      %v2403 = vmax.f32 %v1138, 0.0
      %v2404 = vmax.f32 %v1140, 0.0
      %v2405 = vmax.f32 %v1811, 0.0
      %v2406 = vmax.f32 %v1813, 0.0
      %v2407 = vmax.f32 %v1144, 0.0
      %v2408 = vmax.f32 %v1146, 0.0
      %v2409 = vmax.f32 %v1817, 0.0
      %v2410 = vmax.f32 %v1819, 0.0
      %v2411 = vmax.f32 %v1148, 0.0
      %v2412 = vmax.f32 %v1150, 0.0
      %v2413 = vmax.f32 %v1821, 0.0
      %v2414 = vmax.f32 %v1823, 0.0
      %v2415 = vmax.f32 %v1154, 0.0
      %v2416 = vmax.f32 %v1156, 0.0
      %v2417 = vmax.f32 %v1827, 0.0
      %v2418 = vmax.f32 %v1829, 0.0
      %v2419 = vmax.f32 %v1158, 0.0
      %v2420 = vmax.f32 %v1160, 0.0
      %v2421 = vmax.f32 %v1831, 0.0
      %v2422 = vmax.f32 %v1833, 0.0
      %v2423 = vmax.f32 %v1164, 0.0
      %v2424 = vmax.f32 %v1166, 0.0
      %v2425 = vmax.f32 %v1837, 0.0
      %v2426 = vmax.f32 %v1839, 0.0
      %v2427 = vmax.f32 %v1168, 0.0
      %v2428 = vmax.f32 %v1170, 0.0
      %v2429 = vmax.f32 %v1841, 0.0
      %v2430 = vmax.f32 %v1843, 0.0
      %v2431 = vmax.f32 %v1174, 0.0
      %v2432 = vmax.f32 %v1176, 0.0
      %v2433 = vmax.f32 %v1847, 0.0
      %v2434 = vmax.f32 %v1849, 0.0
      %v2435 = vmax.f32 %v1178, 0.0
      %v2436 = vmax.f32 %v1180, 0.0
      %v2437 = vmax.f32 %v1851, 0.0
      %v2438 = vmax.f32 %v1853, 0.0
      %v2439 = vmax.f32 %v1184, 0.0
      %v2440 = vmax.f32 %v1186, 0.0
      %v2441 = vmax.f32 %v1857, 0.0
      %v2442 = vmax.f32 %v1859, 0.0
      %v2443 = vmax.f32 %v1188, 0.0
      %v2444 = vmax.f32 %v1190, 0.0
      %v2445 = vmax.f32 %v1861, 0.0
      %v2446 = vmax.f32 %v1863, 0.0
      %v2447 = vmax.f32 %v1194, 0.0
      %v2448 = vmax.f32 %v1196, 0.0
      %v2449 = vmax.f32 %v1867, 0.0
      %v2450 = vmax.f32 %v1869, 0.0
      %v2451 = vmax.f32 %v1198, 0.0
      %v2452 = vmax.f32 %v1200, 0.0
      %v2453 = vmax.f32 %v1871, 0.0
      %v2454 = vmax.f32 %v1873, 0.0
      %v2455 = vmax.f32 %v1204, 0.0
      %v2456 = vmax.f32 %v1206, 0.0
      %v2457 = vmax.f32 %v1877, 0.0
      %v2458 = vmax.f32 %v1879, 0.0
      %v2459 = vmax.f32 %v1208, 0.0
      %v2460 = vmax.f32 %v1210, 0.0
      %v2461 = vmax.f32 %v1881, 0.0
      %v2462 = vmax.f32 %v1883, 0.0
      %v2463 = vmax.f32 %v1214, 0.0
      %v2464 = vmax.f32 %v1216, 0.0
      %v2465 = vmax.f32 %v1887, 0.0
      %v2466 = vmax.f32 %v1889, 0.0
      %v2467 = vmax.f32 %v1218, 0.0
      %v2468 = vmax.f32 %v1220, 0.0
      %v2469 = vmax.f32 %v1891, 0.0
      %v2470 = vmax.f32 %v1893, 0.0
      %v2471 = vmax.f32 %v1224, 0.0
      %v2472 = vmax.f32 %v1226, 0.0
      %v2473 = vmax.f32 %v1897, 0.0
      %v2474 = vmax.f32 %v1899, 0.0
      %v2475 = vmax.f32 %v1228, 0.0
      %v2476 = vmax.f32 %v1230, 0.0
      %v2477 = vmax.f32 %v1901, 0.0
      %v2478 = vmax.f32 %v1903, 0.0
      %v2479 = vmax.f32 %v1234, 0.0
      %v2480 = vmax.f32 %v1236, 0.0
      %v2481 = vmax.f32 %v1907, 0.0
      %v2482 = vmax.f32 %v1909, 0.0
      %v2483 = vmax.f32 %v1238, 0.0
      %v2484 = vmax.f32 %v1240, 0.0
      %v2485 = vmax.f32 %v1911, 0.0
      %v2486 = vmax.f32 %v1913, 0.0
      %v2487 = vmax.f32 %v1244, 0.0
      %v2488 = vmax.f32 %v1246, 0.0
      %v2489 = vmax.f32 %v1917, 0.0
      %v2490 = vmax.f32 %v1919, 0.0
      %v2491 = vmax.f32 %v1248, 0.0
      %v2492 = vmax.f32 %v1250, 0.0
      %v2493 = vmax.f32 %v1921, 0.0
      %v2494 = vmax.f32 %v1923, 0.0
      %v2495 = vmax.f32 %v1254, 0.0
      %v2496 = vmax.f32 %v1256, 0.0
      %v2497 = vmax.f32 %v1927, 0.0
      %v2498 = vmax.f32 %v1929, 0.0
      %v2499 = vmax.f32 %v1258, 0.0
      %v2500 = vmax.f32 %v1260, 0.0
      %v2501 = vmax.f32 %v1931, 0.0
      %v2502 = vmax.f32 %v1933, 0.0
      %v2503 = vmax.f32 %v1264, 0.0
      %v2504 = vmax.f32 %v1266, 0.0
      %v2505 = vmax.f32 %v1937, 0.0
      %v2506 = vmax.f32 %v1939, 0.0
      %v2507 = vmax.f32 %v1268, 0.0
      %v2508 = vmax.f32 %v1270, 0.0
      %v2509 = vmax.f32 %v1941, 0.0
      %v2510 = vmax.f32 %v1943, 0.0
      %v2511 = vmax.f32 %v1274, 0.0
      %v2512 = vmax.f32 %v1276, 0.0
      %v2513 = vmax.f32 %v1947, 0.0
      %v2514 = vmax.f32 %v1949, 0.0
      %v2515 = vmax.f32 %v1278, 0.0
      %v2516 = vmax.f32 %v1280, 0.0
      %v2517 = vmax.f32 %v1951, 0.0
      %v2518 = vmax.f32 %v1953, 0.0
      %v2519 = vmax.f32 %v1284, 0.0
      %v2520 = vmax.f32 %v1286, 0.0
      %v2521 = vmax.f32 %v1957, 0.0
      %v2522 = vmax.f32 %v1959, 0.0
      %v2523 = vmax.f32 %v1288, 0.0
      %v2524 = vmax.f32 %v1290, 0.0
      %v2525 = vmax.f32 %v1961, 0.0
      %v2526 = vmax.f32 %v1963, 0.0
      %v2527 = vmax.f32 %v1294, 0.0
      %v2528 = vmax.f32 %v1296, 0.0
      %v2529 = vmax.f32 %v1967, 0.0
      %v2530 = vmax.f32 %v1969, 0.0
      %v2531 = vmax.f32 %v1298, 0.0
      %v2532 = vmax.f32 %v1300, 0.0
      %v2533 = vmax.f32 %v1971, 0.0
      %v2534 = vmax.f32 %v1973, 0.0
      %v2535 = vmax.f32 %v1304, 0.0
      %v2536 = vmax.f32 %v1306, 0.0
      %v2537 = vmax.f32 %v1977, 0.0
      %v2538 = vmax.f32 %v1979, 0.0
      %v2539 = vmax.f32 %v1308, 0.0
      %v2540 = vmax.f32 %v1310, 0.0
      %v2541 = vmax.f32 %v1981, 0.0
      %v2542 = vmax.f32 %v1983, 0.0
      %v2543 = vmax.f32 %v1314, 0.0
      %v2544 = vmax.f32 %v1316, 0.0
      %v2545 = vmax.f32 %v1987, 0.0
      %v2546 = vmax.f32 %v1989, 0.0
      %v2547 = vmax.f32 %v1318, 0.0
      %v2548 = vmax.f32 %v1320, 0.0
      %v2549 = vmax.f32 %v1991, 0.0
      %v2550 = vmax.f32 %v1993, 0.0
      %v2551 = vmax.f32 %v1324, 0.0
      %v2552 = vmax.f32 %v1326, 0.0
      %v2553 = vmax.f32 %v1997, 0.0
      %v2554 = vmax.f32 %v1999, 0.0
      %v2555 = vmax.f32 %v1328, 0.0
      %v2556 = vmax.f32 %v1330, 0.0
      %v2557 = vmax.f32 %v2001, 0.0
      %v2558 = vmax.f32 %v2003, 0.0
      %v2559 = vmax.f32 %v1334, 0.0
      %v2560 = vmax.f32 %v1336, 0.0
      %v2561 = vmax.f32 %v2007, 0.0
      %v2562 = vmax.f32 %v2009, 0.0
      %v2563 = vmax.f32 %v1338, 0.0
      %v2564 = vmax.f32 %v1340, 0.0
      %v2565 = vmax.f32 %v2011, 0.0
      %v2566 = vmax.f32 %v2013, 0.0
      %v2567 = vmax.f32 %v1344, 0.0
      %v2568 = vmax.f32 %v1346, 0.0
      %v2569 = vmax.f32 %v2017, 0.0
      %v2570 = vmax.f32 %v2019, 0.0
      %v2571 = vmax.f32 %v1348, 0.0
      %v2572 = vmax.f32 %v1350, 0.0
      %v2573 = vmax.f32 %v2021, 0.0
      %v2574 = vmax.f32 %v2023, 0.0
      %v2575 = vmax.f32 %v1354, 0.0
      %v2576 = vmax.f32 %v1356, 0.0
      %v2577 = vmax.f32 %v2027, 0.0
      %v2578 = vmax.f32 %v2029, 0.0
      %v2579 = vmax.f32 %v1358, 0.0
      %v2580 = vmax.f32 %v1360, 0.0
      %v2581 = vmax.f32 %v2031, 0.0
      %v2582 = vmax.f32 %v2033, 0.0
      %v2583 = vmax.f32 %v1364, 0.0
      %v2584 = vmax.f32 %v1366, 0.0
      %v2585 = vmax.f32 %v2037, 0.0
      %v2586 = vmax.f32 %v2039, 0.0
      %v2587 = vmax.f32 %v1368, 0.0
      %v2588 = vmax.f32 %v1370, 0.0
      %v2589 = vmax.f32 %v2041, 0.0
      %v2590 = vmax.f32 %v2043, 0.0
      %v2591 = vmax.f32 %v1374, 0.0
      %v2592 = vmax.f32 %v1376, 0.0
      %v2593 = vmax.f32 %v2047, 0.0
      %v2594 = vmax.f32 %v2049, 0.0
      %v2595 = vmax.f32 %v1378, 0.0
      %v2596 = vmax.f32 %v1380, 0.0
      %v2597 = vmax.f32 %v2051, 0.0
      %v2598 = vmax.f32 %v2053, 0.0
      %v2599 = vmax.f32 %v1384, 0.0
      %v2600 = vmax.f32 %v1386, 0.0
      %v2601 = vmax.f32 %v2057, 0.0
      %v2602 = vmax.f32 %v2059, 0.0
      %v2603 = vmax.f32 %v1388, 0.0
      %v2604 = vmax.f32 %v1390, 0.0
      %v2605 = vmax.f32 %v2061, 0.0
      %v2606 = vmax.f32 %v2063, 0.0
      %v2607 = vmax.f32 %v1394, 0.0
      %v2608 = vmax.f32 %v1396, 0.0
      %v2609 = vmax.f32 %v2067, 0.0
      %v2610 = vmax.f32 %v2069, 0.0
      %v2611 = vmax.f32 %v1398, 0.0
      %v2612 = vmax.f32 %v1400, 0.0
      %v2613 = vmax.f32 %v2071, 0.0
      %v2614 = vmax.f32 %v2073, 0.0
      %v2615 = vmax.f32 %v1404, 0.0
      %v2616 = vmax.f32 %v1406, 0.0
      %v2617 = vmax.f32 %v2077, 0.0
      %v2618 = vmax.f32 %v2079, 0.0
      %v2619 = vmax.f32 %v1408, 0.0
      %v2620 = vmax.f32 %v1410, 0.0
      %v2621 = vmax.f32 %v2081, 0.0
      %v2622 = vmax.f32 %v2083, 0.0
      %v2623 = vmax.f32 %v1414, 0.0
      %v2624 = vmax.f32 %v1416, 0.0
      %v2625 = vmax.f32 %v2087, 0.0
      %v2626 = vmax.f32 %v2089, 0.0
      %v2627 = vmax.f32 %v1418, 0.0
      %v2628 = vmax.f32 %v1420, 0.0
      %v2629 = vmax.f32 %v2091, 0.0
      %v2630 = vmax.f32 %v2093, 0.0
      %v2631 = vmax.f32 %v1424, 0.0
      %v2632 = vmax.f32 %v1426, 0.0
      %v2633 = vmax.f32 %v2097, 0.0
      %v2634 = vmax.f32 %v2099, 0.0
      %v2635 = vmax.f32 %v1428, 0.0
      %v2636 = vmax.f32 %v1430, 0.0
      %v2637 = vmax.f32 %v2101, 0.0
      %v2638 = vmax.f32 %v2103, 0.0
      %v2639 = vmax.f32 %v1434, 0.0
      %v2640 = vmax.f32 %v1436, 0.0
      %v2641 = vmax.f32 %v2107, 0.0
      %v2642 = vmax.f32 %v2109, 0.0
      %v2643 = vmax.f32 %v1438, 0.0
      %v2644 = vmax.f32 %v1440, 0.0
      %v2645 = vmax.f32 %v2111, 0.0
      %v2646 = vmax.f32 %v2113, 0.0
      %v2647 = vmax.f32 %v1444, 0.0
      %v2648 = vmax.f32 %v1446, 0.0
      %v2649 = vmax.f32 %v2117, 0.0
      %v2650 = vmax.f32 %v2119, 0.0
      %v2651 = vmax.f32 %v1448, 0.0
      %v2652 = vmax.f32 %v1450, 0.0
      %v2653 = vmax.f32 %v2121, 0.0
      %v2654 = vmax.f32 %v2123, 0.0
      %v2655 = vmax.f32 %v1454, 0.0
      %v2656 = vmax.f32 %v1456, 0.0
      %v2657 = vmax.f32 %v2127, 0.0
      %v2658 = vmax.f32 %v2129, 0.0
      %v2659 = vmax.f32 %v1458, 0.0
      %v2660 = vmax.f32 %v1460, 0.0
      %v2661 = vmax.f32 %v2131, 0.0
      %v2662 = vmax.f32 %v2133, 0.0
      %v2663 = vmax.f32 %v1464, 0.0
      %v2664 = vmax.f32 %v1466, 0.0
      %v2665 = vmax.f32 %v2137, 0.0
      %v2666 = vmax.f32 %v2139, 0.0
      %v2667 = vmax.f32 %v1468, 0.0
      %v2668 = vmax.f32 %v1470, 0.0
      %v2669 = vmax.f32 %v2141, 0.0
      %v2670 = vmax.f32 %v2143, 0.0
      %v2671 = vmax.f32 %v1474, 0.0
      %v2672 = vmax.f32 %v1476, 0.0
      %v2673 = vmax.f32 %v2147, 0.0
      %v2674 = vmax.f32 %v2149, 0.0
      %v2675 = vmax.f32 %v1478, 0.0
      %v2676 = vmax.f32 %v1480, 0.0
      %v2677 = vmax.f32 %v2151, 0.0
      %v2678 = vmax.f32 %v2153, 0.0
      %v2679 = vmax.f32 %v1484, 0.0
      %v2680 = vmax.f32 %v1486, 0.0
      %v2681 = vmax.f32 %v2157, 0.0
      %v2682 = vmax.f32 %v2159, 0.0
      %v2683 = vmax.f32 %v1488, 0.0
      %v2684 = vmax.f32 %v1490, 0.0
      %v2685 = vmax.f32 %v2161, 0.0
      %v2686 = vmax.f32 %v2163, 0.0
      %v2687 = vmax.f32 %v1494, 0.0
      %v2688 = vmax.f32 %v1496, 0.0
      %v2689 = vmax.f32 %v2167, 0.0
      %v2690 = vmax.f32 %v2169, 0.0
      %v2691 = vmax.f32 %v1498, 0.0
      %v2692 = vmax.f32 %v1500, 0.0
      %v2693 = vmax.f32 %v2171, 0.0
      %v2694 = vmax.f32 %v2173, 0.0
      %v2695 = vmax.f32 %v1504, 0.0
      %v2696 = vmax.f32 %v1506, 0.0
      %v2697 = vmax.f32 %v2177, 0.0
      %v2698 = vmax.f32 %v2179, 0.0
      %v2699 = vmax.f32 %v1508, 0.0
      %v2700 = vmax.f32 %v1510, 0.0
      %v2701 = vmax.f32 %v2181, 0.0
      %v2702 = vmax.f32 %v2183, 0.0
      %v2703 = vmax.f32 %v1514, 0.0
      %v2704 = vmax.f32 %v1516, 0.0
      %v2705 = vmax.f32 %v2187, 0.0
      %v2706 = vmax.f32 %v2189, 0.0
      %v2707 = vmax.f32 %v1518, 0.0
      %v2708 = vmax.f32 %v1520, 0.0
      %v2709 = vmax.f32 %v2191, 0.0
      %v2710 = vmax.f32 %v2193, 0.0
      %v2711 = vmax.f32 %v1524, 0.0
      %v2712 = vmax.f32 %v1526, 0.0
      %v2713 = vmax.f32 %v2197, 0.0
      %v2714 = vmax.f32 %v2199, 0.0
      %v2715 = vmax.f32 %v1528, 0.0
      %v2716 = vmax.f32 %v1530, 0.0
      %v2717 = vmax.f32 %v2201, 0.0
      %v2718 = vmax.f32 %v2203, 0.0
      %v2719 = vmax.f32 %v1534, 0.0
      %v2720 = vmax.f32 %v1536, 0.0
      %v2721 = vmax.f32 %v2207, 0.0
      %v2722 = vmax.f32 %v2209, 0.0
      %v2723 = vmax.f32 %v1538, 0.0
      %v2724 = vmax.f32 %v1540, 0.0
      %v2725 = vmax.f32 %v2211, 0.0
      %v2726 = vmax.f32 %v2213, 0.0
      %v2727 = vadd.f32 %v2215, %v2219
      %v2728 = vadd.f32 %v2727, %v2223
      %v2729 = vadd.f32 %v2728, %v2227
      %v2730 = vadd.f32 %v2729, %v2231
      %v2731 = vadd.f32 %v2730, %v2235
      %v2732 = vadd.f32 %v2731, %v2239
      %v2733 = vadd.f32 %v2732, %v2243
      %v2734 = vadd.f32 %v2733, %v2247
      %v2735 = vadd.f32 %v2734, %v2251
      %v2736 = vadd.f32 %v2735, %v2255
      %v2737 = vadd.f32 %v2736, %v2259
      %v2738 = vadd.f32 %v2737, %v2263
      %v2739 = vadd.f32 %v2738, %v2267
      %v2740 = vadd.f32 %v2739, %v2271
      %v2741 = vadd.f32 %v2740, %v2275
      %v2742 = vadd.f32 %v2741, %v2279
      %v2743 = vadd.f32 %v2742, %v2283
      %v2744 = vadd.f32 %v2743, %v2287
      %v2745 = vadd.f32 %v2744, %v2291
      %v2746 = vadd.f32 %v2745, %v2295
      %v2747 = vadd.f32 %v2746, %v2299
      %v2748 = vadd.f32 %v2747, %v2303
      %v2749 = vadd.f32 %v2748, %v2307
      %v2750 = vadd.f32 %v2749, %v2311
      %v2751 = vadd.f32 %v2750, %v2315
      %v2752 = vadd.f32 %v2751, %v2319
      %v2753 = vadd.f32 %v2752, %v2323
      %v2754 = vadd.f32 %v2753, %v2327
      %v2755 = vadd.f32 %v2754, %v2331
      %v2756 = vadd.f32 %v2755, %v2335
      %v2757 = vadd.f32 %v2756, %v2339
      %v2758 = vadd.f32 %v2757, %v2343
      %v2759 = vadd.f32 %v2758, %v2347
      %v2760 = vadd.f32 %v2759, %v2351
      %v2761 = vadd.f32 %v2760, %v2355
      %v2762 = vadd.f32 %v2761, %v2359
      %v2763 = vadd.f32 %v2762, %v2363
      %v2764 = vadd.f32 %v2763, %v2367
      %v2765 = vadd.f32 %v2764, %v2371
      %v2766 = vadd.f32 %v2765, %v2375
      %v2767 = vadd.f32 %v2766, %v2379
      %v2768 = vadd.f32 %v2767, %v2383
      %v2769 = vadd.f32 %v2768, %v2387
      %v2770 = vadd.f32 %v2769, %v2391
      %v2771 = vadd.f32 %v2770, %v2395
      %v2772 = vadd.f32 %v2771, %v2399
      %v2773 = vadd.f32 %v2772, %v2403
      %v2774 = vadd.f32 %v2773, %v2407
      %v2775 = vadd.f32 %v2774, %v2411
      %v2776 = vadd.f32 %v2775, %v2415
      %v2777 = vadd.f32 %v2776, %v2419
      %v2778 = vadd.f32 %v2777, %v2423
      %v2779 = vadd.f32 %v2778, %v2427
      %v2780 = vadd.f32 %v2779, %v2431
      %v2781 = vadd.f32 %v2780, %v2435
      %v2782 = vadd.f32 %v2781, %v2439
      %v2783 = vadd.f32 %v2782, %v2443
      %v2784 = vadd.f32 %v2783, %v2447
      %v2785 = vadd.f32 %v2784, %v2451
      %v2786 = vadd.f32 %v2785, %v2455
      %v2787 = vadd.f32 %v2786, %v2459
      %v2788 = vadd.f32 %v2787, %v2463
      %v2789 = vadd.f32 %v2788, %v2467
      %v2790 = vadd.f32 %v2789, %v2471
      %v2791 = vadd.f32 %v2790, %v2475
      %v2792 = vadd.f32 %v2791, %v2479
      %v2793 = vadd.f32 %v2792, %v2483
      %v2794 = vadd.f32 %v2793, %v2487
      %v2795 = vadd.f32 %v2794, %v2491
      %v2796 = vadd.f32 %v2795, %v2495
      %v2797 = vadd.f32 %v2796, %v2499
      %v2798 = vadd.f32 %v2797, %v2503
      %v2799 = vadd.f32 %v2798, %v2507
      %v2800 = vadd.f32 %v2799, %v2511
      %v2801 = vadd.f32 %v2800, %v2515
      %v2802 = vadd.f32 %v2801, %v2519
      %v2803 = vadd.f32 %v2802, %v2523
      %v2804 = vadd.f32 %v2803, %v2527
      %v2805 = vadd.f32 %v2804, %v2531
      %v2806 = vadd.f32 %v2805, %v2535
      %v2807 = vadd.f32 %v2806, %v2539
      %v2808 = vadd.f32 %v2807, %v2543
      %v2809 = vadd.f32 %v2808, %v2547
      %v2810 = vadd.f32 %v2809, %v2551
      %v2811 = vadd.f32 %v2810, %v2555
      %v2812 = vadd.f32 %v2811, %v2559
      %v2813 = vadd.f32 %v2812, %v2563
      %v2814 = vadd.f32 %v2813, %v2567
      %v2815 = vadd.f32 %v2814, %v2571
      %v2816 = vadd.f32 %v2815, %v2575
      %v2817 = vadd.f32 %v2816, %v2579
      %v2818 = vadd.f32 %v2817, %v2583
      %v2819 = vadd.f32 %v2818, %v2587
      %v2820 = vadd.f32 %v2819, %v2591
      %v2821 = vadd.f32 %v2820, %v2595
      %v2822 = vadd.f32 %v2821, %v2599
      %v2823 = vadd.f32 %v2822, %v2603
      %v2824 = vadd.f32 %v2823, %v2607
      %v2825 = vadd.f32 %v2824, %v2611
      %v2826 = vadd.f32 %v2825, %v2615
      %v2827 = vadd.f32 %v2826, %v2619
      %v2828 = vadd.f32 %v2827, %v2623
      %v2829 = vadd.f32 %v2828, %v2627
      %v2830 = vadd.f32 %v2829, %v2631
      %v2831 = vadd.f32 %v2830, %v2635
      %v2832 = vadd.f32 %v2831, %v2639
      %v2833 = vadd.f32 %v2832, %v2643
      %v2834 = vadd.f32 %v2833, %v2647
      %v2835 = vadd.f32 %v2834, %v2651
      %v2836 = vadd.f32 %v2835, %v2655
      %v2837 = vadd.f32 %v2836, %v2659
      %v2838 = vadd.f32 %v2837, %v2663
      %v2839 = vadd.f32 %v2838, %v2667
      %v2840 = vadd.f32 %v2839, %v2671
      %v2841 = vadd.f32 %v2840, %v2675
      %v2842 = vadd.f32 %v2841, %v2679
      %v2843 = vadd.f32 %v2842, %v2683
      %v2844 = vadd.f32 %v2843, %v2687
      %v2845 = vadd.f32 %v2844, %v2691
      %v2846 = vadd.f32 %v2845, %v2695
      %v2847 = vadd.f32 %v2846, %v2699
      %v2848 = vadd.f32 %v2847, %v2703
      %v2849 = vadd.f32 %v2848, %v2707
      %v2850 = vadd.f32 %v2849, %v2711
      %v2851 = vadd.f32 %v2850, %v2715
      %v2852 = vadd.f32 %v2851, %v2719
      %v2853 = vadd.f32 %v2852, %v2723
      %v2854 = vrot.slane %v2853, 4
      %v2855 = vadd.f32 %v2853, %v2854
      %v2856 = vrot.slane %v2855, 2
      %v2857 = vadd.f32 %v2855, %v2856
      %v2858 = vrot.slane %v2857, 1
      %v2859 = vadd.f32 %v2857, %v2858
      %v2860 = vadd.f32 %v2216, %v2220
      %v2861 = vadd.f32 %v2860, %v2224
      %v2862 = vadd.f32 %v2861, %v2228
      %v2863 = vadd.f32 %v2862, %v2232
      %v2864 = vadd.f32 %v2863, %v2236
      %v2865 = vadd.f32 %v2864, %v2240
      %v2866 = vadd.f32 %v2865, %v2244
      %v2867 = vadd.f32 %v2866, %v2248
      %v2868 = vadd.f32 %v2867, %v2252
      %v2869 = vadd.f32 %v2868, %v2256
      %v2870 = vadd.f32 %v2869, %v2260
      %v2871 = vadd.f32 %v2870, %v2264
      %v2872 = vadd.f32 %v2871, %v2268
      %v2873 = vadd.f32 %v2872, %v2272
      %v2874 = vadd.f32 %v2873, %v2276
      %v2875 = vadd.f32 %v2874, %v2280
      %v2876 = vadd.f32 %v2875, %v2284
      %v2877 = vadd.f32 %v2876, %v2288
      %v2878 = vadd.f32 %v2877, %v2292
      %v2879 = vadd.f32 %v2878, %v2296
      %v2880 = vadd.f32 %v2879, %v2300
      %v2881 = vadd.f32 %v2880, %v2304
      %v2882 = vadd.f32 %v2881, %v2308
      %v2883 = vadd.f32 %v2882, %v2312
      %v2884 = vadd.f32 %v2883, %v2316
      %v2885 = vadd.f32 %v2884, %v2320
      %v2886 = vadd.f32 %v2885, %v2324
      %v2887 = vadd.f32 %v2886, %v2328
      %v2888 = vadd.f32 %v2887, %v2332
      %v2889 = vadd.f32 %v2888, %v2336
      %v2890 = vadd.f32 %v2889, %v2340
      %v2891 = vadd.f32 %v2890, %v2344
      %v2892 = vadd.f32 %v2891, %v2348
      %v2893 = vadd.f32 %v2892, %v2352
      %v2894 = vadd.f32 %v2893, %v2356
      %v2895 = vadd.f32 %v2894, %v2360
      %v2896 = vadd.f32 %v2895, %v2364
      %v2897 = vadd.f32 %v2896, %v2368
      %v2898 = vadd.f32 %v2897, %v2372
      %v2899 = vadd.f32 %v2898, %v2376
      %v2900 = vadd.f32 %v2899, %v2380
      %v2901 = vadd.f32 %v2900, %v2384
      %v2902 = vadd.f32 %v2901, %v2388
      %v2903 = vadd.f32 %v2902, %v2392
      %v2904 = vadd.f32 %v2903, %v2396
      %v2905 = vadd.f32 %v2904, %v2400
      %v2906 = vadd.f32 %v2905, %v2404
      %v2907 = vadd.f32 %v2906, %v2408
      %v2908 = vadd.f32 %v2907, %v2412
      %v2909 = vadd.f32 %v2908, %v2416
      %v2910 = vadd.f32 %v2909, %v2420
      %v2911 = vadd.f32 %v2910, %v2424
      %v2912 = vadd.f32 %v2911, %v2428
      %v2913 = vadd.f32 %v2912, %v2432
      %v2914 = vadd.f32 %v2913, %v2436
      %v2915 = vadd.f32 %v2914, %v2440
      %v2916 = vadd.f32 %v2915, %v2444
      %v2917 = vadd.f32 %v2916, %v2448
      %v2918 = vadd.f32 %v2917, %v2452
      %v2919 = vadd.f32 %v2918, %v2456
      %v2920 = vadd.f32 %v2919, %v2460
      %v2921 = vadd.f32 %v2920, %v2464
      %v2922 = vadd.f32 %v2921, %v2468
      %v2923 = vadd.f32 %v2922, %v2472
      %v2924 = vadd.f32 %v2923, %v2476
      %v2925 = vadd.f32 %v2924, %v2480
      %v2926 = vadd.f32 %v2925, %v2484
      %v2927 = vadd.f32 %v2926, %v2488
      %v2928 = vadd.f32 %v2927, %v2492
      %v2929 = vadd.f32 %v2928, %v2496
      %v2930 = vadd.f32 %v2929, %v2500
      %v2931 = vadd.f32 %v2930, %v2504
      %v2932 = vadd.f32 %v2931, %v2508
      %v2933 = vadd.f32 %v2932, %v2512
      %v2934 = vadd.f32 %v2933, %v2516
      %v2935 = vadd.f32 %v2934, %v2520
      %v2936 = vadd.f32 %v2935, %v2524
      %v2937 = vadd.f32 %v2936, %v2528
      %v2938 = vadd.f32 %v2937, %v2532
      %v2939 = vadd.f32 %v2938, %v2536
      %v2940 = vadd.f32 %v2939, %v2540
      %v2941 = vadd.f32 %v2940, %v2544
      %v2942 = vadd.f32 %v2941, %v2548
      %v2943 = vadd.f32 %v2942, %v2552
      %v2944 = vadd.f32 %v2943, %v2556
      %v2945 = vadd.f32 %v2944, %v2560
      %v2946 = vadd.f32 %v2945, %v2564
      %v2947 = vadd.f32 %v2946, %v2568
      %v2948 = vadd.f32 %v2947, %v2572
      %v2949 = vadd.f32 %v2948, %v2576
      %v2950 = vadd.f32 %v2949, %v2580
      %v2951 = vadd.f32 %v2950, %v2584
      %v2952 = vadd.f32 %v2951, %v2588
      %v2953 = vadd.f32 %v2952, %v2592
      %v2954 = vadd.f32 %v2953, %v2596
      %v2955 = vadd.f32 %v2954, %v2600
      %v2956 = vadd.f32 %v2955, %v2604
      %v2957 = vadd.f32 %v2956, %v2608
      %v2958 = vadd.f32 %v2957, %v2612
      %v2959 = vadd.f32 %v2958, %v2616
      %v2960 = vadd.f32 %v2959, %v2620
      %v2961 = vadd.f32 %v2960, %v2624
      %v2962 = vadd.f32 %v2961, %v2628
      %v2963 = vadd.f32 %v2962, %v2632
      %v2964 = vadd.f32 %v2963, %v2636
      %v2965 = vadd.f32 %v2964, %v2640
      %v2966 = vadd.f32 %v2965, %v2644
      %v2967 = vadd.f32 %v2966, %v2648
      %v2968 = vadd.f32 %v2967, %v2652
      %v2969 = vadd.f32 %v2968, %v2656
      %v2970 = vadd.f32 %v2969, %v2660
      %v2971 = vadd.f32 %v2970, %v2664
      %v2972 = vadd.f32 %v2971, %v2668
      %v2973 = vadd.f32 %v2972, %v2672
      %v2974 = vadd.f32 %v2973, %v2676
      %v2975 = vadd.f32 %v2974, %v2680
      %v2976 = vadd.f32 %v2975, %v2684
      %v2977 = vadd.f32 %v2976, %v2688
      %v2978 = vadd.f32 %v2977, %v2692
      %v2979 = vadd.f32 %v2978, %v2696
      %v2980 = vadd.f32 %v2979, %v2700
      %v2981 = vadd.f32 %v2980, %v2704
      %v2982 = vadd.f32 %v2981, %v2708
      %v2983 = vadd.f32 %v2982, %v2712
      %v2984 = vadd.f32 %v2983, %v2716
      %v2985 = vadd.f32 %v2984, %v2720
      %v2986 = vadd.f32 %v2985, %v2724
      %v2987 = vrot.slane %v2986, 4
      %v2988 = vadd.f32 %v2986, %v2987
      %v2989 = vrot.slane %v2988, 2
      %v2990 = vadd.f32 %v2988, %v2989
      %v2991 = vrot.slane %v2990, 1
      %v2992 = vadd.f32 %v2990, %v2991
      %v2993 = vadd.f32 %v2217, %v2221
      %v2994 = vadd.f32 %v2993, %v2225
      %v2995 = vadd.f32 %v2994, %v2229
      %v2996 = vadd.f32 %v2995, %v2233
      %v2997 = vadd.f32 %v2996, %v2237
      %v2998 = vadd.f32 %v2997, %v2241
      %v2999 = vadd.f32 %v2998, %v2245
      %v3000 = vadd.f32 %v2999, %v2249
      %v3001 = vadd.f32 %v3000, %v2253
      %v3002 = vadd.f32 %v3001, %v2257
      %v3003 = vadd.f32 %v3002, %v2261
      %v3004 = vadd.f32 %v3003, %v2265
      %v3005 = vadd.f32 %v3004, %v2269
      %v3006 = vadd.f32 %v3005, %v2273
      %v3007 = vadd.f32 %v3006, %v2277
      %v3008 = vadd.f32 %v3007, %v2281
      %v3009 = vadd.f32 %v3008, %v2285
      %v3010 = vadd.f32 %v3009, %v2289
      %v3011 = vadd.f32 %v3010, %v2293
      %v3012 = vadd.f32 %v3011, %v2297
      %v3013 = vadd.f32 %v3012, %v2301
      %v3014 = vadd.f32 %v3013, %v2305
      %v3015 = vadd.f32 %v3014, %v2309
      %v3016 = vadd.f32 %v3015, %v2313
      %v3017 = vadd.f32 %v3016, %v2317
      %v3018 = vadd.f32 %v3017, %v2321
      %v3019 = vadd.f32 %v3018, %v2325
      %v3020 = vadd.f32 %v3019, %v2329
      %v3021 = vadd.f32 %v3020, %v2333
      %v3022 = vadd.f32 %v3021, %v2337
      %v3023 = vadd.f32 %v3022, %v2341
      %v3024 = vadd.f32 %v3023, %v2345
      %v3025 = vadd.f32 %v3024, %v2349
      %v3026 = vadd.f32 %v3025, %v2353
      %v3027 = vadd.f32 %v3026, %v2357
      %v3028 = vadd.f32 %v3027, %v2361
      %v3029 = vadd.f32 %v3028, %v2365
      %v3030 = vadd.f32 %v3029, %v2369
      %v3031 = vadd.f32 %v3030, %v2373
      %v3032 = vadd.f32 %v3031, %v2377
      %v3033 = vadd.f32 %v3032, %v2381
      %v3034 = vadd.f32 %v3033, %v2385
      %v3035 = vadd.f32 %v3034, %v2389
      %v3036 = vadd.f32 %v3035, %v2393
      %v3037 = vadd.f32 %v3036, %v2397
      %v3038 = vadd.f32 %v3037, %v2401
      %v3039 = vadd.f32 %v3038, %v2405
      %v3040 = vadd.f32 %v3039, %v2409
      %v3041 = vadd.f32 %v3040, %v2413
      %v3042 = vadd.f32 %v3041, %v2417
      %v3043 = vadd.f32 %v3042, %v2421
      %v3044 = vadd.f32 %v3043, %v2425
      %v3045 = vadd.f32 %v3044, %v2429
      %v3046 = vadd.f32 %v3045, %v2433
      %v3047 = vadd.f32 %v3046, %v2437
      %v3048 = vadd.f32 %v3047, %v2441
      %v3049 = vadd.f32 %v3048, %v2445
      %v3050 = vadd.f32 %v3049, %v2449
      %v3051 = vadd.f32 %v3050, %v2453
      %v3052 = vadd.f32 %v3051, %v2457
      %v3053 = vadd.f32 %v3052, %v2461
      %v3054 = vadd.f32 %v3053, %v2465
      %v3055 = vadd.f32 %v3054, %v2469
      %v3056 = vadd.f32 %v3055, %v2473
      %v3057 = vadd.f32 %v3056, %v2477
      %v3058 = vadd.f32 %v3057, %v2481
      %v3059 = vadd.f32 %v3058, %v2485
      %v3060 = vadd.f32 %v3059, %v2489
      %v3061 = vadd.f32 %v3060, %v2493
      %v3062 = vadd.f32 %v3061, %v2497
      %v3063 = vadd.f32 %v3062, %v2501
      %v3064 = vadd.f32 %v3063, %v2505
      %v3065 = vadd.f32 %v3064, %v2509
      %v3066 = vadd.f32 %v3065, %v2513
      %v3067 = vadd.f32 %v3066, %v2517
      %v3068 = vadd.f32 %v3067, %v2521
      %v3069 = vadd.f32 %v3068, %v2525
      %v3070 = vadd.f32 %v3069, %v2529
      %v3071 = vadd.f32 %v3070, %v2533
      %v3072 = vadd.f32 %v3071, %v2537
      %v3073 = vadd.f32 %v3072, %v2541
      %v3074 = vadd.f32 %v3073, %v2545
      %v3075 = vadd.f32 %v3074, %v2549
      %v3076 = vadd.f32 %v3075, %v2553
      %v3077 = vadd.f32 %v3076, %v2557
      %v3078 = vadd.f32 %v3077, %v2561
      %v3079 = vadd.f32 %v3078, %v2565
      %v3080 = vadd.f32 %v3079, %v2569
      %v3081 = vadd.f32 %v3080, %v2573
      %v3082 = vadd.f32 %v3081, %v2577
      %v3083 = vadd.f32 %v3082, %v2581
      %v3084 = vadd.f32 %v3083, %v2585
      %v3085 = vadd.f32 %v3084, %v2589
      %v3086 = vadd.f32 %v3085, %v2593
      %v3087 = vadd.f32 %v3086, %v2597
      %v3088 = vadd.f32 %v3087, %v2601
      %v3089 = vadd.f32 %v3088, %v2605
      %v3090 = vadd.f32 %v3089, %v2609
      %v3091 = vadd.f32 %v3090, %v2613
      %v3092 = vadd.f32 %v3091, %v2617
      %v3093 = vadd.f32 %v3092, %v2621
      %v3094 = vadd.f32 %v3093, %v2625
      %v3095 = vadd.f32 %v3094, %v2629
      %v3096 = vadd.f32 %v3095, %v2633
      %v3097 = vadd.f32 %v3096, %v2637
      %v3098 = vadd.f32 %v3097, %v2641
      %v3099 = vadd.f32 %v3098, %v2645
      %v3100 = vadd.f32 %v3099, %v2649
      %v3101 = vadd.f32 %v3100, %v2653
      %v3102 = vadd.f32 %v3101, %v2657
      %v3103 = vadd.f32 %v3102, %v2661
      %v3104 = vadd.f32 %v3103, %v2665
      %v3105 = vadd.f32 %v3104, %v2669
      %v3106 = vadd.f32 %v3105, %v2673
      %v3107 = vadd.f32 %v3106, %v2677
      %v3108 = vadd.f32 %v3107, %v2681
      %v3109 = vadd.f32 %v3108, %v2685
      %v3110 = vadd.f32 %v3109, %v2689
      %v3111 = vadd.f32 %v3110, %v2693
      %v3112 = vadd.f32 %v3111, %v2697
      %v3113 = vadd.f32 %v3112, %v2701
      %v3114 = vadd.f32 %v3113, %v2705
      %v3115 = vadd.f32 %v3114, %v2709
      %v3116 = vadd.f32 %v3115, %v2713
      %v3117 = vadd.f32 %v3116, %v2717
      %v3118 = vadd.f32 %v3117, %v2721
      %v3119 = vadd.f32 %v3118, %v2725
      %v3120 = vrot.slane %v3119, 4
      %v3121 = vadd.f32 %v3119, %v3120
      %v3122 = vrot.slane %v3121, 2
      %v3123 = vadd.f32 %v3121, %v3122
      %v3124 = vrot.slane %v3123, 1
      %v3125 = vadd.f32 %v3123, %v3124
      %v3126 = vadd.f32 %v2218, %v2222
      %v3127 = vadd.f32 %v3126, %v2226
      %v3128 = vadd.f32 %v3127, %v2230
      %v3129 = vadd.f32 %v3128, %v2234
      %v3130 = vadd.f32 %v3129, %v2238
      %v3131 = vadd.f32 %v3130, %v2242
      %v3132 = vadd.f32 %v3131, %v2246
      %v3133 = vadd.f32 %v3132, %v2250
      %v3134 = vadd.f32 %v3133, %v2254
      %v3135 = vadd.f32 %v3134, %v2258
      %v3136 = vadd.f32 %v3135, %v2262
      %v3137 = vadd.f32 %v3136, %v2266
      %v3138 = vadd.f32 %v3137, %v2270
      %v3139 = vadd.f32 %v3138, %v2274
      %v3140 = vadd.f32 %v3139, %v2278
      %v3141 = vadd.f32 %v3140, %v2282
      %v3142 = vadd.f32 %v3141, %v2286
      %v3143 = vadd.f32 %v3142, %v2290
      %v3144 = vadd.f32 %v3143, %v2294
      %v3145 = vadd.f32 %v3144, %v2298
      %v3146 = vadd.f32 %v3145, %v2302
      %v3147 = vadd.f32 %v3146, %v2306
      %v3148 = vadd.f32 %v3147, %v2310
      %v3149 = vadd.f32 %v3148, %v2314
      %v3150 = vadd.f32 %v3149, %v2318
      %v3151 = vadd.f32 %v3150, %v2322
      %v3152 = vadd.f32 %v3151, %v2326
      %v3153 = vadd.f32 %v3152, %v2330
      %v3154 = vadd.f32 %v3153, %v2334
      %v3155 = vadd.f32 %v3154, %v2338
      %v3156 = vadd.f32 %v3155, %v2342
      %v3157 = vadd.f32 %v3156, %v2346
      %v3158 = vadd.f32 %v3157, %v2350
      %v3159 = vadd.f32 %v3158, %v2354
      %v3160 = vadd.f32 %v3159, %v2358
      %v3161 = vadd.f32 %v3160, %v2362
      %v3162 = vadd.f32 %v3161, %v2366
      %v3163 = vadd.f32 %v3162, %v2370
      %v3164 = vadd.f32 %v3163, %v2374
      %v3165 = vadd.f32 %v3164, %v2378
      %v3166 = vadd.f32 %v3165, %v2382
      %v3167 = vadd.f32 %v3166, %v2386
      %v3168 = vadd.f32 %v3167, %v2390
      %v3169 = vadd.f32 %v3168, %v2394
      %v3170 = vadd.f32 %v3169, %v2398
      %v3171 = vadd.f32 %v3170, %v2402
      %v3172 = vadd.f32 %v3171, %v2406
      %v3173 = vadd.f32 %v3172, %v2410
      %v3174 = vadd.f32 %v3173, %v2414
      %v3175 = vadd.f32 %v3174, %v2418
      %v3176 = vadd.f32 %v3175, %v2422
      %v3177 = vadd.f32 %v3176, %v2426
      %v3178 = vadd.f32 %v3177, %v2430
      %v3179 = vadd.f32 %v3178, %v2434
      %v3180 = vadd.f32 %v3179, %v2438
      %v3181 = vadd.f32 %v3180, %v2442
      %v3182 = vadd.f32 %v3181, %v2446
      %v3183 = vadd.f32 %v3182, %v2450
      %v3184 = vadd.f32 %v3183, %v2454
      %v3185 = vadd.f32 %v3184, %v2458
      %v3186 = vadd.f32 %v3185, %v2462
      %v3187 = vadd.f32 %v3186, %v2466
      %v3188 = vadd.f32 %v3187, %v2470
      %v3189 = vadd.f32 %v3188, %v2474
      %v3190 = vadd.f32 %v3189, %v2478
      %v3191 = vadd.f32 %v3190, %v2482
      %v3192 = vadd.f32 %v3191, %v2486
      %v3193 = vadd.f32 %v3192, %v2490
      %v3194 = vadd.f32 %v3193, %v2494
      %v3195 = vadd.f32 %v3194, %v2498
      %v3196 = vadd.f32 %v3195, %v2502
      %v3197 = vadd.f32 %v3196, %v2506
      %v3198 = vadd.f32 %v3197, %v2510
      %v3199 = vadd.f32 %v3198, %v2514
      %v3200 = vadd.f32 %v3199, %v2518
      %v3201 = vadd.f32 %v3200, %v2522
      %v3202 = vadd.f32 %v3201, %v2526
      %v3203 = vadd.f32 %v3202, %v2530
      %v3204 = vadd.f32 %v3203, %v2534
      %v3205 = vadd.f32 %v3204, %v2538
      %v3206 = vadd.f32 %v3205, %v2542
      %v3207 = vadd.f32 %v3206, %v2546
      %v3208 = vadd.f32 %v3207, %v2550
      %v3209 = vadd.f32 %v3208, %v2554
      %v3210 = vadd.f32 %v3209, %v2558
      %v3211 = vadd.f32 %v3210, %v2562
      %v3212 = vadd.f32 %v3211, %v2566
      %v3213 = vadd.f32 %v3212, %v2570
      %v3214 = vadd.f32 %v3213, %v2574
      %v3215 = vadd.f32 %v3214, %v2578
      %v3216 = vadd.f32 %v3215, %v2582
      %v3217 = vadd.f32 %v3216, %v2586
      %v3218 = vadd.f32 %v3217, %v2590
      %v3219 = vadd.f32 %v3218, %v2594
      %v3220 = vadd.f32 %v3219, %v2598
      %v3221 = vadd.f32 %v3220, %v2602
      %v3222 = vadd.f32 %v3221, %v2606
      %v3223 = vadd.f32 %v3222, %v2610
      %v3224 = vadd.f32 %v3223, %v2614
      %v3225 = vadd.f32 %v3224, %v2618
      %v3226 = vadd.f32 %v3225, %v2622
      %v3227 = vadd.f32 %v3226, %v2626
      %v3228 = vadd.f32 %v3227, %v2630
      %v3229 = vadd.f32 %v3228, %v2634
      %v3230 = vadd.f32 %v3229, %v2638
      %v3231 = vadd.f32 %v3230, %v2642
      %v3232 = vadd.f32 %v3231, %v2646
      %v3233 = vadd.f32 %v3232, %v2650
      %v3234 = vadd.f32 %v3233, %v2654
      %v3235 = vadd.f32 %v3234, %v2658
      %v3236 = vadd.f32 %v3235, %v2662
      %v3237 = vadd.f32 %v3236, %v2666
      %v3238 = vadd.f32 %v3237, %v2670
      %v3239 = vadd.f32 %v3238, %v2674
      %v3240 = vadd.f32 %v3239, %v2678
      %v3241 = vadd.f32 %v3240, %v2682
      %v3242 = vadd.f32 %v3241, %v2686
      %v3243 = vadd.f32 %v3242, %v2690
      %v3244 = vadd.f32 %v3243, %v2694
      %v3245 = vadd.f32 %v3244, %v2698
      %v3246 = vadd.f32 %v3245, %v2702
      %v3247 = vadd.f32 %v3246, %v2706
      %v3248 = vadd.f32 %v3247, %v2710
      %v3249 = vadd.f32 %v3248, %v2714
      %v3250 = vadd.f32 %v3249, %v2718
      %v3251 = vadd.f32 %v3250, %v2722
      %v3252 = vadd.f32 %v3251, %v2726
      %v3253 = vrot.slane %v3252, 4
      %v3254 = vadd.f32 %v3252, %v3253
      %v3255 = vrot.slane %v3254, 2
      %v3256 = vadd.f32 %v3254, %v3255
      %v3257 = vrot.slane %v3256, 1
      %v3258 = vadd.f32 %v3256, %v3257
      %v3259 = vmul.f32 %v2859, 0.0009765625
      %v3260 = vmul.f32 %v2992, 0.0009765625
      %v3261 = vmul.f32 %v3125, 0.0009765625
      %v3262 = vmul.f32 %v3258, 0.0009765625
      %v3263 = vld [vmem:[%s169] sm:$0xf]
      %v3268 = vcombine.low %v3259, %v3260
      %v3269 = vcombine.low %v3261, %v3262
      %v3271 = vunpack.c.l.s4 1966171168
      %v3272 = vunpack.c.0.s8 %v3271
      %v3273 = vlaneseq
      %v3274 = vshrl.u32 %v3273, 7
      %v3275 = vsub.s32 %v3272, %v3274
      %v3276 = vrot.slane %v3268, %v3275
      %v3278 = vunpack.c.l.s4 1966171168
      %v3279 = vunpack.c.0.s8 %v3278
      %v3280 = vlaneseq
      %v3281 = vshrl.u32 %v3280, 7
      %v3282 = vsub.s32 %v3279, %v3281
      %v3283 = vrot.slane %v3269, %v3282
      %v3284 = vcombine.low %v3276, %v3283
      %v3286 = vunpack.c.l.s4 1966171168
      %v3287 = vunpack.c.0.s8 %v3286
      %v3288 = vlaneseq
      %v3289 = vshrl.u32 %v3288, 7
      %v3290 = vsub.s32 %v3287, %v3289
      %v3291 = vrot.slane %v3284, %v3290
      %v3293 = vadd.f32 %v3263, %v3291
      %v3294 = vlaneseq
      %vm3295 = vcmp.ge.s32.totalorder %v3294, 0
      %vm3296 = vcmp.lt.s32.totalorder %v3294, 512
      %vm3297 = vmand %vm3295, %vm3296
      %3298 = vst.msk [vmem:[%s169] sm:$0xf] %vm3297, %v3293
      %p3299 = scmp.lt.s32.totalorder %s17, 1
      %s3300 = scalar_select %p3299, %s17, 1
      %s3301 = smul.addr %s3300, 4
      %s3302 = scalar_lea.vmem %s2, %s3301
      // Predicated region
      $region33: #{encoder_cnn_forward.2} parent=27 // pred_check
        %p3303 = pneg %p92
      $region34: #{encoder_cnn_forward.2} parent=27 // pred_check_branch
        %3305 = sbr.rel (%p3303) target = $region36
      $region35: #{encoder_cnn_forward.2} parent=27 // pred_region
        _
      $region36: #{encoder_cnn_forward.2} parent=27 // pred_fallthru
        _
    $region28: #{encoder_cnn_forward.2} parent=5 // pred_fallthru
      _
    %p3306 = scmp.le.s32.totalorder 2, %s8
    // Predicated region
    $region37: #{encoder_cnn_forward.2} parent=5 // pred_check
      %p3307 = pneg %p3306
    $region38: #{encoder_cnn_forward.2} parent=5 // pred_check_branch
      %3309 = sbr.rel (%p3307) target = $region40
    $region39: #{encoder_cnn_forward.2} parent=5 // pred_region
      %s3310 = ssub.s32 %s8, 2
      // Predicated region
      $region41: #{encoder_cnn_forward.2} parent=39 // pred_check
        %p3311 = pneg %p98
      $region42: #{encoder_cnn_forward.2} parent=39 // pred_check_branch
        %3313 = sbr.rel (%p3311) target = $region44
      $region43: #{encoder_cnn_forward.2} parent=39 // pred_region
        %p3314 = scmp.lt.s32.totalorder %s19, 1
        %s3315 = scalar_select %p3314, %s19, 1
        %s3316 = smul.addr %s3315, 4
        %s3317 = scalar_lea.vmem %s2, %s3316
      $region44: #{encoder_cnn_forward.2} parent=39 // pred_fallthru
        _
    $region40: #{encoder_cnn_forward.2} parent=5 // pred_fallthru
      _
  $region6: #{encoder_cnn_forward.2} parent=0 // loop_footer
    %s12 = sadd.s32 1, %s8
  $region7: #{encoder_cnn_forward.2} parent=0 // loop_footer_branch
    %7 = sbr.rel target = $region3
  $region8: #{encoder_cnn_forward.2} parent=0 // loop_exit
    _

</llo_original>
